<compile_context>
chip_gen: v7x
topology: tpu7x:2x2x1
jax: 0.10.0
libtpu: 0.0.40
codegen_flags: <defaults>
</compile_context>

<pallas_src>
import functools
import math

import numpy as np
import jax
import jax.numpy as jnp
from jax import lax
from jax.experimental import pallas as pl
from jax.experimental.pallas import tpu as pltpu


def _round_up(x: int, m: int) -> int:
    return ((x + m - 1) // m) * m


@functools.lru_cache(maxsize=1)
def _vmem_capacity_bytes() -> int:
    """Physical VMEM per TensorCore (128 MiB v5e/v6e, 64 MiB v7x)."""
    try:
        cap = getattr(pltpu.get_tpu_info(), "vmem_capacity_bytes", None)
        if cap:
            return int(cap)
    except Exception:
        pass
    return 64 << 20  # conservative (v7x-sized) fallback


def _const_spec(shape, index_map):
    """BlockSpec for a constant-index block: single-buffered (no 2nd buffer)."""
    try:
        return pl.BlockSpec(shape, index_map, pipeline_mode=pl.Buffered(1))
    except TypeError:  # older jax without pipeline_mode kwarg
        return pl.BlockSpec(shape, index_map)


# -----------------------------------------------------------------------------
# Fused kernel: cosine top-1 router + gated LoRA + base GEMM
# -----------------------------------------------------------------------------
def _moe_lora_fused_kernel(x_ref, wT_ref, wpT_ref, bp_ref, sim_ref, emap_ref,
                           d_ref, u_ref, o_ref, mixed_ref):
    """out_tile = x @ W^T_tile + mixed @ U_tile, mixed = (x @ D) * g_exp.

    x:(tm,K) bf16; wT:(K,tn) bf16; wpT:(K,P) bf16; bp:(1,P) f32;
    sim:(P,E) f32 (pre-normalized * logit scale); emap:(E,R_pad) f32 one-hot
    expert->rank map; d:(K,R_pad) bf16; u:(R_pad,tn) bf16; o:(tm,tn) out dtype;
    mixed: VMEM scratch (tm,R_pad) bf16, persists across the j (N) loop.
    """
    @pl.when(pl.program_id(1) == 0)
    def _():
        # Router + LoRA down-projection + gating: once per M tile, cached for
        # every N tile.  bf16 MXU operands, f32 accumulation/epilogue.
        x = x_ref[...]
        proj = jnp.dot(x, wpT_ref[...],
                       preferred_element_type=jnp.float32) + bp_ref[...]
        inv_norm = lax.rsqrt(jnp.sum(proj * proj, axis=-1, keepdims=True) + 1e-12)
        logits = jnp.dot(proj * inv_norm, sim_ref[...],
                         preferred_element_type=jnp.float32)          # (tm, E)
        m = jnp.max(logits, axis=-1, keepdims=True)
        ex = jnp.exp(logits - m)
        p = ex / jnp.sum(ex, axis=-1, keepdims=True)
        # Exact top-1: one_hot(first argmax) * p (first index wins on ties,
        # matching torch.max / scatter_ in the reference module).
        ncols = logits.shape[-1]
        col = lax.broadcasted_iota(jnp.int32, logits.shape, 1)
        first = jnp.min(jnp.where(logits >= m, col, ncols), axis=-1, keepdims=True)
        gate = jnp.where(col == first, p, 0.0)                         # (tm, E)
        # Expand per-expert gate to the lane-dense per-rank gate (R_pad = k*128).
        g_exp = jnp.dot(gate, emap_ref[...], preferred_element_type=jnp.float32)
        down = jnp.dot(x, d_ref[...], preferred_element_type=jnp.float32)
        mixed_ref[...] = (down * g_exp).astype(mixed_ref.dtype)

    base = jnp.dot(x_ref[...], wT_ref[...], preferred_element_type=jnp.float32)
    up = jnp.dot(mixed_ref[...], u_ref[...], preferred_element_type=jnp.float32)
    o_ref[...] = (base + up).astype(o_ref.dtype)


# -----------------------------------------------------------------------------
# One-time weight preprocessing (call at module init, NOT per step)
# -----------------------------------------------------------------------------
def prepare_moe_lora_params(w, wd_list, wu_list, wp, bp, sim, temperature,
                            *, compute_dtype=jnp.bfloat16):
    """Pack/normalize/cast the weights once.

    w: (out, in);  wd_list[e]: (r_e, in);  wu_list[e]: (out, r_e)
    wp: (proj_dim, in);  bp: (proj_dim,);  sim: (proj_dim, E);  temperature: scalar
    """
    f32 = jnp.float32
    cd = jnp.dtype(compute_dtype)
    N, K = int(w.shape[0]), int(w.shape[1])
    P = int(wp.shape[0])
    E = len(wd_list)
    ranks = [int(wd.shape[0]) for wd in wd_list]
    R = sum(ranks)
    N_pad = _round_up(N, 128)                 # lane-dense output columns
    R_pad = _round_up(max(R, 1), 128)         # lane-dense LoRA rank axis

    wT = jnp.zeros((K, N_pad), cd).at[:, :N].set(w.T.astype(cd))

    D = jnp.zeros((K, R_pad), f32)            # concat of all experts' lora_down^T
    U = jnp.zeros((R_pad, N_pad), f32)        # block-diagonal stack of lora_up^T
    emap_np = np.zeros((E, R_pad), np.float32)
    off = 0
    for e, r_e in enumerate(ranks):
        D = D.at[:, off:off + r_e].set(wd_list[e].T.astype(f32))
        U = U.at[off:off + r_e, :N].set(wu_list[e].T.astype(f32))
        emap_np[e, off:off + r_e] = 1.0
        off += r_e

    # Fold F.normalize(sim, dim=0) and exp(clamp(temperature)) into one matrix.
    clamp_max = math.log(1.0 / 0.01)
    scale = jnp.exp(jnp.minimum(jnp.asarray(temperature, f32), clamp_max)).reshape(())
    sim_f = sim.astype(f32)
    sim_n = sim_f / jnp.maximum(
        jnp.sqrt(jnp.sum(sim_f * sim_f, axis=0, keepdims=True)), 1e-12)

    params = dict(
        wT=wT,
        D=D.astype(cd),
        U=U.astype(cd),
        emap=jnp.asarray(emap_np),
        wpT=wp.T.astype(cd),
        bp=bp.reshape(1, P).astype(f32),
        sim_scaled=(sim_n * scale).astype(f32),
    )
    meta = dict(K=K, N=N, N_pad=N_pad, P=P, E=E, R_pad=R_pad, compute_dtype=cd)
    return params, meta


# -----------------------------------------------------------------------------
# Tile / VMEM policy (per TPU generation)
# -----------------------------------------------------------------------------
def _select_tiles_and_vmem(M, meta, out_itemsize, tm_req=None, tn_req=None):
    K, N_pad, P, E, R_pad = (meta["K"], meta["N_pad"], meta["P"],
                             meta["E"], meta["R_pad"])
    cd_size = jnp.dtype(meta["compute_dtype"]).itemsize
    cap = _vmem_capacity_bytes()

    M_cap = max(128, _round_up(M, 128))
    if tm_req is not None:
        tm_cands = [min(max(128, _round_up(int(tm_req), 128)), M_cap)]
    else:
        tm_cands = [t for t in (512, 256, 128) if t <= M_cap] or [128]

    tn_divs = [t for t in range(N_pad, 0, -128) if N_pad % t == 0]
    if tn_req is not None:
        tn_r = max(128, _round_up(int(tn_req), 128))
        tn_divs = [t for t in tn_divs if t <= tn_r] or tn_divs

    def footprint(tm_, tn_):
        dbl = 2 * (tm_ * K * cd_size          # x            (double-buffered)
                   + K * tn_ * cd_size        # W^T tile
                   + R_pad * tn_ * cd_size    # U tile
                   + tm_ * tn_ * out_itemsize)  # output tile
        const = (K * P * cd_size + K * R_pad * cd_size          # Wp^T, D (x1)
                 + 4 * (P + P * E + E * R_pad))                  # bp, sim, emap
        scratch = tm_ * R_pad * cd_size                          # mixed
        return dbl + const + scratch

    budget = int(0.6 * cap)                   # leave headroom for compiler scratch
    best = None
    for tm_ in tm_cands:                      # prefer big tm: halves W^T refetch
        for tn_ in tn_divs:
            if footprint(tm_, tn_) <= budget:
                best = (tm_, tn_)
                break
        if best is not None:
            break
    if best is None:
        best = (tm_cands[-1], tn_divs[-1])
    tm_, tn_ = best
    vmem_limit = int(min(0.85 * cap, max(32 << 20, footprint(tm_, tn_) + (8 << 20))))
    return tm_, tn_, vmem_limit


# -----------------------------------------------------------------------------
# Per-step apply
# -----------------------------------------------------------------------------
def moe_lora_injected_linear(x, params, meta, *, tm=None, tn=None):
    """Eval-mode forward of MOELoraInjectedLinear (bias=False, lora_bias=False)."""
    cd = meta["compute_dtype"]
    K, N, N_pad = meta["K"], meta["N"], meta["N_pad"]
    P, E, R_pad = meta["P"], meta["E"], meta["R_pad"]

    orig_shape = x.shape
    out_dtype = x.dtype                      # emit output directly in model dtype
    x2 = x.reshape(-1, K)
    M = int(x2.shape[0])

    tm, tn, vmem_limit = _select_tiles_and_vmem(
        M, meta, jnp.dtype(out_dtype).itemsize, tm_req=tm, tn_req=tn)
    M_pad = _round_up(M, tm)

    # Single padded compute-dtype activation copy (the only per-call activation prep).
    if M_pad == M:
        x_pad = x2.astype(cd)
    else:
        x_pad = jnp.zeros((M_pad, K), cd).at[:M, :].set(x2.astype(cd))

    cost = pl.CostEstimate(
        flops=2 * M_pad * (K * N_pad + K * P + P * E + E * R_pad
                           + K * R_pad + R_pad * N_pad),
        transcendentals=2 * M_pad * E,
        bytes_accessed=(
            int(jnp.dtype(cd).itemsize) * (M_pad * K + K * N_pad + K * P
                                           + K * R_pad + R_pad * N_pad)
            + 4 * (P + P * E + E * R_pad)
            + int(jnp.dtype(out_dtype).itemsize) * M_pad * N_pad),
    )

    out = pl.pallas_call(
        _moe_lora_fused_kernel,
        out_shape=jax.ShapeDtypeStruct((M_pad, N_pad), out_dtype),
        grid_spec=pltpu.PrefetchScalarGridSpec(
            num_scalar_prefetch=0,
            grid=(M_pad // tm, N_pad // tn),
            in_specs=[
                pl.BlockSpec((tm, K), lambda i, j: (i, 0)),        # x
                pl.BlockSpec((K, tn), lambda i, j: (0, j)),        # W^T
                _const_spec((K, P), lambda i, j: (0, 0)),          # Wp^T
                _const_spec((1, P), lambda i, j: (0, 0)),          # bp
                _const_spec((P, E), lambda i, j: (0, 0)),          # sim (norm * scale)
                _const_spec((E, R_pad), lambda i, j: (0, 0)),      # expert->rank map
                _const_spec((K, R_pad), lambda i, j: (0, 0)),      # D (lora_down^T)
                pl.BlockSpec((R_pad, tn), lambda i, j: (0, j)),    # U (blockdiag lora_up^T)
            ],
            out_specs=pl.BlockSpec((tm, tn), lambda i, j: (i, j)),
            scratch_shapes=[pltpu.VMEM((tm, R_pad), cd)],          # per-i `mixed`
        ),
        compiler_params=pltpu.CompilerParams(
            # The j axis must stay "arbitrary": the per-i `mixed` scratch is
            # (re)computed only at j == 0, which would break if j were sharded.
            dimension_semantics=("parallel", "arbitrary"),
            vmem_limit_bytes=vmem_limit,
        ),
        cost_estimate=cost,
    )(x_pad, params["wT"], params["wpT"], params["bp"], params["sim_scaled"],
      params["emap"], params["D"], params["U"])

    y = out[:M, :N]
    return y.reshape(*orig_shape[:-1], N)


if __name__ == "__main__":
    # Module config: MOELoraInjectedLinear(in, out, bias=False, r=[1,2,4,8]),
    # router CosineTopKGate(in_features, 4, proj_dim=256, init_t=0.5).
    batch, seq = 2, 72
    in_features, out_features = 64, 320
    proj_dim = 256
    r_list = [1, 2, 4, 8]
    E = len(r_list)

    key = jax.random.PRNGKey(0)
    keys = jax.random.split(key, 6 + 2 * E)

    bound = 1.0 / math.sqrt(in_features)
    w = jax.random.uniform(keys[0], (out_features, in_features), jnp.float32,
                           minval=-bound, maxval=bound)
    wp = jax.random.uniform(keys[1], (proj_dim, in_features), jnp.float32,
                            minval=-bound, maxval=bound)
    bp = jax.random.uniform(keys[2], (proj_dim,), jnp.float32,
                            minval=-bound, maxval=bound)
    temperature = jnp.log(jnp.asarray(1.0 / 0.5, jnp.float32))   # init_t = 0.5

    # Tokens cluster around E well-separated centres; sim columns are the
    # projections of those centres, so every token has a decisive top-1 expert
    # (full routing variety is exercised, robust to f32/bf16 rounding).
    centers = jax.random.normal(keys[3], (E, in_features), jnp.float32)
    assign = jnp.arange(batch * seq) % E
    noise = 0.05 * jax.random.normal(keys[4], (batch * seq, in_features), jnp.float32)
    x = (centers[assign] + noise).reshape(batch, seq, in_features)
    sim = 0.01 * (centers @ wp.T + bp).T                          # (proj_dim, E)

    wd_list, wu_list = [], []
    for i, r_e in enumerate(r_list):
        wd_list.append((1.0 / r_e) *
                       jax.random.normal(keys[5 + 2 * i], (r_e, in_features), jnp.float32))
        # The module zero-inits lora_up; use small non-zero weights so the
        # MoE/LoRA branch actually contributes and is validated.
        wu_list.append(0.02 *
                       jax.random.normal(keys[6 + 2 * i], (out_features, r_e), jnp.float32))

    # One-time weight preprocessing (module init), then a jitted per-step apply.
    params, meta = prepare_moe_lora_params(w, wd_list, wu_list, wp, bp, sim, temperature)
    apply_fn = jax.jit(lambda xx, pp: moe_lora_injected_linear(xx, pp, meta))
    y = jax.block_until_ready(apply_fn(x, params))

    # ---- pure-JAX f32 reference of the PyTorch eval-mode forward ----------------
    x2 = x.reshape(-1, in_features)
    base = x2 @ w.T
    proj = x2 @ wp.T + bp
    projn = proj / jnp.maximum(jnp.linalg.norm(proj, axis=1, keepdims=True), 1e-12)
    simn = sim / jnp.maximum(jnp.linalg.norm(sim, axis=0, keepdims=True), 1e-12)
    scale = jnp.exp(jnp.minimum(temperature, math.log(1.0 / 0.01)))
    logits = (projn @ simn) * scale
    p = jax.nn.softmax(logits, axis=1)
    one_hot = jax.nn.one_hot(jnp.argmax(p, axis=1), E, dtype=p.dtype)
    gate = one_hot * p
    lora = jnp.stack([(x2 @ wd.T) @ wu.T for wd, wu in zip(wd_list, wu_list)], axis=1)
    res = jnp.sum(gate[:, :, None] * lora, axis=1)
    y_ref = (base + res).reshape(batch, seq, out_features)

    assert y.shape == (batch, seq, out_features)
    max_err = float(jnp.max(jnp.abs(y.astype(jnp.float32) - y_ref)))
    assert jnp.allclose(y.astype(jnp.float32), y_ref, atol=5e-2, rtol=5e-2), \
        f"max abs err={max_err}"
    print("KERNEL_OK")
</pallas_src>

<mosaic_0001>
module attributes {stable_mosaic.version = 11 : i64} {
  func.func @_moe_lora_fused_kernel(%arg0: i32, %arg1: i32, %arg2: memref<256x64xbf16, #tpu.memory_space<vmem>>, %arg3: memref<64x384xbf16, #tpu.memory_space<vmem>>, %arg4: memref<64x256xbf16, #tpu.memory_space<vmem>>, %arg5: memref<1x256xf32, #tpu.memory_space<vmem>>, %arg6: memref<256x4xf32, #tpu.memory_space<vmem>>, %arg7: memref<4x128xf32, #tpu.memory_space<vmem>>, %arg8: memref<64x128xbf16, #tpu.memory_space<vmem>>, %arg9: memref<128x384xbf16, #tpu.memory_space<vmem>>, %arg10: memref<256x384xf32, #tpu.memory_space<vmem>>, %arg11: memref<256x128xbf16, #tpu.memory_space<vmem>>) attributes {dimension_semantics = [#tpu.dimension_semantics<parallel>, #tpu.dimension_semantics<arbitrary>], iteration_bounds = array<i64: 1, 1>, scalar_prefetch = 0 : i64, scratch_operands = 1 : i64, tpu.core_type = #tpu.core_type<tc>, window_params = [{transform_indices = @transform_0, window_bounds = array<i64: 256, 64>}, {transform_indices = @transform_1, window_bounds = array<i64: 64, 384>}, {pipeline_mode = #tpu.pipeline_mode<synchronous>, transform_indices = @transform_2, window_bounds = array<i64: 64, 256>}, {pipeline_mode = #tpu.pipeline_mode<synchronous>, transform_indices = @transform_3, window_bounds = array<i64: 1, 256>}, {pipeline_mode = #tpu.pipeline_mode<synchronous>, transform_indices = @transform_4, window_bounds = array<i64: 256, 4>}, {pipeline_mode = #tpu.pipeline_mode<synchronous>, transform_indices = @transform_5, window_bounds = array<i64: 4, 128>}, {pipeline_mode = #tpu.pipeline_mode<synchronous>, transform_indices = @transform_6, window_bounds = array<i64: 64, 128>}, {transform_indices = @transform_7, window_bounds = array<i64: 128, 384>}, {transform_indices = @transform_8, window_bounds = array<i64: 256, 384>}]} {
    %c0_i32 = arith.constant 0 : i32
    %0 = arith.cmpi eq, %arg1, %c0_i32 : i32
    %1 = arith.extui %0 : i1 to i32
    %c0_i32_0 = arith.constant 0 : i32
    %2 = arith.cmpi ne, %1, %c0_i32_0 : i32
    scf.if %2 {
      %c0_11 = arith.constant 0 : index
      %c0_12 = arith.constant 0 : index
      %11 = vector.load %arg2[%c0_11, %c0_12] : memref<256x64xbf16, #tpu.memory_space<vmem>>, vector<256x64xbf16>
      %c0_13 = arith.constant 0 : index
      %c0_14 = arith.constant 0 : index
      %12 = vector.load %arg4[%c0_13, %c0_14] : memref<64x256xbf16, #tpu.memory_space<vmem>>, vector<64x256xbf16>
      %cst_15 = arith.constant dense<0.000000e+00> : vector<256x256xf32>
      %13 = tpu.matmul %11, %12, %cst_15 {dimension_numbers = #tpu.dot_dimension_numbers<[1], [0], [0], [1], [0, 0, 1, 1], [], []>} : vector<256x64xbf16>, vector<64x256xbf16>, vector<256x256xf32> -> vector<256x256xf32>
      %c0_16 = arith.constant 0 : index
      %c0_17 = arith.constant 0 : index
      %14 = vector.load %arg5[%c0_16, %c0_17] : memref<1x256xf32, #tpu.memory_space<vmem>>, vector<1x256xf32>
      %15 = vector.broadcast %14 : vector<1x256xf32> to vector<256x256xf32>
      %16 = arith.addf %13, %15 : vector<256x256xf32>
      %17 = arith.mulf %16, %16 : vector<256x256xf32>
      %cst_18 = arith.constant dense<0.000000e+00> : vector<256xf32>
      %18 = vector.multi_reduction <add>, %17, %cst_18 [1] : vector<256x256xf32> to vector<256xf32>
      %19 = vector.shape_cast %18 : vector<256xf32> to vector<256x1xf32>
      %cst_19 = arith.constant 9.99999996E-13 : f32
      %20 = vector.broadcast %cst_19 : f32 to vector<256x1xf32>
      %21 = arith.addf %19, %20 : vector<256x1xf32>
      %22 = math.rsqrt %21 : vector<256x1xf32>
      %23 = vector.broadcast %22 : vector<256x1xf32> to vector<256x256xf32>
      %24 = arith.mulf %16, %23 : vector<256x256xf32>
      %c0_20 = arith.constant 0 : index
      %c0_21 = arith.constant 0 : index
      %25 = vector.load %arg6[%c0_20, %c0_21] : memref<256x4xf32, #tpu.memory_space<vmem>>, vector<256x4xf32>
      %cst_22 = arith.constant dense<0.000000e+00> : vector<256x4xf32>
      %26 = tpu.matmul %24, %25, %cst_22 {dimension_numbers = #tpu.dot_dimension_numbers<[1], [0], [0], [1], [0, 0, 1, 1], [], []>} : vector<256x256xf32>, vector<256x4xf32>, vector<256x4xf32> -> vector<256x4xf32>
      %cst_23 = arith.constant dense<0xFF800000> : vector<256xf32>
      %27 = vector.multi_reduction <maximumf>, %26, %cst_23 [1] : vector<256x4xf32> to vector<256xf32>
      %28 = vector.shape_cast %27 : vector<256xf32> to vector<256x1xf32>
      %29 = vector.broadcast %28 : vector<256x1xf32> to vector<256x4xf32>
      %30 = arith.subf %26, %29 : vector<256x4xf32>
      %31 = math.exp %30 : vector<256x4xf32>
      %cst_24 = arith.constant dense<0.000000e+00> : vector<256xf32>
      %32 = vector.multi_reduction <add>, %31, %cst_24 [1] : vector<256x4xf32> to vector<256xf32>
      %33 = vector.shape_cast %32 : vector<256xf32> to vector<256x1xf32>
      %34 = vector.broadcast %33 : vector<256x1xf32> to vector<256x4xf32>
      %35 = arith.divf %31, %34 : vector<256x4xf32>
      %36 = tpu.iota {dimensions = array<i32: 1>} : vector<256x4xi32>
      %37 = vector.broadcast %28 : vector<256x1xf32> to vector<256x4xf32>
      %38 = arith.cmpf oge, %26, %37 : vector<256x4xf32>
      %c4_i32 = arith.constant 4 : i32
      %39 = vector.broadcast %c4_i32 : i32 to vector<256x4xi32>
      %40 = arith.select %38, %36, %39 : vector<256x4xi1>, vector<256x4xi32>
      %cst_25 = arith.constant dense<2147483647> : vector<256xi32>
      %41 = vector.multi_reduction <minsi>, %40, %cst_25 [1] : vector<256x4xi32> to vector<256xi32>
      %42 = vector.shape_cast %41 : vector<256xi32> to vector<256x1xi32>
      %43 = vector.broadcast %42 : vector<256x1xi32> to vector<256x4xi32>
      %44 = arith.cmpi eq, %36, %43 : vector<256x4xi32>
      %cst_26 = arith.constant 0.000000e+00 : f32
      %45 = vector.broadcast %cst_26 : f32 to vector<256x4xf32>
      %46 = arith.select %44, %35, %45 : vector<256x4xi1>, vector<256x4xf32>
      %c0_27 = arith.constant 0 : index
      %c0_28 = arith.constant 0 : index
      %47 = vector.load %arg7[%c0_27, %c0_28] : memref<4x128xf32, #tpu.memory_space<vmem>>, vector<4x128xf32>
      %cst_29 = arith.constant dense<0.000000e+00> : vector<256x128xf32>
      %48 = tpu.matmul %46, %47, %cst_29 {dimension_numbers = #tpu.dot_dimension_numbers<[1], [0], [0], [1], [0, 0, 1, 1], [], []>} : vector<256x4xf32>, vector<4x128xf32>, vector<256x128xf32> -> vector<256x128xf32>
      %c0_30 = arith.constant 0 : index
      %c0_31 = arith.constant 0 : index
      %49 = vector.load %arg8[%c0_30, %c0_31] : memref<64x128xbf16, #tpu.memory_space<vmem>>, vector<64x128xbf16>
      %cst_32 = arith.constant dense<0.000000e+00> : vector<256x128xf32>
      %50 = tpu.matmul %11, %49, %cst_32 {dimension_numbers = #tpu.dot_dimension_numbers<[1], [0], [0], [1], [0, 0, 1, 1], [], []>} : vector<256x64xbf16>, vector<64x128xbf16>, vector<256x128xf32> -> vector<256x128xf32>
      %51 = arith.mulf %50, %48 : vector<256x128xf32>
      %52 = arith.truncf %51 : vector<256x128xf32> to vector<256x128xbf16>
      %c0_33 = arith.constant 0 : index
      %c0_34 = arith.constant 0 : index
      %53 = vector.load %arg11[%c0_33, %c0_34] : memref<256x128xbf16, #tpu.memory_space<vmem>>, vector<256x128xbf16>
      tpu.vector_store %arg11[%c0_33, %c0_34], %52 {strides = array<i32>} : memref<256x128xbf16, #tpu.memory_space<vmem>>, vector<256x128xbf16>,
    } else {
    }
    %c0 = arith.constant 0 : index
    %c0_1 = arith.constant 0 : index
    %3 = vector.load %arg2[%c0, %c0_1] : memref<256x64xbf16, #tpu.memory_space<vmem>>, vector<256x64xbf16>
    %c0_2 = arith.constant 0 : index
    %c0_3 = arith.constant 0 : index
    %4 = vector.load %arg3[%c0_2, %c0_3] : memref<64x384xbf16, #tpu.memory_space<vmem>>, vector<64x384xbf16>
    %cst = arith.constant dense<0.000000e+00> : vector<256x384xf32>
    %5 = tpu.matmul %3, %4, %cst {dimension_numbers = #tpu.dot_dimension_numbers<[1], [0], [0], [1], [0, 0, 1, 1], [], []>} : vector<256x64xbf16>, vector<64x384xbf16>, vector<256x384xf32> -> vector<256x384xf32>
    %c0_4 = arith.constant 0 : index
    %c0_5 = arith.constant 0 : index
    %6 = vector.load %arg11[%c0_4, %c0_5] : memref<256x128xbf16, #tpu.memory_space<vmem>>, vector<256x128xbf16>
    %c0_6 = arith.constant 0 : index
    %c0_7 = arith.constant 0 : index
    %7 = vector.load %arg9[%c0_6, %c0_7] : memref<128x384xbf16, #tpu.memory_space<vmem>>, vector<128x384xbf16>
    %cst_8 = arith.constant dense<0.000000e+00> : vector<256x384xf32>
    %8 = tpu.matmul %6, %7, %cst_8 {dimension_numbers = #tpu.dot_dimension_numbers<[1], [0], [0], [1], [0, 0, 1, 1], [], []>} : vector<256x128xbf16>, vector<128x384xbf16>, vector<256x384xf32> -> vector<256x384xf32>
    %9 = arith.addf %5, %8 : vector<256x384xf32>
    %c0_9 = arith.constant 0 : index
    %c0_10 = arith.constant 0 : index
    %10 = vector.load %arg10[%c0_9, %c0_10] : memref<256x384xf32, #tpu.memory_space<vmem>>, vector<256x384xf32>
    tpu.vector_store %arg10[%c0_9, %c0_10], %9 {strides = array<i32>} : memref<256x384xf32, #tpu.memory_space<vmem>>, vector<256x384xf32>,
    return
  }
  func.func @transform_0(%arg0: i32, %arg1: i32) -> (i32, i32) {
    %c0_i32 = arith.constant 0 : i32
    %c0_i32_0 = arith.constant 0 : i32
    return %arg0, %c0_i32 : i32, i32
  }
  func.func @transform_1(%arg0: i32, %arg1: i32) -> (i32, i32) {
    %c0_i32 = arith.constant 0 : i32
    %c0_i32_0 = arith.constant 0 : i32
    return %c0_i32, %arg1 : i32, i32
  }
  func.func @transform_2(%arg0: i32, %arg1: i32) -> (i32, i32) {
    %c0_i32 = arith.constant 0 : i32
    %c0_i32_0 = arith.constant 0 : i32
    %c0_i32_1 = arith.constant 0 : i32
    return %c0_i32, %c0_i32_0 : i32, i32
  }
  func.func @transform_3(%arg0: i32, %arg1: i32) -> (i32, i32) {
    %c0_i32 = arith.constant 0 : i32
    %c0_i32_0 = arith.constant 0 : i32
    %c0_i32_1 = arith.constant 0 : i32
    return %c0_i32, %c0_i32_0 : i32, i32
  }
  func.func @transform_4(%arg0: i32, %arg1: i32) -> (i32, i32) {
    %c0_i32 = arith.constant 0 : i32
    %c0_i32_0 = arith.constant 0 : i32
    %c0_i32_1 = arith.constant 0 : i32
    return %c0_i32, %c0_i32_0 : i32, i32
  }
  func.func @transform_5(%arg0: i32, %arg1: i32) -> (i32, i32) {
    %c0_i32 = arith.constant 0 : i32
    %c0_i32_0 = arith.constant 0 : i32
    %c0_i32_1 = arith.constant 0 : i32
    return %c0_i32, %c0_i32_0 : i32, i32
  }
  func.func @transform_6(%arg0: i32, %arg1: i32) -> (i32, i32) {
    %c0_i32 = arith.constant 0 : i32
    %c0_i32_0 = arith.constant 0 : i32
    %c0_i32_1 = arith.constant 0 : i32
    return %c0_i32, %c0_i32_0 : i32, i32
  }
  func.func @transform_7(%arg0: i32, %arg1: i32) -> (i32, i32) {
    %c0_i32 = arith.constant 0 : i32
    %c0_i32_0 = arith.constant 0 : i32
    return %c0_i32, %arg1 : i32, i32
  }
  func.func @transform_8(%arg0: i32, %arg1: i32) -> (i32, i32) {
    %c0_i32 = arith.constant 0 : i32
    return %arg0, %arg1 : i32, i32
  }
}

</mosaic_0001>

<llo_original>
// kernel: _lambda_.1
$region0: #{_lambda_.1}
  #allocation0 [shape = 'u32[]', space=smem, size = 0x4, offset = 0x4, fixed_abs, tag = 'smem constant byte address 0x4 - core index']
  #allocation1 [shape = 'u32[144,128]{1,0:T(1,128)}', space=vmem, size = 0x12000, scoped, tag = 'internal scratch']
  #allocation2 [shape = 'bf16[256,128]{1,0:T(16,128)(2,1)}', space=vmem, size = 0x10000, scoped, tag = 'scratch operand']
  %s0 = inlined_call_operand.vmem [shape: bf16[256,64], index: 0, kind: input, shape index: {}]
  %s1 = inlined_call_operand.vmem [shape: bf16[64,384], index: 1, kind: input, shape index: {}]
  %s2 = inlined_call_operand.vmem [shape: bf16[64,256], index: 2, kind: input, shape index: {}]
  %s3 = inlined_call_operand.vmem [shape: f32[1,256], index: 3, kind: input, shape index: {}]
  %s4 = inlined_call_operand.vmem [shape: f32[256,4], index: 4, kind: input, shape index: {}]
  %s5 = inlined_call_operand.vmem [shape: f32[4,128], index: 5, kind: input, shape index: {}]
  %s6 = inlined_call_operand.vmem [shape: bf16[64,128], index: 6, kind: input, shape index: {}]
  %s7 = inlined_call_operand.vmem [shape: bf16[128,384], index: 7, kind: input, shape index: {}]
  %s8 = inlined_call_operand.vmem [shape: f32[256,384], index: 8, kind: output, shape index: {}]
  %s9 = sld [smem:[#allocation0]]
  $region46: #{_lambda_.1} parent=0
    _
  %s11 = ssub.s32 1, %s9
  %s12 = scalar_select 0, %s11, %s9
  // Predicated region
  $region2: #{_lambda_.1} parent=0 // pred_check
    _
  $region3: #{_lambda_.1} parent=0 // pred_check_branch
    %14 = sbr.rel (0) target = $region5
  $region4: #{_lambda_.1} parent=0 // pred_region
    _
  $region5: #{_lambda_.1} parent=0 // pred_fallthru
    _
  // Predicated region
  $region6: #{_lambda_.1} parent=0 // pred_check
    _
  $region7: #{_lambda_.1} parent=0 // pred_check_branch
    %16 = sbr.rel (0) target = $region9
  $region8: #{_lambda_.1} parent=0 // pred_region
    _
  $region9: #{_lambda_.1} parent=0 // pred_fallthru
    _
  // Predicated region
  $region10: #{_lambda_.1} parent=0 // pred_check
    _
  $region11: #{_lambda_.1} parent=0 // pred_check_branch
    %18 = sbr.rel (0) target = $region13
  $region12: #{_lambda_.1} parent=0 // pred_region
    _
  $region13: #{_lambda_.1} parent=0 // pred_fallthru
    _
  // Predicated region
  $region14: #{_lambda_.1} parent=0 // pred_check
    _
  $region15: #{_lambda_.1} parent=0 // pred_check_branch
    %20 = sbr.rel (0) target = $region17
  $region16: #{_lambda_.1} parent=0 // pred_region
    _
  $region17: #{_lambda_.1} parent=0 // pred_fallthru
    _
  // Predicated region
  $region18: #{_lambda_.1} parent=0 // pred_check
    _
  $region19: #{_lambda_.1} parent=0 // pred_check_branch
    %22 = sbr.rel (0) target = $region21
  $region20: #{_lambda_.1} parent=0 // pred_region
    _
  $region21: #{_lambda_.1} parent=0 // pred_fallthru
    _
  // Predicated region
  $region22: #{_lambda_.1} parent=0 // pred_check
    _
  $region23: #{_lambda_.1} parent=0 // pred_check_branch
    %24 = sbr.rel (0) target = $region25
  $region24: #{_lambda_.1} parent=0 // pred_region
    _
  $region25: #{_lambda_.1} parent=0 // pred_fallthru
    _
  // Predicated region
  $region26: #{_lambda_.1} parent=0 // pred_check
    _
  $region27: #{_lambda_.1} parent=0 // pred_check_branch
    %26 = sbr.rel (0) target = $region29
  $region28: #{_lambda_.1} parent=0 // pred_region
    _
  $region29: #{_lambda_.1} parent=0 // pred_fallthru
    _
  // Predicated region
  $region30: #{_lambda_.1} parent=0 // pred_check
    _
  $region31: #{_lambda_.1} parent=0 // pred_check_branch
    %28 = sbr.rel (0) target = $region33
  $region32: #{_lambda_.1} parent=0 // pred_region
    _
  $region33: #{_lambda_.1} parent=0 // pred_fallthru
    _
  %p30 = scmp.eq.s32.totalorder 0, 0
  // Predicated region
  $region34: #{_lambda_.1} parent=0 // pred_check
    %p31 = pneg %p30
  $region35: #{_lambda_.1} parent=0 // pred_check_branch
    %33 = sbr.rel (%p31) target = $region37
  $region36: #{_lambda_.1} parent=0 // pred_region
    %v34 = vld [vmem:[%s0] sm:$0xf]
    %v35 = vld [vmem:[%s0 + $0x4] sm:$0xf]
    %v36 = vld [vmem:[%s0 + $0x8] sm:$0xf]
    %v37 = vld [vmem:[%s0 + $0xc] sm:$0xf]
    %v38 = vld [vmem:[%s0 + $0x10] sm:$0xf]
    %v39 = vld [vmem:[%s0 + $0x14] sm:$0xf]
    %v40 = vld [vmem:[%s0 + $0x18] sm:$0xf]
    %v41 = vld [vmem:[%s0 + $0x1c] sm:$0xf]
    %v42 = vld [vmem:[%s0 + $0x20] sm:$0xf]
    %v43 = vld [vmem:[%s0 + $0x24] sm:$0xf]
    %v44 = vld [vmem:[%s0 + $0x28] sm:$0xf]
    %v45 = vld [vmem:[%s0 + $0x2c] sm:$0xf]
    %v46 = vld [vmem:[%s0 + $0x30] sm:$0xf]
    %v47 = vld [vmem:[%s0 + $0x34] sm:$0xf]
    %v48 = vld [vmem:[%s0 + $0x38] sm:$0xf]
    %v49 = vld [vmem:[%s0 + $0x3c] sm:$0xf]
    %v50 = vld [vmem:[%s0 + $0x40] sm:$0xf]
    %v51 = vld [vmem:[%s0 + $0x44] sm:$0xf]
    %v52 = vld [vmem:[%s0 + $0x48] sm:$0xf]
    %v53 = vld [vmem:[%s0 + $0x4c] sm:$0xf]
    %v54 = vld [vmem:[%s0 + $0x50] sm:$0xf]
    %v55 = vld [vmem:[%s0 + $0x54] sm:$0xf]
    %v56 = vld [vmem:[%s0 + $0x58] sm:$0xf]
    %v57 = vld [vmem:[%s0 + $0x5c] sm:$0xf]
    %v58 = vld [vmem:[%s0 + $0x60] sm:$0xf]
    %v59 = vld [vmem:[%s0 + $0x64] sm:$0xf]
    %v60 = vld [vmem:[%s0 + $0x68] sm:$0xf]
    %v61 = vld [vmem:[%s0 + $0x6c] sm:$0xf]
    %v62 = vld [vmem:[%s0 + $0x70] sm:$0xf]
    %v63 = vld [vmem:[%s0 + $0x74] sm:$0xf]
    %v64 = vld [vmem:[%s0 + $0x78] sm:$0xf]
    %v65 = vld [vmem:[%s0 + $0x7c] sm:$0xf]
    %v66 = vld [vmem:[%s2] sm:$0xff]
    %v67 = vld [vmem:[%s2 + $0x8] sm:$0xff]
    %v68 = vld [vmem:[%s2 + $0x10] sm:$0xff]
    %v69 = vld [vmem:[%s2 + $0x18] sm:$0xff]
    %v70 = vld [vmem:[%s2 + $0x20] sm:$0xff]
    %v71 = vld [vmem:[%s2 + $0x28] sm:$0xff]
    %v72 = vld [vmem:[%s2 + $0x30] sm:$0xff]
    %v73 = vld [vmem:[%s2 + $0x38] sm:$0xff]
    %v74 = vld [vmem:[%s3] sm:$0x3]
    %v76 = vlaneseq
    %v77 = vshrl.u32 %v76, 7
    %v78 = vsub.s32 0, %v77
    %v79 = vrot.slane %v74, %v78
    %v80 = vlaneseq
    %v81 = vshrl.u32 %v80, 7
    %v82 = vsub.s32 1, %v81
    %v83 = vrot.slane %v74, %v82
    %v118 = vunpack.c.l.b16 %v34
    %v119 = vunpack.c.l.b16 %v35
    %v120 = vunpack.c.l.b16 %v36
    %v121 = vunpack.c.l.b16 %v37
    %v122 = vunpack.c.l.b16 %v38
    %v123 = vunpack.c.l.b16 %v39
    %v124 = vunpack.c.l.b16 %v40
    %v125 = vunpack.c.l.b16 %v41
    %v126 = vunpack.c.l.b16 %v42
    %v127 = vunpack.c.l.b16 %v43
    %v128 = vunpack.c.l.b16 %v44
    %v129 = vunpack.c.l.b16 %v45
    %v130 = vunpack.c.l.b16 %v46
    %v131 = vunpack.c.l.b16 %v47
    %v132 = vunpack.c.l.b16 %v48
    %v133 = vunpack.c.l.b16 %v49
    %v134 = vunpack.c.l.b16 %v50
    %v135 = vunpack.c.l.b16 %v51
    %v136 = vunpack.c.l.b16 %v52
    %v137 = vunpack.c.l.b16 %v53
    %v138 = vunpack.c.l.b16 %v54
    %v139 = vunpack.c.l.b16 %v55
    %v140 = vunpack.c.l.b16 %v56
    %v141 = vunpack.c.l.b16 %v57
    %v142 = vunpack.c.l.b16 %v58
    %v143 = vunpack.c.l.b16 %v59
    %v144 = vunpack.c.l.b16 %v60
    %v145 = vunpack.c.l.b16 %v61
    %v146 = vunpack.c.l.b16 %v62
    %v147 = vunpack.c.l.b16 %v63
    %v148 = vunpack.c.l.b16 %v64
    %v149 = vunpack.c.l.b16 %v65
    %v150 = vpack.c.b16 %v119, %v118
    %v151 = vpack.c.b16 %v121, %v120
    %v152 = vpack.c.b16 %v123, %v122
    %v153 = vpack.c.b16 %v125, %v124
    %v154 = vpack.c.b16 %v127, %v126
    %v155 = vpack.c.b16 %v129, %v128
    %v156 = vpack.c.b16 %v131, %v130
    %v157 = vpack.c.b16 %v133, %v132
    %v158 = vpack.c.b16 %v135, %v134
    %v159 = vpack.c.b16 %v137, %v136
    %v160 = vpack.c.b16 %v139, %v138
    %v161 = vpack.c.b16 %v141, %v140
    %v162 = vpack.c.b16 %v143, %v142
    %v163 = vpack.c.b16 %v145, %v144
    %v164 = vpack.c.b16 %v147, %v146
    %v165 = vpack.c.b16 %v149, %v148
    %v174 = vunpack.c.l.b16 %v66
    %v175 = vunpack.c.h.b16 %v66
    %v176 = vunpack.c.l.b16 %v67
    %v177 = vunpack.c.h.b16 %v67
    %v178 = vunpack.c.l.b16 %v68
    %v179 = vunpack.c.h.b16 %v68
    %v180 = vunpack.c.l.b16 %v69
    %v181 = vunpack.c.h.b16 %v69
    %v182 = vunpack.c.l.b16 %v70
    %v183 = vunpack.c.h.b16 %v70
    %v184 = vunpack.c.l.b16 %v71
    %v185 = vunpack.c.h.b16 %v71
    %v186 = vunpack.c.l.b16 %v72
    %v187 = vunpack.c.h.b16 %v72
    %v188 = vunpack.c.l.b16 %v73
    %v189 = vunpack.c.h.b16 %v73
    %v190 = vpack.c.b16 %v176, %v174
    %v191 = vpack.c.b16 %v177, %v175
    %v192 = vpack.c.b16 %v180, %v178
    %v193 = vpack.c.b16 %v181, %v179
    %v194 = vpack.c.b16 %v184, %v182
    %v195 = vpack.c.b16 %v185, %v183
    %v196 = vpack.c.b16 %v188, %v186
    %v197 = vpack.c.b16 %v189, %v187
    %vm206 = vcmask 523264
    %v208 = vsel %vm206, %v150, 0
    %v211 = vsel %vm206, %v151, 0
    %v214 = vsel %vm206, %v152, 0
    %v217 = vsel %vm206, %v153, 0
    %v220 = vsel %vm206, %v154, 0
    %v223 = vsel %vm206, %v155, 0
    %v226 = vsel %vm206, %v156, 0
    %v229 = vsel %vm206, %v157, 0
    %v232 = vsel %vm206, %v158, 0
    %v235 = vsel %vm206, %v159, 0
    %v238 = vsel %vm206, %v160, 0
    %v241 = vsel %vm206, %v161, 0
    %v244 = vsel %vm206, %v162, 0
    %v247 = vsel %vm206, %v163, 0
    %v250 = vsel %vm206, %v164, 0
    %v253 = vsel %vm206, %v165, 0
    %255 = vmatprep.subr.bf16.mxu0 %v191
    %256 = vmatpush1.bf16.msra.mxu0 %v190
    %257 = vmatprep.subr.bf16.mxu0 %v193
    %258 = vmatpush1.bf16.msra.mxu0 %v192
    %259 = vmatprep.subr.bf16.mxu0 %v195
    %260 = vmatpush1.bf16.msra.mxu0 %v194
    %261 = vmatprep.subr.bf16.mxu0 %v197
    %262 = vmatpush1.bf16.msra.mxu0 %v196
    %263 = vmatprep.subr.bf16.mxu0 0
    %264 = vmatpush1.bf16.msra.mxu0 0
    %265 = vmatprep.subr.bf16.mxu0 0
    %266 = vmatpush1.bf16.msra.mxu0 0
    %267 = vmatprep.subr.bf16.mxu0 0
    %268 = vmatpush1.bf16.msra.mxu0 0
    %269 = vmatprep.subr.bf16.mxu0 0
    %270 = vmatpush1.bf16.msra.mxu0 0
    %271 = vmatprep.subr.bf16.mxu0 0
    %272 = vmatpush1.bf16.msra.mxu0 0
    %273 = vmatprep.subr.bf16.mxu0 0
    %274 = vmatpush1.bf16.msra.mxu0 0
    %275 = vmatprep.subr.bf16.mxu0 0
    %276 = vmatpush1.bf16.msra.mxu0 0
    %277 = vmatprep.subr.bf16.mxu0 0
    %278 = vmatpush1.bf16.msra.mxu0 0
    %279 = vmatprep.subr.bf16.mxu0 0
    %280 = vmatpush1.bf16.msra.mxu0 0
    %281 = vmatprep.subr.bf16.mxu0 0
    %282 = vmatpush1.bf16.msra.mxu0 0
    %283 = vmatprep.subr.bf16.mxu0 0
    %284 = vmatpush1.bf16.msra.mxu0 0
    %285 = vmatprep.subr.bf16.mxu0 0
    %286 = vmatpush1.bf16.msra.mxu0 0
    %287 = vmatprep.mubr.bf16.mxu0 0
    %288 = vmatmul.mubr.bf16.gmra.mrb[0].mxu0 %v208
    %v289 = vpop.f32.mrb[0].mxu0
    %v290 = vadd.f32 %v79, %v289
    %v291 = vpop.f32.mrb[0].mxu0
    %v292 = vadd.f32 %v83, %v291
    %v293 = vpop.f32.mrb[0].mxu0
    %v294 = vadd.f32 %v79, %v293
    %v295 = vpop.f32.mrb[0].mxu0
    %v296 = vadd.f32 %v83, %v295
    %297 = vmatprep.mubr.bf16.mxu0 0
    %298 = vmatmul.mubr.bf16.gmra.mrb[0].mxu0 %v211
    %v299 = vpop.f32.mrb[0].mxu0
    %v300 = vadd.f32 %v79, %v299
    %v301 = vpop.f32.mrb[0].mxu0
    %v302 = vadd.f32 %v83, %v301
    %v303 = vpop.f32.mrb[0].mxu0
    %v304 = vadd.f32 %v79, %v303
    %v305 = vpop.f32.mrb[0].mxu0
    %v306 = vadd.f32 %v83, %v305
    %307 = vmatprep.mubr.bf16.mxu0 0
    %308 = vmatmul.mubr.bf16.gmra.mrb[0].mxu0 %v214
    %v309 = vpop.f32.mrb[0].mxu0
    %v310 = vadd.f32 %v79, %v309
    %v311 = vpop.f32.mrb[0].mxu0
    %v312 = vadd.f32 %v83, %v311
    %v313 = vpop.f32.mrb[0].mxu0
    %v314 = vadd.f32 %v79, %v313
    %v315 = vpop.f32.mrb[0].mxu0
    %v316 = vadd.f32 %v83, %v315
    %317 = vmatprep.mubr.bf16.mxu0 0
    %318 = vmatmul.mubr.bf16.gmra.mrb[0].mxu0 %v217
    %v319 = vpop.f32.mrb[0].mxu0
    %v320 = vadd.f32 %v79, %v319
    %v321 = vpop.f32.mrb[0].mxu0
    %v322 = vadd.f32 %v83, %v321
    %v323 = vpop.f32.mrb[0].mxu0
    %v324 = vadd.f32 %v79, %v323
    %v325 = vpop.f32.mrb[0].mxu0
    %v326 = vadd.f32 %v83, %v325
    %327 = vmatprep.mubr.bf16.mxu0 0
    %328 = vmatmul.mubr.bf16.gmra.mrb[0].mxu0 %v220
    %v329 = vpop.f32.mrb[0].mxu0
    %v330 = vadd.f32 %v79, %v329
    %v331 = vpop.f32.mrb[0].mxu0
    %v332 = vadd.f32 %v83, %v331
    %v333 = vpop.f32.mrb[0].mxu0
    %v334 = vadd.f32 %v79, %v333
    %v335 = vpop.f32.mrb[0].mxu0
    %v336 = vadd.f32 %v83, %v335
    %337 = vmatprep.mubr.bf16.mxu0 0
    %338 = vmatmul.mubr.bf16.gmra.mrb[0].mxu0 %v223
    %v339 = vpop.f32.mrb[0].mxu0
    %v340 = vadd.f32 %v79, %v339
    %v341 = vpop.f32.mrb[0].mxu0
    %v342 = vadd.f32 %v83, %v341
    %v343 = vpop.f32.mrb[0].mxu0
    %v344 = vadd.f32 %v79, %v343
    %v345 = vpop.f32.mrb[0].mxu0
    %v346 = vadd.f32 %v83, %v345
    %347 = vmatprep.mubr.bf16.mxu0 0
    %348 = vmatmul.mubr.bf16.gmra.mrb[0].mxu0 %v226
    %v349 = vpop.f32.mrb[0].mxu0
    %v350 = vadd.f32 %v79, %v349
    %v351 = vpop.f32.mrb[0].mxu0
    %v352 = vadd.f32 %v83, %v351
    %v353 = vpop.f32.mrb[0].mxu0
    %v354 = vadd.f32 %v79, %v353
    %v355 = vpop.f32.mrb[0].mxu0
    %v356 = vadd.f32 %v83, %v355
    %357 = vmatprep.mubr.bf16.mxu0 0
    %358 = vmatmul.mubr.bf16.gmra.mrb[0].mxu0 %v229
    %v359 = vpop.f32.mrb[0].mxu0
    %v360 = vadd.f32 %v79, %v359
    %v361 = vpop.f32.mrb[0].mxu0
    %v362 = vadd.f32 %v83, %v361
    %v363 = vpop.f32.mrb[0].mxu0
    %v364 = vadd.f32 %v79, %v363
    %v365 = vpop.f32.mrb[0].mxu0
    %v366 = vadd.f32 %v83, %v365
    %367 = vmatprep.mubr.bf16.mxu0 0
    %368 = vmatmul.mubr.bf16.gmra.mrb[0].mxu0 %v232
    %v369 = vpop.f32.mrb[0].mxu0
    %v370 = vadd.f32 %v79, %v369
    %v371 = vpop.f32.mrb[0].mxu0
    %v372 = vadd.f32 %v83, %v371
    %v373 = vpop.f32.mrb[0].mxu0
    %v374 = vadd.f32 %v79, %v373
    %v375 = vpop.f32.mrb[0].mxu0
    %v376 = vadd.f32 %v83, %v375
    %377 = vmatprep.mubr.bf16.mxu0 0
    %378 = vmatmul.mubr.bf16.gmra.mrb[0].mxu0 %v235
    %v379 = vpop.f32.mrb[0].mxu0
    %v380 = vadd.f32 %v79, %v379
    %v381 = vpop.f32.mrb[0].mxu0
    %v382 = vadd.f32 %v83, %v381
    %v383 = vpop.f32.mrb[0].mxu0
    %v384 = vadd.f32 %v79, %v383
    %v385 = vpop.f32.mrb[0].mxu0
    %v386 = vadd.f32 %v83, %v385
    %387 = vmatprep.mubr.bf16.mxu0 0
    %388 = vmatmul.mubr.bf16.gmra.mrb[0].mxu0 %v238
    %v389 = vpop.f32.mrb[0].mxu0
    %v390 = vadd.f32 %v79, %v389
    %v391 = vpop.f32.mrb[0].mxu0
    %v392 = vadd.f32 %v83, %v391
    %v393 = vpop.f32.mrb[0].mxu0
    %v394 = vadd.f32 %v79, %v393
    %v395 = vpop.f32.mrb[0].mxu0
    %v396 = vadd.f32 %v83, %v395
    %397 = vmatprep.mubr.bf16.mxu0 0
    %398 = vmatmul.mubr.bf16.gmra.mrb[0].mxu0 %v241
    %v399 = vpop.f32.mrb[0].mxu0
    %v400 = vadd.f32 %v79, %v399
    %v401 = vpop.f32.mrb[0].mxu0
    %v402 = vadd.f32 %v83, %v401
    %v403 = vpop.f32.mrb[0].mxu0
    %v404 = vadd.f32 %v79, %v403
    %v405 = vpop.f32.mrb[0].mxu0
    %v406 = vadd.f32 %v83, %v405
    %407 = vmatprep.mubr.bf16.mxu0 0
    %408 = vmatmul.mubr.bf16.gmra.mrb[0].mxu0 %v244
    %v409 = vpop.f32.mrb[0].mxu0
    %v410 = vadd.f32 %v79, %v409
    %v411 = vpop.f32.mrb[0].mxu0
    %v412 = vadd.f32 %v83, %v411
    %v413 = vpop.f32.mrb[0].mxu0
    %v414 = vadd.f32 %v79, %v413
    %v415 = vpop.f32.mrb[0].mxu0
    %v416 = vadd.f32 %v83, %v415
    %417 = vmatprep.mubr.bf16.mxu0 0
    %418 = vmatmul.mubr.bf16.gmra.mrb[0].mxu0 %v247
    %v419 = vpop.f32.mrb[0].mxu0
    %v420 = vadd.f32 %v79, %v419
    %v421 = vpop.f32.mrb[0].mxu0
    %v422 = vadd.f32 %v83, %v421
    %v423 = vpop.f32.mrb[0].mxu0
    %v424 = vadd.f32 %v79, %v423
    %v425 = vpop.f32.mrb[0].mxu0
    %v426 = vadd.f32 %v83, %v425
    %427 = vmatprep.mubr.bf16.mxu0 0
    %428 = vmatmul.mubr.bf16.gmra.mrb[0].mxu0 %v250
    %v429 = vpop.f32.mrb[0].mxu0
    %v430 = vadd.f32 %v79, %v429
    %v431 = vpop.f32.mrb[0].mxu0
    %v432 = vadd.f32 %v83, %v431
    %v433 = vpop.f32.mrb[0].mxu0
    %v434 = vadd.f32 %v79, %v433
    %v435 = vpop.f32.mrb[0].mxu0
    %v436 = vadd.f32 %v83, %v435
    %437 = vmatprep.mubr.bf16.mxu0 0
    %438 = vmatmul.mubr.bf16.gmra.mrb[0].mxu0 %v253
    %v439 = vpop.f32.mrb[0].mxu0
    %v440 = vadd.f32 %v79, %v439
    %v441 = vpop.f32.mrb[0].mxu0
    %v442 = vadd.f32 %v83, %v441
    %v443 = vpop.f32.mrb[0].mxu0
    %v444 = vadd.f32 %v79, %v443
    %v445 = vpop.f32.mrb[0].mxu0
    %v446 = vadd.f32 %v83, %v445
    %447 = vdwg.mxu0
    %v448 = vmul.f32 %v290, %v290
    %v449 = vmul.f32 %v292, %v292
    %v450 = vmul.f32 %v294, %v294
    %v451 = vmul.f32 %v296, %v296
    %v452 = vmul.f32 %v300, %v300
    %v453 = vmul.f32 %v302, %v302
    %v454 = vmul.f32 %v304, %v304
    %v455 = vmul.f32 %v306, %v306
    %v456 = vmul.f32 %v310, %v310
    %v457 = vmul.f32 %v312, %v312
    %v458 = vmul.f32 %v314, %v314
    %v459 = vmul.f32 %v316, %v316
    %v460 = vmul.f32 %v320, %v320
    %v461 = vmul.f32 %v322, %v322
    %v462 = vmul.f32 %v324, %v324
    %v463 = vmul.f32 %v326, %v326
    %v464 = vmul.f32 %v330, %v330
    %v465 = vmul.f32 %v332, %v332
    %v466 = vmul.f32 %v334, %v334
    %v467 = vmul.f32 %v336, %v336
    %v468 = vmul.f32 %v340, %v340
    %v469 = vmul.f32 %v342, %v342
    %v470 = vmul.f32 %v344, %v344
    %v471 = vmul.f32 %v346, %v346
    %v472 = vmul.f32 %v350, %v350
    %v473 = vmul.f32 %v352, %v352
    %v474 = vmul.f32 %v354, %v354
    %v475 = vmul.f32 %v356, %v356
    %v476 = vmul.f32 %v360, %v360
    %v477 = vmul.f32 %v362, %v362
    %v478 = vmul.f32 %v364, %v364
    %v479 = vmul.f32 %v366, %v366
    %v480 = vmul.f32 %v370, %v370
    %v481 = vmul.f32 %v372, %v372
    %v482 = vmul.f32 %v374, %v374
    %v483 = vmul.f32 %v376, %v376
    %v484 = vmul.f32 %v380, %v380
    %v485 = vmul.f32 %v382, %v382
    %v486 = vmul.f32 %v384, %v384
    %v487 = vmul.f32 %v386, %v386
    %v488 = vmul.f32 %v390, %v390
    %v489 = vmul.f32 %v392, %v392
    %v490 = vmul.f32 %v394, %v394
    %v491 = vmul.f32 %v396, %v396
    %v492 = vmul.f32 %v400, %v400
    %v493 = vmul.f32 %v402, %v402
    %v494 = vmul.f32 %v404, %v404
    %v495 = vmul.f32 %v406, %v406
    %v496 = vmul.f32 %v410, %v410
    %v497 = vmul.f32 %v412, %v412
    %v498 = vmul.f32 %v414, %v414
    %v499 = vmul.f32 %v416, %v416
    %v500 = vmul.f32 %v420, %v420
    %v501 = vmul.f32 %v422, %v422
    %v502 = vmul.f32 %v424, %v424
    %v503 = vmul.f32 %v426, %v426
    %v504 = vmul.f32 %v430, %v430
    %v505 = vmul.f32 %v432, %v432
    %v506 = vmul.f32 %v434, %v434
    %v507 = vmul.f32 %v436, %v436
    %v508 = vmul.f32 %v440, %v440
    %v509 = vmul.f32 %v442, %v442
    %v510 = vmul.f32 %v444, %v444
    %v511 = vmul.f32 %v446, %v446
    %v512 = vadd.f32 %v448, %v449
    %513 = vadd.xlane.f32.xlu0 %v512
    %v514 = vpop.xlane.xlu0 %513
    %v515 = vadd.f32 %v450, %v451
    %516 = vadd.xlane.f32.xlu0 %v515
    %v517 = vpop.xlane.xlu0 %516
    %v518 = vadd.f32 %v452, %v453
    %519 = vadd.xlane.f32.xlu0 %v518
    %v520 = vpop.xlane.xlu0 %519
    %v521 = vadd.f32 %v454, %v455
    %522 = vadd.xlane.f32.xlu0 %v521
    %v523 = vpop.xlane.xlu0 %522
    %v524 = vadd.f32 %v456, %v457
    %525 = vadd.xlane.f32.xlu0 %v524
    %v526 = vpop.xlane.xlu0 %525
    %v527 = vadd.f32 %v458, %v459
    %528 = vadd.xlane.f32.xlu0 %v527
    %v529 = vpop.xlane.xlu0 %528
    %v530 = vadd.f32 %v460, %v461
    %531 = vadd.xlane.f32.xlu0 %v530
    %v532 = vpop.xlane.xlu0 %531
    %v533 = vadd.f32 %v462, %v463
    %534 = vadd.xlane.f32.xlu0 %v533
    %v535 = vpop.xlane.xlu0 %534
    %v536 = vadd.f32 %v464, %v465
    %537 = vadd.xlane.f32.xlu0 %v536
    %v538 = vpop.xlane.xlu0 %537
    %v539 = vadd.f32 %v466, %v467
    %540 = vadd.xlane.f32.xlu0 %v539
    %v541 = vpop.xlane.xlu0 %540
    %v542 = vadd.f32 %v468, %v469
    %543 = vadd.xlane.f32.xlu0 %v542
    %v544 = vpop.xlane.xlu0 %543
    %v545 = vadd.f32 %v470, %v471
    %546 = vadd.xlane.f32.xlu0 %v545
    %v547 = vpop.xlane.xlu0 %546
    %v548 = vadd.f32 %v472, %v473
    %549 = vadd.xlane.f32.xlu0 %v548
    %v550 = vpop.xlane.xlu0 %549
    %v551 = vadd.f32 %v474, %v475
    %552 = vadd.xlane.f32.xlu0 %v551
    %v553 = vpop.xlane.xlu0 %552
    %v554 = vadd.f32 %v476, %v477
    %555 = vadd.xlane.f32.xlu0 %v554
    %v556 = vpop.xlane.xlu0 %555
    %v557 = vadd.f32 %v478, %v479
    %558 = vadd.xlane.f32.xlu0 %v557
    %v559 = vpop.xlane.xlu0 %558
    %v560 = vadd.f32 %v480, %v481
    %561 = vadd.xlane.f32.xlu0 %v560
    %v562 = vpop.xlane.xlu0 %561
    %v563 = vadd.f32 %v482, %v483
    %564 = vadd.xlane.f32.xlu0 %v563
    %v565 = vpop.xlane.xlu0 %564
    %v566 = vadd.f32 %v484, %v485
    %567 = vadd.xlane.f32.xlu0 %v566
    %v568 = vpop.xlane.xlu0 %567
    %v569 = vadd.f32 %v486, %v487
    %570 = vadd.xlane.f32.xlu0 %v569
    %v571 = vpop.xlane.xlu0 %570
    %v572 = vadd.f32 %v488, %v489
    %573 = vadd.xlane.f32.xlu0 %v572
    %v574 = vpop.xlane.xlu0 %573
    %v575 = vadd.f32 %v490, %v491
    %576 = vadd.xlane.f32.xlu0 %v575
    %v577 = vpop.xlane.xlu0 %576
    %v578 = vadd.f32 %v492, %v493
    %579 = vadd.xlane.f32.xlu0 %v578
    %v580 = vpop.xlane.xlu0 %579
    %v581 = vadd.f32 %v494, %v495
    %582 = vadd.xlane.f32.xlu0 %v581
    %v583 = vpop.xlane.xlu0 %582
    %v584 = vadd.f32 %v496, %v497
    %585 = vadd.xlane.f32.xlu0 %v584
    %v586 = vpop.xlane.xlu0 %585
    %v587 = vadd.f32 %v498, %v499
    %588 = vadd.xlane.f32.xlu0 %v587
    %v589 = vpop.xlane.xlu0 %588
    %v590 = vadd.f32 %v500, %v501
    %591 = vadd.xlane.f32.xlu0 %v590
    %v592 = vpop.xlane.xlu0 %591
    %v593 = vadd.f32 %v502, %v503
    %594 = vadd.xlane.f32.xlu0 %v593
    %v595 = vpop.xlane.xlu0 %594
    %v596 = vadd.f32 %v504, %v505
    %597 = vadd.xlane.f32.xlu0 %v596
    %v598 = vpop.xlane.xlu0 %597
    %v599 = vadd.f32 %v506, %v507
    %600 = vadd.xlane.f32.xlu0 %v599
    %v601 = vpop.xlane.xlu0 %600
    %v602 = vadd.f32 %v508, %v509
    %603 = vadd.xlane.f32.xlu0 %v602
    %v604 = vpop.xlane.xlu0 %603
    %v605 = vadd.f32 %v510, %v511
    %606 = vadd.xlane.f32.xlu0 %v605
    %v607 = vpop.xlane.xlu0 %606
    %v608 = vadd.f32 %v514, 1e-12
    %v609 = vadd.f32 %v517, 1e-12
    %v610 = vadd.f32 %v520, 1e-12
    %v611 = vadd.f32 %v523, 1e-12
    %v612 = vadd.f32 %v526, 1e-12
    %v613 = vadd.f32 %v529, 1e-12
    %v614 = vadd.f32 %v532, 1e-12
    %v615 = vadd.f32 %v535, 1e-12
    %v616 = vadd.f32 %v538, 1e-12
    %v617 = vadd.f32 %v541, 1e-12
    %v618 = vadd.f32 %v544, 1e-12
    %v619 = vadd.f32 %v547, 1e-12
    %v620 = vadd.f32 %v550, 1e-12
    %v621 = vadd.f32 %v553, 1e-12
    %v622 = vadd.f32 %v556, 1e-12
    %v623 = vadd.f32 %v559, 1e-12
    %v624 = vadd.f32 %v562, 1e-12
    %v625 = vadd.f32 %v565, 1e-12
    %v626 = vadd.f32 %v568, 1e-12
    %v627 = vadd.f32 %v571, 1e-12
    %v628 = vadd.f32 %v574, 1e-12
    %v629 = vadd.f32 %v577, 1e-12
    %v630 = vadd.f32 %v580, 1e-12
    %v631 = vadd.f32 %v583, 1e-12
    %v632 = vadd.f32 %v586, 1e-12
    %v633 = vadd.f32 %v589, 1e-12
    %v634 = vadd.f32 %v592, 1e-12
    %v635 = vadd.f32 %v595, 1e-12
    %v636 = vadd.f32 %v598, 1e-12
    %v637 = vadd.f32 %v601, 1e-12
    %v638 = vadd.f32 %v604, 1e-12
    %v639 = vadd.f32 %v607, 1e-12
    %v640 = vrsqrt.pop %v608
    %v641 = vrsqrt.pop %v609
    %v642 = vrsqrt.pop %v610
    %v643 = vrsqrt.pop %v611
    %v644 = vrsqrt.pop %v612
    %v645 = vrsqrt.pop %v613
    %v646 = vrsqrt.pop %v614
    %v647 = vrsqrt.pop %v615
    %v648 = vrsqrt.pop %v616
    %v649 = vrsqrt.pop %v617
    %v650 = vrsqrt.pop %v618
    %v651 = vrsqrt.pop %v619
    %v652 = vrsqrt.pop %v620
    %v653 = vrsqrt.pop %v621
    %v654 = vrsqrt.pop %v622
    %v655 = vrsqrt.pop %v623
    %v656 = vrsqrt.pop %v624
    %v657 = vrsqrt.pop %v625
    %v658 = vrsqrt.pop %v626
    %v659 = vrsqrt.pop %v627
    %v660 = vrsqrt.pop %v628
    %v661 = vrsqrt.pop %v629
    %v662 = vrsqrt.pop %v630
    %v663 = vrsqrt.pop %v631
    %v664 = vrsqrt.pop %v632
    %v665 = vrsqrt.pop %v633
    %v666 = vrsqrt.pop %v634
    %v667 = vrsqrt.pop %v635
    %v668 = vrsqrt.pop %v636
    %v669 = vrsqrt.pop %v637
    %v670 = vrsqrt.pop %v638
    %v671 = vrsqrt.pop %v639
    %v672 = vmul.f32 %v290, %v640
    %v673 = vmul.f32 %v292, %v640
    %v674 = vmul.f32 %v294, %v641
    %v675 = vmul.f32 %v296, %v641
    %v676 = vmul.f32 %v300, %v642
    %v677 = vmul.f32 %v302, %v642
    %v678 = vmul.f32 %v304, %v643
    %v679 = vmul.f32 %v306, %v643
    %v680 = vmul.f32 %v310, %v644
    %v681 = vmul.f32 %v312, %v644
    %v682 = vmul.f32 %v314, %v645
    %v683 = vmul.f32 %v316, %v645
    %v684 = vmul.f32 %v320, %v646
    %v685 = vmul.f32 %v322, %v646
    %v686 = vmul.f32 %v324, %v647
    %v687 = vmul.f32 %v326, %v647
    %v688 = vmul.f32 %v330, %v648
    %v689 = vmul.f32 %v332, %v648
    %v690 = vmul.f32 %v334, %v649
    %v691 = vmul.f32 %v336, %v649
    %v692 = vmul.f32 %v340, %v650
    %v693 = vmul.f32 %v342, %v650
    %v694 = vmul.f32 %v344, %v651
    %v695 = vmul.f32 %v346, %v651
    %v696 = vmul.f32 %v350, %v652
    %v697 = vmul.f32 %v352, %v652
    %v698 = vmul.f32 %v354, %v653
    %v699 = vmul.f32 %v356, %v653
    %v700 = vmul.f32 %v360, %v654
    %v701 = vmul.f32 %v362, %v654
    %v702 = vmul.f32 %v364, %v655
    %v703 = vmul.f32 %v366, %v655
    %v704 = vmul.f32 %v370, %v656
    %v705 = vmul.f32 %v372, %v656
    %v706 = vmul.f32 %v374, %v657
    %v707 = vmul.f32 %v376, %v657
    %v708 = vmul.f32 %v380, %v658
    %v709 = vmul.f32 %v382, %v658
    %v710 = vmul.f32 %v384, %v659
    %v711 = vmul.f32 %v386, %v659
    %v712 = vmul.f32 %v390, %v660
    %v713 = vmul.f32 %v392, %v660
    %v714 = vmul.f32 %v394, %v661
    %v715 = vmul.f32 %v396, %v661
    %v716 = vmul.f32 %v400, %v662
    %v717 = vmul.f32 %v402, %v662
    %v718 = vmul.f32 %v404, %v663
    %v719 = vmul.f32 %v406, %v663
    %v720 = vmul.f32 %v410, %v664
    %v721 = vmul.f32 %v412, %v664
    %v722 = vmul.f32 %v414, %v665
    %v723 = vmul.f32 %v416, %v665
    %v724 = vmul.f32 %v420, %v666
    %v725 = vmul.f32 %v422, %v666
    %v726 = vmul.f32 %v424, %v667
    %v727 = vmul.f32 %v426, %v667
    %v728 = vmul.f32 %v430, %v668
    %v729 = vmul.f32 %v432, %v668
    %v730 = vmul.f32 %v434, %v669
    %v731 = vmul.f32 %v436, %v669
    %v732 = vmul.f32 %v440, %v670
    %v733 = vmul.f32 %v442, %v670
    %v734 = vmul.f32 %v444, %v671
    %v735 = vmul.f32 %v446, %v671
    %v736 = vld [vmem:[%s4] sm:$0xff]
    %v737 = vld [vmem:[%s4 + $0x8] sm:$0xff]
    %v738 = vld [vmem:[%s4 + $0x10] sm:$0xff]
    %v739 = vld [vmem:[%s4 + $0x18] sm:$0xff]
    %v740 = vld [vmem:[%s4 + $0x20] sm:$0xff]
    %v741 = vld [vmem:[%s4 + $0x28] sm:$0xff]
    %v742 = vld [vmem:[%s4 + $0x30] sm:$0xff]
    %v743 = vld [vmem:[%s4 + $0x38] sm:$0xff]
    %v744 = vld [vmem:[%s4 + $0x40] sm:$0xff]
    %v745 = vld [vmem:[%s4 + $0x48] sm:$0xff]
    %v746 = vld [vmem:[%s4 + $0x50] sm:$0xff]
    %v747 = vld [vmem:[%s4 + $0x58] sm:$0xff]
    %v748 = vld [vmem:[%s4 + $0x60] sm:$0xff]
    %v749 = vld [vmem:[%s4 + $0x68] sm:$0xff]
    %v750 = vld [vmem:[%s4 + $0x70] sm:$0xff]
    %v751 = vld [vmem:[%s4 + $0x78] sm:$0xff]
    %v752 = vld [vmem:[%s4 + $0x80] sm:$0xff]
    %v753 = vld [vmem:[%s4 + $0x88] sm:$0xff]
    %v754 = vld [vmem:[%s4 + $0x90] sm:$0xff]
    %v755 = vld [vmem:[%s4 + $0x98] sm:$0xff]
    %v756 = vld [vmem:[%s4 + $0xa0] sm:$0xff]
    %v757 = vld [vmem:[%s4 + $0xa8] sm:$0xff]
    %v758 = vld [vmem:[%s4 + $0xb0] sm:$0xff]
    %v759 = vld [vmem:[%s4 + $0xb8] sm:$0xff]
    %v760 = vld [vmem:[%s4 + $0xc0] sm:$0xff]
    %v761 = vld [vmem:[%s4 + $0xc8] sm:$0xff]
    %v762 = vld [vmem:[%s4 + $0xd0] sm:$0xff]
    %v763 = vld [vmem:[%s4 + $0xd8] sm:$0xff]
    %v764 = vld [vmem:[%s4 + $0xe0] sm:$0xff]
    %v765 = vld [vmem:[%s4 + $0xe8] sm:$0xff]
    %v766 = vld [vmem:[%s4 + $0xf0] sm:$0xff]
    %v767 = vld [vmem:[%s4 + $0xf8] sm:$0xff]
    %768 = vmatprep.subr.mxu0 0.0
    %769 = vmatpush1.msra.mxu0 %v736
    %770 = vmatprep.subr.mxu0 0.0
    %771 = vmatpush1.msra.mxu0 %v737
    %772 = vmatprep.subr.mxu0 0.0
    %773 = vmatpush1.msra.mxu0 %v738
    %774 = vmatprep.subr.mxu0 0.0
    %775 = vmatpush1.msra.mxu0 %v739
    %776 = vmatprep.subr.mxu0 0.0
    %777 = vmatpush1.msra.mxu0 %v740
    %778 = vmatprep.subr.mxu0 0.0
    %779 = vmatpush1.msra.mxu0 %v741
    %780 = vmatprep.subr.mxu0 0.0
    %781 = vmatpush1.msra.mxu0 %v742
    %782 = vmatprep.subr.mxu0 0.0
    %783 = vmatpush1.msra.mxu0 %v743
    %784 = vmatprep.subr.mxu0 0.0
    %785 = vmatpush1.msra.mxu0 %v744
    %786 = vmatprep.subr.mxu0 0.0
    %787 = vmatpush1.msra.mxu0 %v745
    %788 = vmatprep.subr.mxu0 0.0
    %789 = vmatpush1.msra.mxu0 %v746
    %790 = vmatprep.subr.mxu0 0.0
    %791 = vmatpush1.msra.mxu0 %v747
    %792 = vmatprep.subr.mxu0 0.0
    %793 = vmatpush1.msra.mxu0 %v748
    %794 = vmatprep.subr.mxu0 0.0
    %795 = vmatpush1.msra.mxu0 %v749
    %796 = vmatprep.subr.mxu0 0.0
    %797 = vmatpush1.msra.mxu0 %v750
    %798 = vmatprep.subr.mxu0 0.0
    %799 = vmatpush1.msra.mxu0 %v751
    %800 = vmatprep.subr.mxu0 0.0
    %801 = vmatpush1.msra.mxu0 %v752
    %802 = vmatprep.subr.mxu0 0.0
    %803 = vmatpush1.msra.mxu0 %v753
    %804 = vmatprep.subr.mxu0 0.0
    %805 = vmatpush1.msra.mxu0 %v754
    %806 = vmatprep.subr.mxu0 0.0
    %807 = vmatpush1.msra.mxu0 %v755
    %808 = vmatprep.subr.mxu0 0.0
    %809 = vmatpush1.msra.mxu0 %v756
    %810 = vmatprep.subr.mxu0 0.0
    %811 = vmatpush1.msra.mxu0 %v757
    %812 = vmatprep.subr.mxu0 0.0
    %813 = vmatpush1.msra.mxu0 %v758
    %814 = vmatprep.subr.mxu0 0.0
    %815 = vmatpush1.msra.mxu0 %v759
    %816 = vmatprep.subr.mxu0 0.0
    %817 = vmatpush1.msra.mxu0 %v760
    %818 = vmatprep.subr.mxu0 0.0
    %819 = vmatpush1.msra.mxu0 %v761
    %820 = vmatprep.subr.mxu0 0.0
    %821 = vmatpush1.msra.mxu0 %v762
    %822 = vmatprep.subr.mxu0 0.0
    %823 = vmatpush1.msra.mxu0 %v763
    %824 = vmatprep.subr.mxu0 0.0
    %825 = vmatpush1.msra.mxu0 %v764
    %826 = vmatprep.subr.mxu0 0.0
    %827 = vmatpush1.msra.mxu0 %v765
    %828 = vmatprep.subr.mxu0 0.0
    %829 = vmatpush1.msra.mxu0 %v766
    %830 = vmatprep.subr.mxu0 0.0
    %831 = vmatpush1.msra.mxu0 %v767
    %832 = vmatprep.mubr.f32.mxu0 %v673
    %833 = vmatmul.mubr.f32.gmra.mrb[0].mxu0 %v672
    %v834 = vpop.f32.mrb[0].mxu0
    %v835 = vadd.f32 0.0, %v834
    %v836 = vpop.f32.mrb[0].mxu0
    %837 = vmatprep.mubr.f32.mxu0 %v675
    %838 = vmatmul.mubr.f32.gmra.mrb[0].mxu0 %v674
    %v839 = vpop.f32.mrb[0].mxu0
    %v840 = vadd.f32 0.0, %v839
    %v841 = vpop.f32.mrb[0].mxu0
    %842 = vmatprep.mubr.f32.mxu0 %v677
    %843 = vmatmul.mubr.f32.gmra.mrb[0].mxu0 %v676
    %v844 = vpop.f32.mrb[0].mxu0
    %v845 = vadd.f32 0.0, %v844
    %v846 = vpop.f32.mrb[0].mxu0
    %847 = vmatprep.mubr.f32.mxu0 %v679
    %848 = vmatmul.mubr.f32.gmra.mrb[0].mxu0 %v678
    %v849 = vpop.f32.mrb[0].mxu0
    %v850 = vadd.f32 0.0, %v849
    %v851 = vpop.f32.mrb[0].mxu0
    %852 = vmatprep.mubr.f32.mxu0 %v681
    %853 = vmatmul.mubr.f32.gmra.mrb[0].mxu0 %v680
    %v854 = vpop.f32.mrb[0].mxu0
    %v855 = vadd.f32 0.0, %v854
    %v856 = vpop.f32.mrb[0].mxu0
    %857 = vmatprep.mubr.f32.mxu0 %v683
    %858 = vmatmul.mubr.f32.gmra.mrb[0].mxu0 %v682
    %v859 = vpop.f32.mrb[0].mxu0
    %v860 = vadd.f32 0.0, %v859
    %v861 = vpop.f32.mrb[0].mxu0
    %862 = vmatprep.mubr.f32.mxu0 %v685
    %863 = vmatmul.mubr.f32.gmra.mrb[0].mxu0 %v684
    %v864 = vpop.f32.mrb[0].mxu0
    %v865 = vadd.f32 0.0, %v864
    %v866 = vpop.f32.mrb[0].mxu0
    %867 = vmatprep.mubr.f32.mxu0 %v687
    %868 = vmatmul.mubr.f32.gmra.mrb[0].mxu0 %v686
    %v869 = vpop.f32.mrb[0].mxu0
    %v870 = vadd.f32 0.0, %v869
    %v871 = vpop.f32.mrb[0].mxu0
    %872 = vmatprep.mubr.f32.mxu0 %v689
    %873 = vmatmul.mubr.f32.gmra.mrb[0].mxu0 %v688
    %v874 = vpop.f32.mrb[0].mxu0
    %v875 = vadd.f32 0.0, %v874
    %v876 = vpop.f32.mrb[0].mxu0
    %877 = vmatprep.mubr.f32.mxu0 %v691
    %878 = vmatmul.mubr.f32.gmra.mrb[0].mxu0 %v690
    %v879 = vpop.f32.mrb[0].mxu0
    %v880 = vadd.f32 0.0, %v879
    %v881 = vpop.f32.mrb[0].mxu0
    %882 = vmatprep.mubr.f32.mxu0 %v693
    %883 = vmatmul.mubr.f32.gmra.mrb[0].mxu0 %v692
    %v884 = vpop.f32.mrb[0].mxu0
    %v885 = vadd.f32 0.0, %v884
    %v886 = vpop.f32.mrb[0].mxu0
    %887 = vmatprep.mubr.f32.mxu0 %v695
    %888 = vmatmul.mubr.f32.gmra.mrb[0].mxu0 %v694
    %v889 = vpop.f32.mrb[0].mxu0
    %v890 = vadd.f32 0.0, %v889
    %v891 = vpop.f32.mrb[0].mxu0
    %892 = vmatprep.mubr.f32.mxu0 %v697
    %893 = vmatmul.mubr.f32.gmra.mrb[0].mxu0 %v696
    %v894 = vpop.f32.mrb[0].mxu0
    %v895 = vadd.f32 0.0, %v894
    %v896 = vpop.f32.mrb[0].mxu0
    %897 = vmatprep.mubr.f32.mxu0 %v699
    %898 = vmatmul.mubr.f32.gmra.mrb[0].mxu0 %v698
    %v899 = vpop.f32.mrb[0].mxu0
    %v900 = vadd.f32 0.0, %v899
    %v901 = vpop.f32.mrb[0].mxu0
    %902 = vmatprep.mubr.f32.mxu0 %v701
    %903 = vmatmul.mubr.f32.gmra.mrb[0].mxu0 %v700
    %v904 = vpop.f32.mrb[0].mxu0
    %v905 = vadd.f32 0.0, %v904
    %v906 = vpop.f32.mrb[0].mxu0
    %907 = vmatprep.mubr.f32.mxu0 %v703
    %908 = vmatmul.mubr.f32.gmra.mrb[0].mxu0 %v702
    %v909 = vpop.f32.mrb[0].mxu0
    %v910 = vadd.f32 0.0, %v909
    %v911 = vpop.f32.mrb[0].mxu0
    %912 = vmatprep.mubr.f32.mxu0 %v705
    %913 = vmatmul.mubr.f32.gmra.mrb[0].mxu0 %v704
    %v914 = vpop.f32.mrb[0].mxu0
    %v915 = vadd.f32 0.0, %v914
    %v916 = vpop.f32.mrb[0].mxu0
    %917 = vmatprep.mubr.f32.mxu0 %v707
    %918 = vmatmul.mubr.f32.gmra.mrb[0].mxu0 %v706
    %v919 = vpop.f32.mrb[0].mxu0
    %v920 = vadd.f32 0.0, %v919
    %v921 = vpop.f32.mrb[0].mxu0
    %922 = vmatprep.mubr.f32.mxu0 %v709
    %923 = vmatmul.mubr.f32.gmra.mrb[0].mxu0 %v708
    %v924 = vpop.f32.mrb[0].mxu0
    %v925 = vadd.f32 0.0, %v924
    %v926 = vpop.f32.mrb[0].mxu0
    %927 = vmatprep.mubr.f32.mxu0 %v711
    %928 = vmatmul.mubr.f32.gmra.mrb[0].mxu0 %v710
    %v929 = vpop.f32.mrb[0].mxu0
    %v930 = vadd.f32 0.0, %v929
    %v931 = vpop.f32.mrb[0].mxu0
    %932 = vmatprep.mubr.f32.mxu0 %v713
    %933 = vmatmul.mubr.f32.gmra.mrb[0].mxu0 %v712
    %v934 = vpop.f32.mrb[0].mxu0
    %v935 = vadd.f32 0.0, %v934
    %v936 = vpop.f32.mrb[0].mxu0
    %937 = vmatprep.mubr.f32.mxu0 %v715
    %938 = vmatmul.mubr.f32.gmra.mrb[0].mxu0 %v714
    %v939 = vpop.f32.mrb[0].mxu0
    %v940 = vadd.f32 0.0, %v939
    %v941 = vpop.f32.mrb[0].mxu0
    %942 = vmatprep.mubr.f32.mxu0 %v717
    %943 = vmatmul.mubr.f32.gmra.mrb[0].mxu0 %v716
    %v944 = vpop.f32.mrb[0].mxu0
    %v945 = vadd.f32 0.0, %v944
    %v946 = vpop.f32.mrb[0].mxu0
    %947 = vmatprep.mubr.f32.mxu0 %v719
    %948 = vmatmul.mubr.f32.gmra.mrb[0].mxu0 %v718
    %v949 = vpop.f32.mrb[0].mxu0
    %v950 = vadd.f32 0.0, %v949
    %v951 = vpop.f32.mrb[0].mxu0
    %952 = vmatprep.mubr.f32.mxu0 %v721
    %953 = vmatmul.mubr.f32.gmra.mrb[0].mxu0 %v720
    %v954 = vpop.f32.mrb[0].mxu0
    %v955 = vadd.f32 0.0, %v954
    %v956 = vpop.f32.mrb[0].mxu0
    %957 = vmatprep.mubr.f32.mxu0 %v723
    %958 = vmatmul.mubr.f32.gmra.mrb[0].mxu0 %v722
    %v959 = vpop.f32.mrb[0].mxu0
    %v960 = vadd.f32 0.0, %v959
    %v961 = vpop.f32.mrb[0].mxu0
    %962 = vmatprep.mubr.f32.mxu0 %v725
    %963 = vmatmul.mubr.f32.gmra.mrb[0].mxu0 %v724
    %v964 = vpop.f32.mrb[0].mxu0
    %v965 = vadd.f32 0.0, %v964
    %v966 = vpop.f32.mrb[0].mxu0
    %967 = vmatprep.mubr.f32.mxu0 %v727
    %968 = vmatmul.mubr.f32.gmra.mrb[0].mxu0 %v726
    %v969 = vpop.f32.mrb[0].mxu0
    %v970 = vadd.f32 0.0, %v969
    %v971 = vpop.f32.mrb[0].mxu0
    %972 = vmatprep.mubr.f32.mxu0 %v729
    %973 = vmatmul.mubr.f32.gmra.mrb[0].mxu0 %v728
    %v974 = vpop.f32.mrb[0].mxu0
    %v975 = vadd.f32 0.0, %v974
    %v976 = vpop.f32.mrb[0].mxu0
    %977 = vmatprep.mubr.f32.mxu0 %v731
    %978 = vmatmul.mubr.f32.gmra.mrb[0].mxu0 %v730
    %v979 = vpop.f32.mrb[0].mxu0
    %v980 = vadd.f32 0.0, %v979
    %v981 = vpop.f32.mrb[0].mxu0
    %982 = vmatprep.mubr.f32.mxu0 %v733
    %983 = vmatmul.mubr.f32.gmra.mrb[0].mxu0 %v732
    %v984 = vpop.f32.mrb[0].mxu0
    %v985 = vadd.f32 0.0, %v984
    %v986 = vpop.f32.mrb[0].mxu0
    %987 = vmatprep.mubr.f32.mxu0 %v735
    %988 = vmatmul.mubr.f32.gmra.mrb[0].mxu0 %v734
    %v989 = vpop.f32.mrb[0].mxu0
    %v990 = vadd.f32 0.0, %v989
    %v991 = vpop.f32.mrb[0].mxu0
    %992 = vdwg.mxu0
    %vm993 = vcmask 31744
    %v994 = vsel %vm993, %v835, -inf
    %995 = vmax.xlane.f32.xlu0 %v994
    %v996 = vpop.xlane.xlu0 %995
    %v997 = vsel %vm993, %v840, -inf
    %998 = vmax.xlane.f32.xlu0 %v997
    %v999 = vpop.xlane.xlu0 %998
    %v1000 = vsel %vm993, %v845, -inf
    %1001 = vmax.xlane.f32.xlu0 %v1000
    %v1002 = vpop.xlane.xlu0 %1001
    %v1003 = vsel %vm993, %v850, -inf
    %1004 = vmax.xlane.f32.xlu0 %v1003
    %v1005 = vpop.xlane.xlu0 %1004
    %v1006 = vsel %vm993, %v855, -inf
    %1007 = vmax.xlane.f32.xlu0 %v1006
    %v1008 = vpop.xlane.xlu0 %1007
    %v1009 = vsel %vm993, %v860, -inf
    %1010 = vmax.xlane.f32.xlu0 %v1009
    %v1011 = vpop.xlane.xlu0 %1010
    %v1012 = vsel %vm993, %v865, -inf
    %1013 = vmax.xlane.f32.xlu0 %v1012
    %v1014 = vpop.xlane.xlu0 %1013
    %v1015 = vsel %vm993, %v870, -inf
    %1016 = vmax.xlane.f32.xlu0 %v1015
    %v1017 = vpop.xlane.xlu0 %1016
    %v1018 = vsel %vm993, %v875, -inf
    %1019 = vmax.xlane.f32.xlu0 %v1018
    %v1020 = vpop.xlane.xlu0 %1019
    %v1021 = vsel %vm993, %v880, -inf
    %1022 = vmax.xlane.f32.xlu0 %v1021
    %v1023 = vpop.xlane.xlu0 %1022
    %v1024 = vsel %vm993, %v885, -inf
    %1025 = vmax.xlane.f32.xlu0 %v1024
    %v1026 = vpop.xlane.xlu0 %1025
    %v1027 = vsel %vm993, %v890, -inf
    %1028 = vmax.xlane.f32.xlu0 %v1027
    %v1029 = vpop.xlane.xlu0 %1028
    %v1030 = vsel %vm993, %v895, -inf
    %1031 = vmax.xlane.f32.xlu0 %v1030
    %v1032 = vpop.xlane.xlu0 %1031
    %v1033 = vsel %vm993, %v900, -inf
    %1034 = vmax.xlane.f32.xlu0 %v1033
    %v1035 = vpop.xlane.xlu0 %1034
    %v1036 = vsel %vm993, %v905, -inf
    %1037 = vmax.xlane.f32.xlu0 %v1036
    %v1038 = vpop.xlane.xlu0 %1037
    %v1039 = vsel %vm993, %v910, -inf
    %1040 = vmax.xlane.f32.xlu0 %v1039
    %v1041 = vpop.xlane.xlu0 %1040
    %v1042 = vsel %vm993, %v915, -inf
    %1043 = vmax.xlane.f32.xlu0 %v1042
    %v1044 = vpop.xlane.xlu0 %1043
    %v1045 = vsel %vm993, %v920, -inf
    %1046 = vmax.xlane.f32.xlu0 %v1045
    %v1047 = vpop.xlane.xlu0 %1046
    %v1048 = vsel %vm993, %v925, -inf
    %1049 = vmax.xlane.f32.xlu0 %v1048
    %v1050 = vpop.xlane.xlu0 %1049
    %v1051 = vsel %vm993, %v930, -inf
    %1052 = vmax.xlane.f32.xlu0 %v1051
    %v1053 = vpop.xlane.xlu0 %1052
    %v1054 = vsel %vm993, %v935, -inf
    %1055 = vmax.xlane.f32.xlu0 %v1054
    %v1056 = vpop.xlane.xlu0 %1055
    %v1057 = vsel %vm993, %v940, -inf
    %1058 = vmax.xlane.f32.xlu0 %v1057
    %v1059 = vpop.xlane.xlu0 %1058
    %v1060 = vsel %vm993, %v945, -inf
    %1061 = vmax.xlane.f32.xlu0 %v1060
    %v1062 = vpop.xlane.xlu0 %1061
    %v1063 = vsel %vm993, %v950, -inf
    %1064 = vmax.xlane.f32.xlu0 %v1063
    %v1065 = vpop.xlane.xlu0 %1064
    %v1066 = vsel %vm993, %v955, -inf
    %1067 = vmax.xlane.f32.xlu0 %v1066
    %v1068 = vpop.xlane.xlu0 %1067
    %v1069 = vsel %vm993, %v960, -inf
    %1070 = vmax.xlane.f32.xlu0 %v1069
    %v1071 = vpop.xlane.xlu0 %1070
    %v1072 = vsel %vm993, %v965, -inf
    %1073 = vmax.xlane.f32.xlu0 %v1072
    %v1074 = vpop.xlane.xlu0 %1073
    %v1075 = vsel %vm993, %v970, -inf
    %1076 = vmax.xlane.f32.xlu0 %v1075
    %v1077 = vpop.xlane.xlu0 %1076
    %v1078 = vsel %vm993, %v975, -inf
    %1079 = vmax.xlane.f32.xlu0 %v1078
    %v1080 = vpop.xlane.xlu0 %1079
    %v1081 = vsel %vm993, %v980, -inf
    %1082 = vmax.xlane.f32.xlu0 %v1081
    %v1083 = vpop.xlane.xlu0 %1082
    %v1084 = vsel %vm993, %v985, -inf
    %1085 = vmax.xlane.f32.xlu0 %v1084
    %v1086 = vpop.xlane.xlu0 %1085
    %v1087 = vsel %vm993, %v990, -inf
    %1088 = vmax.xlane.f32.xlu0 %v1087
    %v1089 = vpop.xlane.xlu0 %1088
    %v1090 = vsub.f32 %v835, %v996
    %v1091 = vsub.f32 %v840, %v999
    %v1092 = vsub.f32 %v845, %v1002
    %v1093 = vsub.f32 %v850, %v1005
    %v1094 = vsub.f32 %v855, %v1008
    %v1095 = vsub.f32 %v860, %v1011
    %v1096 = vsub.f32 %v865, %v1014
    %v1097 = vsub.f32 %v870, %v1017
    %v1098 = vsub.f32 %v875, %v1020
    %v1099 = vsub.f32 %v880, %v1023
    %v1100 = vsub.f32 %v885, %v1026
    %v1101 = vsub.f32 %v890, %v1029
    %v1102 = vsub.f32 %v895, %v1032
    %v1103 = vsub.f32 %v900, %v1035
    %v1104 = vsub.f32 %v905, %v1038
    %v1105 = vsub.f32 %v910, %v1041
    %v1106 = vsub.f32 %v915, %v1044
    %v1107 = vsub.f32 %v920, %v1047
    %v1108 = vsub.f32 %v925, %v1050
    %v1109 = vsub.f32 %v930, %v1053
    %v1110 = vsub.f32 %v935, %v1056
    %v1111 = vsub.f32 %v940, %v1059
    %v1112 = vsub.f32 %v945, %v1062
    %v1113 = vsub.f32 %v950, %v1065
    %v1114 = vsub.f32 %v955, %v1068
    %v1115 = vsub.f32 %v960, %v1071
    %v1116 = vsub.f32 %v965, %v1074
    %v1117 = vsub.f32 %v970, %v1077
    %v1118 = vsub.f32 %v975, %v1080
    %v1119 = vsub.f32 %v980, %v1083
    %v1120 = vsub.f32 %v985, %v1086
    %v1121 = vsub.f32 %v990, %v1089
    %v1122 = vmul.f32 %v1090, 1.442695
    %v1123 = vpow.pop %v1122
    %v1124 = vmul.f32 %v1091, 1.442695
    %v1125 = vpow.pop %v1124
    %v1126 = vmul.f32 %v1092, 1.442695
    %v1127 = vpow.pop %v1126
    %v1128 = vmul.f32 %v1093, 1.442695
    %v1129 = vpow.pop %v1128
    %v1130 = vmul.f32 %v1094, 1.442695
    %v1131 = vpow.pop %v1130
    %v1132 = vmul.f32 %v1095, 1.442695
    %v1133 = vpow.pop %v1132
    %v1134 = vmul.f32 %v1096, 1.442695
    %v1135 = vpow.pop %v1134
    %v1136 = vmul.f32 %v1097, 1.442695
    %v1137 = vpow.pop %v1136
    %v1138 = vmul.f32 %v1098, 1.442695
    %v1139 = vpow.pop %v1138
    %v1140 = vmul.f32 %v1099, 1.442695
    %v1141 = vpow.pop %v1140
    %v1142 = vmul.f32 %v1100, 1.442695
    %v1143 = vpow.pop %v1142
    %v1144 = vmul.f32 %v1101, 1.442695
    %v1145 = vpow.pop %v1144
    %v1146 = vmul.f32 %v1102, 1.442695
    %v1147 = vpow.pop %v1146
    %v1148 = vmul.f32 %v1103, 1.442695
    %v1149 = vpow.pop %v1148
    %v1150 = vmul.f32 %v1104, 1.442695
    %v1151 = vpow.pop %v1150
    %v1152 = vmul.f32 %v1105, 1.442695
    %v1153 = vpow.pop %v1152
    %v1154 = vmul.f32 %v1106, 1.442695
    %v1155 = vpow.pop %v1154
    %v1156 = vmul.f32 %v1107, 1.442695
    %v1157 = vpow.pop %v1156
    %v1158 = vmul.f32 %v1108, 1.442695
    %v1159 = vpow.pop %v1158
    %v1160 = vmul.f32 %v1109, 1.442695
    %v1161 = vpow.pop %v1160
    %v1162 = vmul.f32 %v1110, 1.442695
    %v1163 = vpow.pop %v1162
    %v1164 = vmul.f32 %v1111, 1.442695
    %v1165 = vpow.pop %v1164
    %v1166 = vmul.f32 %v1112, 1.442695
    %v1167 = vpow.pop %v1166
    %v1168 = vmul.f32 %v1113, 1.442695
    %v1169 = vpow.pop %v1168
    %v1170 = vmul.f32 %v1114, 1.442695
    %v1171 = vpow.pop %v1170
    %v1172 = vmul.f32 %v1115, 1.442695
    %v1173 = vpow.pop %v1172
    %v1174 = vmul.f32 %v1116, 1.442695
    %v1175 = vpow.pop %v1174
    %v1176 = vmul.f32 %v1117, 1.442695
    %v1177 = vpow.pop %v1176
    %v1178 = vmul.f32 %v1118, 1.442695
    %v1179 = vpow.pop %v1178
    %v1180 = vmul.f32 %v1119, 1.442695
    %v1181 = vpow.pop %v1180
    %v1182 = vmul.f32 %v1120, 1.442695
    %v1183 = vpow.pop %v1182
    %v1184 = vmul.f32 %v1121, 1.442695
    %v1185 = vpow.pop %v1184
    %v1186 = vsel %vm993, %v1123, 0.0
    %1187 = vadd.xlane.f32.xlu0 %v1186
    %v1188 = vpop.xlane.xlu0 %1187
    %v1189 = vsel %vm993, %v1125, 0.0
    %1190 = vadd.xlane.f32.xlu0 %v1189
    %v1191 = vpop.xlane.xlu0 %1190
    %v1192 = vsel %vm993, %v1127, 0.0
    %1193 = vadd.xlane.f32.xlu0 %v1192
    %v1194 = vpop.xlane.xlu0 %1193
    %v1195 = vsel %vm993, %v1129, 0.0
    %1196 = vadd.xlane.f32.xlu0 %v1195
    %v1197 = vpop.xlane.xlu0 %1196
    %v1198 = vsel %vm993, %v1131, 0.0
    %1199 = vadd.xlane.f32.xlu0 %v1198
    %v1200 = vpop.xlane.xlu0 %1199
    %v1201 = vsel %vm993, %v1133, 0.0
    %1202 = vadd.xlane.f32.xlu0 %v1201
    %v1203 = vpop.xlane.xlu0 %1202
    %v1204 = vsel %vm993, %v1135, 0.0
    %1205 = vadd.xlane.f32.xlu0 %v1204
    %v1206 = vpop.xlane.xlu0 %1205
    %v1207 = vsel %vm993, %v1137, 0.0
    %1208 = vadd.xlane.f32.xlu0 %v1207
    %v1209 = vpop.xlane.xlu0 %1208
    %v1210 = vsel %vm993, %v1139, 0.0
    %1211 = vadd.xlane.f32.xlu0 %v1210
    %v1212 = vpop.xlane.xlu0 %1211
    %v1213 = vsel %vm993, %v1141, 0.0
    %1214 = vadd.xlane.f32.xlu0 %v1213
    %v1215 = vpop.xlane.xlu0 %1214
    %v1216 = vsel %vm993, %v1143, 0.0
    %1217 = vadd.xlane.f32.xlu0 %v1216
    %v1218 = vpop.xlane.xlu0 %1217
    %v1219 = vsel %vm993, %v1145, 0.0
    %1220 = vadd.xlane.f32.xlu0 %v1219
    %v1221 = vpop.xlane.xlu0 %1220
    %v1222 = vsel %vm993, %v1147, 0.0
    %1223 = vadd.xlane.f32.xlu0 %v1222
    %v1224 = vpop.xlane.xlu0 %1223
    %v1225 = vsel %vm993, %v1149, 0.0
    %1226 = vadd.xlane.f32.xlu0 %v1225
    %v1227 = vpop.xlane.xlu0 %1226
    %v1228 = vsel %vm993, %v1151, 0.0
    %1229 = vadd.xlane.f32.xlu0 %v1228
    %v1230 = vpop.xlane.xlu0 %1229
    %v1231 = vsel %vm993, %v1153, 0.0
    %1232 = vadd.xlane.f32.xlu0 %v1231
    %v1233 = vpop.xlane.xlu0 %1232
    %v1234 = vsel %vm993, %v1155, 0.0
    %1235 = vadd.xlane.f32.xlu0 %v1234
    %v1236 = vpop.xlane.xlu0 %1235
    %v1237 = vsel %vm993, %v1157, 0.0
    %1238 = vadd.xlane.f32.xlu0 %v1237
    %v1239 = vpop.xlane.xlu0 %1238
    %v1240 = vsel %vm993, %v1159, 0.0
    %1241 = vadd.xlane.f32.xlu0 %v1240
    %v1242 = vpop.xlane.xlu0 %1241
    %v1243 = vsel %vm993, %v1161, 0.0
    %1244 = vadd.xlane.f32.xlu0 %v1243
    %v1245 = vpop.xlane.xlu0 %1244
    %v1246 = vsel %vm993, %v1163, 0.0
    %1247 = vadd.xlane.f32.xlu0 %v1246
    %v1248 = vpop.xlane.xlu0 %1247
    %v1249 = vsel %vm993, %v1165, 0.0
    %1250 = vadd.xlane.f32.xlu0 %v1249
    %v1251 = vpop.xlane.xlu0 %1250
    %v1252 = vsel %vm993, %v1167, 0.0
    %1253 = vadd.xlane.f32.xlu0 %v1252
    %v1254 = vpop.xlane.xlu0 %1253
    %v1255 = vsel %vm993, %v1169, 0.0
    %1256 = vadd.xlane.f32.xlu0 %v1255
    %v1257 = vpop.xlane.xlu0 %1256
    %v1258 = vsel %vm993, %v1171, 0.0
    %1259 = vadd.xlane.f32.xlu0 %v1258
    %v1260 = vpop.xlane.xlu0 %1259
    %v1261 = vsel %vm993, %v1173, 0.0
    %1262 = vadd.xlane.f32.xlu0 %v1261
    %v1263 = vpop.xlane.xlu0 %1262
    %v1264 = vsel %vm993, %v1175, 0.0
    %1265 = vadd.xlane.f32.xlu0 %v1264
    %v1266 = vpop.xlane.xlu0 %1265
    %v1267 = vsel %vm993, %v1177, 0.0
    %1268 = vadd.xlane.f32.xlu0 %v1267
    %v1269 = vpop.xlane.xlu0 %1268
    %v1270 = vsel %vm993, %v1179, 0.0
    %1271 = vadd.xlane.f32.xlu0 %v1270
    %v1272 = vpop.xlane.xlu0 %1271
    %v1273 = vsel %vm993, %v1181, 0.0
    %1274 = vadd.xlane.f32.xlu0 %v1273
    %v1275 = vpop.xlane.xlu0 %1274
    %v1276 = vsel %vm993, %v1183, 0.0
    %1277 = vadd.xlane.f32.xlu0 %v1276
    %v1278 = vpop.xlane.xlu0 %1277
    %v1279 = vsel %vm993, %v1185, 0.0
    %1280 = vadd.xlane.f32.xlu0 %v1279
    %v1281 = vpop.xlane.xlu0 %1280
    %v1282 = vrcp.pop %v1188
    %v1283 = vmul.f32 %v1123, %v1282
    %v1284 = vrcp.pop %v1191
    %v1285 = vmul.f32 %v1125, %v1284
    %v1286 = vrcp.pop %v1194
    %v1287 = vmul.f32 %v1127, %v1286
    %v1288 = vrcp.pop %v1197
    %v1289 = vmul.f32 %v1129, %v1288
    %v1290 = vrcp.pop %v1200
    %v1291 = vmul.f32 %v1131, %v1290
    %v1292 = vrcp.pop %v1203
    %v1293 = vmul.f32 %v1133, %v1292
    %v1294 = vrcp.pop %v1206
    %v1295 = vmul.f32 %v1135, %v1294
    %v1296 = vrcp.pop %v1209
    %v1297 = vmul.f32 %v1137, %v1296
    %v1298 = vrcp.pop %v1212
    %v1299 = vmul.f32 %v1139, %v1298
    %v1300 = vrcp.pop %v1215
    %v1301 = vmul.f32 %v1141, %v1300
    %v1302 = vrcp.pop %v1218
    %v1303 = vmul.f32 %v1143, %v1302
    %v1304 = vrcp.pop %v1221
    %v1305 = vmul.f32 %v1145, %v1304
    %v1306 = vrcp.pop %v1224
    %v1307 = vmul.f32 %v1147, %v1306
    %v1308 = vrcp.pop %v1227
    %v1309 = vmul.f32 %v1149, %v1308
    %v1310 = vrcp.pop %v1230
    %v1311 = vmul.f32 %v1151, %v1310
    %v1312 = vrcp.pop %v1233
    %v1313 = vmul.f32 %v1153, %v1312
    %v1314 = vrcp.pop %v1236
    %v1315 = vmul.f32 %v1155, %v1314
    %v1316 = vrcp.pop %v1239
    %v1317 = vmul.f32 %v1157, %v1316
    %v1318 = vrcp.pop %v1242
    %v1319 = vmul.f32 %v1159, %v1318
    %v1320 = vrcp.pop %v1245
    %v1321 = vmul.f32 %v1161, %v1320
    %v1322 = vrcp.pop %v1248
    %v1323 = vmul.f32 %v1163, %v1322
    %v1324 = vrcp.pop %v1251
    %v1325 = vmul.f32 %v1165, %v1324
    %v1326 = vrcp.pop %v1254
    %v1327 = vmul.f32 %v1167, %v1326
    %v1328 = vrcp.pop %v1257
    %v1329 = vmul.f32 %v1169, %v1328
    %v1330 = vrcp.pop %v1260
    %v1331 = vmul.f32 %v1171, %v1330
    %v1332 = vrcp.pop %v1263
    %v1333 = vmul.f32 %v1173, %v1332
    %v1334 = vrcp.pop %v1266
    %v1335 = vmul.f32 %v1175, %v1334
    %v1336 = vrcp.pop %v1269
    %v1337 = vmul.f32 %v1177, %v1336
    %v1338 = vrcp.pop %v1272
    %v1339 = vmul.f32 %v1179, %v1338
    %v1340 = vrcp.pop %v1275
    %v1341 = vmul.f32 %v1181, %v1340
    %v1342 = vrcp.pop %v1278
    %v1343 = vmul.f32 %v1183, %v1342
    %v1344 = vrcp.pop %v1281
    %v1345 = vmul.f32 %v1185, %v1344
    %v1346 = vlaneseq
    %v1347 = vand.u32 %v1346, 127
    %vm1348 = vcmp.ge.f32.partialorder %v835, %v996
    %vm1349 = vcmp.ge.f32.partialorder %v840, %v999
    %vm1350 = vcmp.ge.f32.partialorder %v845, %v1002
    %vm1351 = vcmp.ge.f32.partialorder %v850, %v1005
    %vm1352 = vcmp.ge.f32.partialorder %v855, %v1008
    %vm1353 = vcmp.ge.f32.partialorder %v860, %v1011
    %vm1354 = vcmp.ge.f32.partialorder %v865, %v1014
    %vm1355 = vcmp.ge.f32.partialorder %v870, %v1017
    %vm1356 = vcmp.ge.f32.partialorder %v875, %v1020
    %vm1357 = vcmp.ge.f32.partialorder %v880, %v1023
    %vm1358 = vcmp.ge.f32.partialorder %v885, %v1026
    %vm1359 = vcmp.ge.f32.partialorder %v890, %v1029
    %vm1360 = vcmp.ge.f32.partialorder %v895, %v1032
    %vm1361 = vcmp.ge.f32.partialorder %v900, %v1035
    %vm1362 = vcmp.ge.f32.partialorder %v905, %v1038
    %vm1363 = vcmp.ge.f32.partialorder %v910, %v1041
    %vm1364 = vcmp.ge.f32.partialorder %v915, %v1044
    %vm1365 = vcmp.ge.f32.partialorder %v920, %v1047
    %vm1366 = vcmp.ge.f32.partialorder %v925, %v1050
    %vm1367 = vcmp.ge.f32.partialorder %v930, %v1053
    %vm1368 = vcmp.ge.f32.partialorder %v935, %v1056
    %vm1369 = vcmp.ge.f32.partialorder %v940, %v1059
    %vm1370 = vcmp.ge.f32.partialorder %v945, %v1062
    %vm1371 = vcmp.ge.f32.partialorder %v950, %v1065
    %vm1372 = vcmp.ge.f32.partialorder %v955, %v1068
    %vm1373 = vcmp.ge.f32.partialorder %v960, %v1071
    %vm1374 = vcmp.ge.f32.partialorder %v965, %v1074
    %vm1375 = vcmp.ge.f32.partialorder %v970, %v1077
    %vm1376 = vcmp.ge.f32.partialorder %v975, %v1080
    %vm1377 = vcmp.ge.f32.partialorder %v980, %v1083
    %vm1378 = vcmp.ge.f32.partialorder %v985, %v1086
    %vm1379 = vcmp.ge.f32.partialorder %v990, %v1089
    %v1380 = vsel %vm1348, %v1347, 4
    %v1381 = vsel %vm1349, %v1347, 4
    %v1382 = vsel %vm1350, %v1347, 4
    %v1383 = vsel %vm1351, %v1347, 4
    %v1384 = vsel %vm1352, %v1347, 4
    %v1385 = vsel %vm1353, %v1347, 4
    %v1386 = vsel %vm1354, %v1347, 4
    %v1387 = vsel %vm1355, %v1347, 4
    %v1388 = vsel %vm1356, %v1347, 4
    %v1389 = vsel %vm1357, %v1347, 4
    %v1390 = vsel %vm1358, %v1347, 4
    %v1391 = vsel %vm1359, %v1347, 4
    %v1392 = vsel %vm1360, %v1347, 4
    %v1393 = vsel %vm1361, %v1347, 4
    %v1394 = vsel %vm1362, %v1347, 4
    %v1395 = vsel %vm1363, %v1347, 4
    %v1396 = vsel %vm1364, %v1347, 4
    %v1397 = vsel %vm1365, %v1347, 4
    %v1398 = vsel %vm1366, %v1347, 4
    %v1399 = vsel %vm1367, %v1347, 4
    %v1400 = vsel %vm1368, %v1347, 4
    %v1401 = vsel %vm1369, %v1347, 4
    %v1402 = vsel %vm1370, %v1347, 4
    %v1403 = vsel %vm1371, %v1347, 4
    %v1404 = vsel %vm1372, %v1347, 4
    %v1405 = vsel %vm1373, %v1347, 4
    %v1406 = vsel %vm1374, %v1347, 4
    %v1407 = vsel %vm1375, %v1347, 4
    %v1408 = vsel %vm1376, %v1347, 4
    %v1409 = vsel %vm1377, %v1347, 4
    %v1410 = vsel %vm1378, %v1347, 4
    %v1411 = vsel %vm1379, %v1347, 4
    %v1412 = vsel %vm993, %v1380, 2147483647
    %v1413 = vand.u32 %v1412, 65535
    %v1414 = vshra.s32 %v1412, 16
    %v1415 = vcvt.s32.f32 %v1413
    %v1416 = vcvt.s32.f32 %v1414
    %1417 = vmin.xlane.f32.xlu0 %v1416
    %v1418 = vpop.xlane.xlu0 %1417
    %vm1419 = vcmp.eq.f32.partialorder %v1416, %v1418
    %v1420 = vsel %vm1419, %v1415, inf
    %1421 = vmin.xlane.f32.xlu0 %v1420
    %v1422 = vpop.xlane.xlu0 %1421
    %v1423 = vcvt.f32.s32 %v1422
    %v1424 = vcvt.f32.s32 %v1418
    %v1425 = vshll.u32 %v1424, 16
    %v1426 = vadd.s32 %v1425, %v1423
    %v1427 = vsel %vm993, %v1381, 2147483647
    %v1428 = vand.u32 %v1427, 65535
    %v1429 = vshra.s32 %v1427, 16
    %v1430 = vcvt.s32.f32 %v1428
    %v1431 = vcvt.s32.f32 %v1429
    %1432 = vmin.xlane.f32.xlu0 %v1431
    %v1433 = vpop.xlane.xlu0 %1432
    %vm1434 = vcmp.eq.f32.partialorder %v1431, %v1433
    %v1435 = vsel %vm1434, %v1430, inf
    %1436 = vmin.xlane.f32.xlu0 %v1435
    %v1437 = vpop.xlane.xlu0 %1436
    %v1438 = vcvt.f32.s32 %v1437
    %v1439 = vcvt.f32.s32 %v1433
    %v1440 = vshll.u32 %v1439, 16
    %v1441 = vadd.s32 %v1440, %v1438
    %v1442 = vsel %vm993, %v1382, 2147483647
    %v1443 = vand.u32 %v1442, 65535
    %v1444 = vshra.s32 %v1442, 16
    %v1445 = vcvt.s32.f32 %v1443
    %v1446 = vcvt.s32.f32 %v1444
    %1447 = vmin.xlane.f32.xlu0 %v1446
    %v1448 = vpop.xlane.xlu0 %1447
    %vm1449 = vcmp.eq.f32.partialorder %v1446, %v1448
    %v1450 = vsel %vm1449, %v1445, inf
    %1451 = vmin.xlane.f32.xlu0 %v1450
    %v1452 = vpop.xlane.xlu0 %1451
    %v1453 = vcvt.f32.s32 %v1452
    %v1454 = vcvt.f32.s32 %v1448
    %v1455 = vshll.u32 %v1454, 16
    %v1456 = vadd.s32 %v1455, %v1453
    %v1457 = vsel %vm993, %v1383, 2147483647
    %v1458 = vand.u32 %v1457, 65535
    %v1459 = vshra.s32 %v1457, 16
    %v1460 = vcvt.s32.f32 %v1458
    %v1461 = vcvt.s32.f32 %v1459
    %1462 = vmin.xlane.f32.xlu0 %v1461
    %v1463 = vpop.xlane.xlu0 %1462
    %vm1464 = vcmp.eq.f32.partialorder %v1461, %v1463
    %v1465 = vsel %vm1464, %v1460, inf
    %1466 = vmin.xlane.f32.xlu0 %v1465
    %v1467 = vpop.xlane.xlu0 %1466
    %v1468 = vcvt.f32.s32 %v1467
    %v1469 = vcvt.f32.s32 %v1463
    %v1470 = vshll.u32 %v1469, 16
    %v1471 = vadd.s32 %v1470, %v1468
    %v1472 = vsel %vm993, %v1384, 2147483647
    %v1473 = vand.u32 %v1472, 65535
    %v1474 = vshra.s32 %v1472, 16
    %v1475 = vcvt.s32.f32 %v1473
    %v1476 = vcvt.s32.f32 %v1474
    %1477 = vmin.xlane.f32.xlu0 %v1476
    %v1478 = vpop.xlane.xlu0 %1477
    %vm1479 = vcmp.eq.f32.partialorder %v1476, %v1478
    %v1480 = vsel %vm1479, %v1475, inf
    %1481 = vmin.xlane.f32.xlu0 %v1480
    %v1482 = vpop.xlane.xlu0 %1481
    %v1483 = vcvt.f32.s32 %v1482
    %v1484 = vcvt.f32.s32 %v1478
    %v1485 = vshll.u32 %v1484, 16
    %v1486 = vadd.s32 %v1485, %v1483
    %v1487 = vsel %vm993, %v1385, 2147483647
    %v1488 = vand.u32 %v1487, 65535
    %v1489 = vshra.s32 %v1487, 16
    %v1490 = vcvt.s32.f32 %v1488
    %v1491 = vcvt.s32.f32 %v1489
    %1492 = vmin.xlane.f32.xlu0 %v1491
    %v1493 = vpop.xlane.xlu0 %1492
    %vm1494 = vcmp.eq.f32.partialorder %v1491, %v1493
    %v1495 = vsel %vm1494, %v1490, inf
    %1496 = vmin.xlane.f32.xlu0 %v1495
    %v1497 = vpop.xlane.xlu0 %1496
    %v1498 = vcvt.f32.s32 %v1497
    %v1499 = vcvt.f32.s32 %v1493
    %v1500 = vshll.u32 %v1499, 16
    %v1501 = vadd.s32 %v1500, %v1498
    %v1502 = vsel %vm993, %v1386, 2147483647
    %v1503 = vand.u32 %v1502, 65535
    %v1504 = vshra.s32 %v1502, 16
    %v1505 = vcvt.s32.f32 %v1503
    %v1506 = vcvt.s32.f32 %v1504
    %1507 = vmin.xlane.f32.xlu0 %v1506
    %v1508 = vpop.xlane.xlu0 %1507
    %vm1509 = vcmp.eq.f32.partialorder %v1506, %v1508
    %v1510 = vsel %vm1509, %v1505, inf
    %1511 = vmin.xlane.f32.xlu0 %v1510
    %v1512 = vpop.xlane.xlu0 %1511
    %v1513 = vcvt.f32.s32 %v1512
    %v1514 = vcvt.f32.s32 %v1508
    %v1515 = vshll.u32 %v1514, 16
    %v1516 = vadd.s32 %v1515, %v1513
    %v1517 = vsel %vm993, %v1387, 2147483647
    %v1518 = vand.u32 %v1517, 65535
    %v1519 = vshra.s32 %v1517, 16
    %v1520 = vcvt.s32.f32 %v1518
    %v1521 = vcvt.s32.f32 %v1519
    %1522 = vmin.xlane.f32.xlu0 %v1521
    %v1523 = vpop.xlane.xlu0 %1522
    %vm1524 = vcmp.eq.f32.partialorder %v1521, %v1523
    %v1525 = vsel %vm1524, %v1520, inf
    %1526 = vmin.xlane.f32.xlu0 %v1525
    %v1527 = vpop.xlane.xlu0 %1526
    %v1528 = vcvt.f32.s32 %v1527
    %v1529 = vcvt.f32.s32 %v1523
    %v1530 = vshll.u32 %v1529, 16
    %v1531 = vadd.s32 %v1530, %v1528
    %v1532 = vsel %vm993, %v1388, 2147483647
    %v1533 = vand.u32 %v1532, 65535
    %v1534 = vshra.s32 %v1532, 16
    %v1535 = vcvt.s32.f32 %v1533
    %v1536 = vcvt.s32.f32 %v1534
    %1537 = vmin.xlane.f32.xlu0 %v1536
    %v1538 = vpop.xlane.xlu0 %1537
    %vm1539 = vcmp.eq.f32.partialorder %v1536, %v1538
    %v1540 = vsel %vm1539, %v1535, inf
    %1541 = vmin.xlane.f32.xlu0 %v1540
    %v1542 = vpop.xlane.xlu0 %1541
    %v1543 = vcvt.f32.s32 %v1542
    %v1544 = vcvt.f32.s32 %v1538
    %v1545 = vshll.u32 %v1544, 16
    %v1546 = vadd.s32 %v1545, %v1543
    %v1547 = vsel %vm993, %v1389, 2147483647
    %v1548 = vand.u32 %v1547, 65535
    %v1549 = vshra.s32 %v1547, 16
    %v1550 = vcvt.s32.f32 %v1548
    %v1551 = vcvt.s32.f32 %v1549
    %1552 = vmin.xlane.f32.xlu0 %v1551
    %v1553 = vpop.xlane.xlu0 %1552
    %vm1554 = vcmp.eq.f32.partialorder %v1551, %v1553
    %v1555 = vsel %vm1554, %v1550, inf
    %1556 = vmin.xlane.f32.xlu0 %v1555
    %v1557 = vpop.xlane.xlu0 %1556
    %v1558 = vcvt.f32.s32 %v1557
    %v1559 = vcvt.f32.s32 %v1553
    %v1560 = vshll.u32 %v1559, 16
    %v1561 = vadd.s32 %v1560, %v1558
    %v1562 = vsel %vm993, %v1390, 2147483647
    %v1563 = vand.u32 %v1562, 65535
    %v1564 = vshra.s32 %v1562, 16
    %v1565 = vcvt.s32.f32 %v1563
    %v1566 = vcvt.s32.f32 %v1564
    %1567 = vmin.xlane.f32.xlu0 %v1566
    %v1568 = vpop.xlane.xlu0 %1567
    %vm1569 = vcmp.eq.f32.partialorder %v1566, %v1568
    %v1570 = vsel %vm1569, %v1565, inf
    %1571 = vmin.xlane.f32.xlu0 %v1570
    %v1572 = vpop.xlane.xlu0 %1571
    %v1573 = vcvt.f32.s32 %v1572
    %v1574 = vcvt.f32.s32 %v1568
    %v1575 = vshll.u32 %v1574, 16
    %v1576 = vadd.s32 %v1575, %v1573
    %v1577 = vsel %vm993, %v1391, 2147483647
    %v1578 = vand.u32 %v1577, 65535
    %v1579 = vshra.s32 %v1577, 16
    %v1580 = vcvt.s32.f32 %v1578
    %v1581 = vcvt.s32.f32 %v1579
    %1582 = vmin.xlane.f32.xlu0 %v1581
    %v1583 = vpop.xlane.xlu0 %1582
    %vm1584 = vcmp.eq.f32.partialorder %v1581, %v1583
    %v1585 = vsel %vm1584, %v1580, inf
    %1586 = vmin.xlane.f32.xlu0 %v1585
    %v1587 = vpop.xlane.xlu0 %1586
    %v1588 = vcvt.f32.s32 %v1587
    %v1589 = vcvt.f32.s32 %v1583
    %v1590 = vshll.u32 %v1589, 16
    %v1591 = vadd.s32 %v1590, %v1588
    %v1592 = vsel %vm993, %v1392, 2147483647
    %v1593 = vand.u32 %v1592, 65535
    %v1594 = vshra.s32 %v1592, 16
    %v1595 = vcvt.s32.f32 %v1593
    %v1596 = vcvt.s32.f32 %v1594
    %1597 = vmin.xlane.f32.xlu0 %v1596
    %v1598 = vpop.xlane.xlu0 %1597
    %vm1599 = vcmp.eq.f32.partialorder %v1596, %v1598
    %v1600 = vsel %vm1599, %v1595, inf
    %1601 = vmin.xlane.f32.xlu0 %v1600
    %v1602 = vpop.xlane.xlu0 %1601
    %v1603 = vcvt.f32.s32 %v1602
    %v1604 = vcvt.f32.s32 %v1598
    %v1605 = vshll.u32 %v1604, 16
    %v1606 = vadd.s32 %v1605, %v1603
    %v1607 = vsel %vm993, %v1393, 2147483647
    %v1608 = vand.u32 %v1607, 65535
    %v1609 = vshra.s32 %v1607, 16
    %v1610 = vcvt.s32.f32 %v1608
    %v1611 = vcvt.s32.f32 %v1609
    %1612 = vmin.xlane.f32.xlu0 %v1611
    %v1613 = vpop.xlane.xlu0 %1612
    %vm1614 = vcmp.eq.f32.partialorder %v1611, %v1613
    %v1615 = vsel %vm1614, %v1610, inf
    %1616 = vmin.xlane.f32.xlu0 %v1615
    %v1617 = vpop.xlane.xlu0 %1616
    %v1618 = vcvt.f32.s32 %v1617
    %v1619 = vcvt.f32.s32 %v1613
    %v1620 = vshll.u32 %v1619, 16
    %v1621 = vadd.s32 %v1620, %v1618
    %v1622 = vsel %vm993, %v1394, 2147483647
    %v1623 = vand.u32 %v1622, 65535
    %v1624 = vshra.s32 %v1622, 16
    %v1625 = vcvt.s32.f32 %v1623
    %v1626 = vcvt.s32.f32 %v1624
    %1627 = vmin.xlane.f32.xlu0 %v1626
    %v1628 = vpop.xlane.xlu0 %1627
    %vm1629 = vcmp.eq.f32.partialorder %v1626, %v1628
    %v1630 = vsel %vm1629, %v1625, inf
    %1631 = vmin.xlane.f32.xlu0 %v1630
    %v1632 = vpop.xlane.xlu0 %1631
    %v1633 = vcvt.f32.s32 %v1632
    %v1634 = vcvt.f32.s32 %v1628
    %v1635 = vshll.u32 %v1634, 16
    %v1636 = vadd.s32 %v1635, %v1633
    %v1637 = vsel %vm993, %v1395, 2147483647
    %v1638 = vand.u32 %v1637, 65535
    %v1639 = vshra.s32 %v1637, 16
    %v1640 = vcvt.s32.f32 %v1638
    %v1641 = vcvt.s32.f32 %v1639
    %1642 = vmin.xlane.f32.xlu0 %v1641
    %v1643 = vpop.xlane.xlu0 %1642
    %vm1644 = vcmp.eq.f32.partialorder %v1641, %v1643
    %v1645 = vsel %vm1644, %v1640, inf
    %1646 = vmin.xlane.f32.xlu0 %v1645
    %v1647 = vpop.xlane.xlu0 %1646
    %v1648 = vcvt.f32.s32 %v1647
    %v1649 = vcvt.f32.s32 %v1643
    %v1650 = vshll.u32 %v1649, 16
    %v1651 = vadd.s32 %v1650, %v1648
    %v1652 = vsel %vm993, %v1396, 2147483647
    %v1653 = vand.u32 %v1652, 65535
    %v1654 = vshra.s32 %v1652, 16
    %v1655 = vcvt.s32.f32 %v1653
    %v1656 = vcvt.s32.f32 %v1654
    %1657 = vmin.xlane.f32.xlu0 %v1656
    %v1658 = vpop.xlane.xlu0 %1657
    %vm1659 = vcmp.eq.f32.partialorder %v1656, %v1658
    %v1660 = vsel %vm1659, %v1655, inf
    %1661 = vmin.xlane.f32.xlu0 %v1660
    %v1662 = vpop.xlane.xlu0 %1661
    %v1663 = vcvt.f32.s32 %v1662
    %v1664 = vcvt.f32.s32 %v1658
    %v1665 = vshll.u32 %v1664, 16
    %v1666 = vadd.s32 %v1665, %v1663
    %v1667 = vsel %vm993, %v1397, 2147483647
    %v1668 = vand.u32 %v1667, 65535
    %v1669 = vshra.s32 %v1667, 16
    %v1670 = vcvt.s32.f32 %v1668
    %v1671 = vcvt.s32.f32 %v1669
    %1672 = vmin.xlane.f32.xlu0 %v1671
    %v1673 = vpop.xlane.xlu0 %1672
    %vm1674 = vcmp.eq.f32.partialorder %v1671, %v1673
    %v1675 = vsel %vm1674, %v1670, inf
    %1676 = vmin.xlane.f32.xlu0 %v1675
    %v1677 = vpop.xlane.xlu0 %1676
    %v1678 = vcvt.f32.s32 %v1677
    %v1679 = vcvt.f32.s32 %v1673
    %v1680 = vshll.u32 %v1679, 16
    %v1681 = vadd.s32 %v1680, %v1678
    %v1682 = vsel %vm993, %v1398, 2147483647
    %v1683 = vand.u32 %v1682, 65535
    %v1684 = vshra.s32 %v1682, 16
    %v1685 = vcvt.s32.f32 %v1683
    %v1686 = vcvt.s32.f32 %v1684
    %1687 = vmin.xlane.f32.xlu0 %v1686
    %v1688 = vpop.xlane.xlu0 %1687
    %vm1689 = vcmp.eq.f32.partialorder %v1686, %v1688
    %v1690 = vsel %vm1689, %v1685, inf
    %1691 = vmin.xlane.f32.xlu0 %v1690
    %v1692 = vpop.xlane.xlu0 %1691
    %v1693 = vcvt.f32.s32 %v1692
    %v1694 = vcvt.f32.s32 %v1688
    %v1695 = vshll.u32 %v1694, 16
    %v1696 = vadd.s32 %v1695, %v1693
    %v1697 = vsel %vm993, %v1399, 2147483647
    %v1698 = vand.u32 %v1697, 65535
    %v1699 = vshra.s32 %v1697, 16
    %v1700 = vcvt.s32.f32 %v1698
    %v1701 = vcvt.s32.f32 %v1699
    %1702 = vmin.xlane.f32.xlu0 %v1701
    %v1703 = vpop.xlane.xlu0 %1702
    %vm1704 = vcmp.eq.f32.partialorder %v1701, %v1703
    %v1705 = vsel %vm1704, %v1700, inf
    %1706 = vmin.xlane.f32.xlu0 %v1705
    %v1707 = vpop.xlane.xlu0 %1706
    %v1708 = vcvt.f32.s32 %v1707
    %v1709 = vcvt.f32.s32 %v1703
    %v1710 = vshll.u32 %v1709, 16
    %v1711 = vadd.s32 %v1710, %v1708
    %v1712 = vsel %vm993, %v1400, 2147483647
    %v1713 = vand.u32 %v1712, 65535
    %v1714 = vshra.s32 %v1712, 16
    %v1715 = vcvt.s32.f32 %v1713
    %v1716 = vcvt.s32.f32 %v1714
    %1717 = vmin.xlane.f32.xlu0 %v1716
    %v1718 = vpop.xlane.xlu0 %1717
    %vm1719 = vcmp.eq.f32.partialorder %v1716, %v1718
    %v1720 = vsel %vm1719, %v1715, inf
    %1721 = vmin.xlane.f32.xlu0 %v1720
    %v1722 = vpop.xlane.xlu0 %1721
    %v1723 = vcvt.f32.s32 %v1722
    %v1724 = vcvt.f32.s32 %v1718
    %v1725 = vshll.u32 %v1724, 16
    %v1726 = vadd.s32 %v1725, %v1723
    %v1727 = vsel %vm993, %v1401, 2147483647
    %v1728 = vand.u32 %v1727, 65535
    %v1729 = vshra.s32 %v1727, 16
    %v1730 = vcvt.s32.f32 %v1728
    %v1731 = vcvt.s32.f32 %v1729
    %1732 = vmin.xlane.f32.xlu0 %v1731
    %v1733 = vpop.xlane.xlu0 %1732
    %vm1734 = vcmp.eq.f32.partialorder %v1731, %v1733
    %v1735 = vsel %vm1734, %v1730, inf
    %1736 = vmin.xlane.f32.xlu0 %v1735
    %v1737 = vpop.xlane.xlu0 %1736
    %v1738 = vcvt.f32.s32 %v1737
    %v1739 = vcvt.f32.s32 %v1733
    %v1740 = vshll.u32 %v1739, 16
    %v1741 = vadd.s32 %v1740, %v1738
    %v1742 = vsel %vm993, %v1402, 2147483647
    %v1743 = vand.u32 %v1742, 65535
    %v1744 = vshra.s32 %v1742, 16
    %v1745 = vcvt.s32.f32 %v1743
    %v1746 = vcvt.s32.f32 %v1744
    %1747 = vmin.xlane.f32.xlu0 %v1746
    %v1748 = vpop.xlane.xlu0 %1747
    %vm1749 = vcmp.eq.f32.partialorder %v1746, %v1748
    %v1750 = vsel %vm1749, %v1745, inf
    %1751 = vmin.xlane.f32.xlu0 %v1750
    %v1752 = vpop.xlane.xlu0 %1751
    %v1753 = vcvt.f32.s32 %v1752
    %v1754 = vcvt.f32.s32 %v1748
    %v1755 = vshll.u32 %v1754, 16
    %v1756 = vadd.s32 %v1755, %v1753
    %v1757 = vsel %vm993, %v1403, 2147483647
    %v1758 = vand.u32 %v1757, 65535
    %v1759 = vshra.s32 %v1757, 16
    %v1760 = vcvt.s32.f32 %v1758
    %v1761 = vcvt.s32.f32 %v1759
    %1762 = vmin.xlane.f32.xlu0 %v1761
    %v1763 = vpop.xlane.xlu0 %1762
    %vm1764 = vcmp.eq.f32.partialorder %v1761, %v1763
    %v1765 = vsel %vm1764, %v1760, inf
    %1766 = vmin.xlane.f32.xlu0 %v1765
    %v1767 = vpop.xlane.xlu0 %1766
    %v1768 = vcvt.f32.s32 %v1767
    %v1769 = vcvt.f32.s32 %v1763
    %v1770 = vshll.u32 %v1769, 16
    %v1771 = vadd.s32 %v1770, %v1768
    %v1772 = vsel %vm993, %v1404, 2147483647
    %v1773 = vand.u32 %v1772, 65535
    %v1774 = vshra.s32 %v1772, 16
    %v1775 = vcvt.s32.f32 %v1773
    %v1776 = vcvt.s32.f32 %v1774
    %1777 = vmin.xlane.f32.xlu0 %v1776
    %v1778 = vpop.xlane.xlu0 %1777
    %vm1779 = vcmp.eq.f32.partialorder %v1776, %v1778
    %v1780 = vsel %vm1779, %v1775, inf
    %1781 = vmin.xlane.f32.xlu0 %v1780
    %v1782 = vpop.xlane.xlu0 %1781
    %v1783 = vcvt.f32.s32 %v1782
    %v1784 = vcvt.f32.s32 %v1778
    %v1785 = vshll.u32 %v1784, 16
    %v1786 = vadd.s32 %v1785, %v1783
    %v1787 = vsel %vm993, %v1405, 2147483647
    %v1788 = vand.u32 %v1787, 65535
    %v1789 = vshra.s32 %v1787, 16
    %v1790 = vcvt.s32.f32 %v1788
    %v1791 = vcvt.s32.f32 %v1789
    %1792 = vmin.xlane.f32.xlu0 %v1791
    %v1793 = vpop.xlane.xlu0 %1792
    %vm1794 = vcmp.eq.f32.partialorder %v1791, %v1793
    %v1795 = vsel %vm1794, %v1790, inf
    %1796 = vmin.xlane.f32.xlu0 %v1795
    %v1797 = vpop.xlane.xlu0 %1796
    %v1798 = vcvt.f32.s32 %v1797
    %v1799 = vcvt.f32.s32 %v1793
    %v1800 = vshll.u32 %v1799, 16
    %v1801 = vadd.s32 %v1800, %v1798
    %v1802 = vsel %vm993, %v1406, 2147483647
    %v1803 = vand.u32 %v1802, 65535
    %v1804 = vshra.s32 %v1802, 16
    %v1805 = vcvt.s32.f32 %v1803
    %v1806 = vcvt.s32.f32 %v1804
    %1807 = vmin.xlane.f32.xlu0 %v1806
    %v1808 = vpop.xlane.xlu0 %1807
    %vm1809 = vcmp.eq.f32.partialorder %v1806, %v1808
    %v1810 = vsel %vm1809, %v1805, inf
    %1811 = vmin.xlane.f32.xlu0 %v1810
    %v1812 = vpop.xlane.xlu0 %1811
    %v1813 = vcvt.f32.s32 %v1812
    %v1814 = vcvt.f32.s32 %v1808
    %v1815 = vshll.u32 %v1814, 16
    %v1816 = vadd.s32 %v1815, %v1813
    %v1817 = vsel %vm993, %v1407, 2147483647
    %v1818 = vand.u32 %v1817, 65535
    %v1819 = vshra.s32 %v1817, 16
    %v1820 = vcvt.s32.f32 %v1818
    %v1821 = vcvt.s32.f32 %v1819
    %1822 = vmin.xlane.f32.xlu0 %v1821
    %v1823 = vpop.xlane.xlu0 %1822
    %vm1824 = vcmp.eq.f32.partialorder %v1821, %v1823
    %v1825 = vsel %vm1824, %v1820, inf
    %1826 = vmin.xlane.f32.xlu0 %v1825
    %v1827 = vpop.xlane.xlu0 %1826
    %v1828 = vcvt.f32.s32 %v1827
    %v1829 = vcvt.f32.s32 %v1823
    %v1830 = vshll.u32 %v1829, 16
    %v1831 = vadd.s32 %v1830, %v1828
    %v1832 = vsel %vm993, %v1408, 2147483647
    %v1833 = vand.u32 %v1832, 65535
    %v1834 = vshra.s32 %v1832, 16
    %v1835 = vcvt.s32.f32 %v1833
    %v1836 = vcvt.s32.f32 %v1834
    %1837 = vmin.xlane.f32.xlu0 %v1836
    %v1838 = vpop.xlane.xlu0 %1837
    %vm1839 = vcmp.eq.f32.partialorder %v1836, %v1838
    %v1840 = vsel %vm1839, %v1835, inf
    %1841 = vmin.xlane.f32.xlu0 %v1840
    %v1842 = vpop.xlane.xlu0 %1841
    %v1843 = vcvt.f32.s32 %v1842
    %v1844 = vcvt.f32.s32 %v1838
    %v1845 = vshll.u32 %v1844, 16
    %v1846 = vadd.s32 %v1845, %v1843
    %v1847 = vsel %vm993, %v1409, 2147483647
    %v1848 = vand.u32 %v1847, 65535
    %v1849 = vshra.s32 %v1847, 16
    %v1850 = vcvt.s32.f32 %v1848
    %v1851 = vcvt.s32.f32 %v1849
    %1852 = vmin.xlane.f32.xlu0 %v1851
    %v1853 = vpop.xlane.xlu0 %1852
    %vm1854 = vcmp.eq.f32.partialorder %v1851, %v1853
    %v1855 = vsel %vm1854, %v1850, inf
    %1856 = vmin.xlane.f32.xlu0 %v1855
    %v1857 = vpop.xlane.xlu0 %1856
    %v1858 = vcvt.f32.s32 %v1857
    %v1859 = vcvt.f32.s32 %v1853
    %v1860 = vshll.u32 %v1859, 16
    %v1861 = vadd.s32 %v1860, %v1858
    %v1862 = vsel %vm993, %v1410, 2147483647
    %v1863 = vand.u32 %v1862, 65535
    %v1864 = vshra.s32 %v1862, 16
    %v1865 = vcvt.s32.f32 %v1863
    %v1866 = vcvt.s32.f32 %v1864
    %1867 = vmin.xlane.f32.xlu0 %v1866
    %v1868 = vpop.xlane.xlu0 %1867
    %vm1869 = vcmp.eq.f32.partialorder %v1866, %v1868
    %v1870 = vsel %vm1869, %v1865, inf
    %1871 = vmin.xlane.f32.xlu0 %v1870
    %v1872 = vpop.xlane.xlu0 %1871
    %v1873 = vcvt.f32.s32 %v1872
    %v1874 = vcvt.f32.s32 %v1868
    %v1875 = vshll.u32 %v1874, 16
    %v1876 = vadd.s32 %v1875, %v1873
    %v1877 = vsel %vm993, %v1411, 2147483647
    %v1878 = vand.u32 %v1877, 65535
    %v1879 = vshra.s32 %v1877, 16
    %v1880 = vcvt.s32.f32 %v1878
    %v1881 = vcvt.s32.f32 %v1879
    %1882 = vmin.xlane.f32.xlu0 %v1881
    %v1883 = vpop.xlane.xlu0 %1882
    %vm1884 = vcmp.eq.f32.partialorder %v1881, %v1883
    %v1885 = vsel %vm1884, %v1880, inf
    %1886 = vmin.xlane.f32.xlu0 %v1885
    %v1887 = vpop.xlane.xlu0 %1886
    %v1888 = vcvt.f32.s32 %v1887
    %v1889 = vcvt.f32.s32 %v1883
    %v1890 = vshll.u32 %v1889, 16
    %v1891 = vadd.s32 %v1890, %v1888
    %vm1892 = vcmp.eq.s32.totalorder %v1347, %v1426
    %vm1893 = vcmp.eq.s32.totalorder %v1347, %v1441
    %vm1894 = vcmp.eq.s32.totalorder %v1347, %v1456
    %vm1895 = vcmp.eq.s32.totalorder %v1347, %v1471
    %vm1896 = vcmp.eq.s32.totalorder %v1347, %v1486
    %vm1897 = vcmp.eq.s32.totalorder %v1347, %v1501
    %vm1898 = vcmp.eq.s32.totalorder %v1347, %v1516
    %vm1899 = vcmp.eq.s32.totalorder %v1347, %v1531
    %vm1900 = vcmp.eq.s32.totalorder %v1347, %v1546
    %vm1901 = vcmp.eq.s32.totalorder %v1347, %v1561
    %vm1902 = vcmp.eq.s32.totalorder %v1347, %v1576
    %vm1903 = vcmp.eq.s32.totalorder %v1347, %v1591
    %vm1904 = vcmp.eq.s32.totalorder %v1347, %v1606
    %vm1905 = vcmp.eq.s32.totalorder %v1347, %v1621
    %vm1906 = vcmp.eq.s32.totalorder %v1347, %v1636
    %vm1907 = vcmp.eq.s32.totalorder %v1347, %v1651
    %vm1908 = vcmp.eq.s32.totalorder %v1347, %v1666
    %vm1909 = vcmp.eq.s32.totalorder %v1347, %v1681
    %vm1910 = vcmp.eq.s32.totalorder %v1347, %v1696
    %vm1911 = vcmp.eq.s32.totalorder %v1347, %v1711
    %vm1912 = vcmp.eq.s32.totalorder %v1347, %v1726
    %vm1913 = vcmp.eq.s32.totalorder %v1347, %v1741
    %vm1914 = vcmp.eq.s32.totalorder %v1347, %v1756
    %vm1915 = vcmp.eq.s32.totalorder %v1347, %v1771
    %vm1916 = vcmp.eq.s32.totalorder %v1347, %v1786
    %vm1917 = vcmp.eq.s32.totalorder %v1347, %v1801
    %vm1918 = vcmp.eq.s32.totalorder %v1347, %v1816
    %vm1919 = vcmp.eq.s32.totalorder %v1347, %v1831
    %vm1920 = vcmp.eq.s32.totalorder %v1347, %v1846
    %vm1921 = vcmp.eq.s32.totalorder %v1347, %v1861
    %vm1922 = vcmp.eq.s32.totalorder %v1347, %v1876
    %vm1923 = vcmp.eq.s32.totalorder %v1347, %v1891
    %v1924 = vsel %vm1892, %v1283, 0.0
    %v1925 = vsel %vm1893, %v1285, 0.0
    %v1926 = vsel %vm1894, %v1287, 0.0
    %v1927 = vsel %vm1895, %v1289, 0.0
    %v1928 = vsel %vm1896, %v1291, 0.0
    %v1929 = vsel %vm1897, %v1293, 0.0
    %v1930 = vsel %vm1898, %v1295, 0.0
    %v1931 = vsel %vm1899, %v1297, 0.0
    %v1932 = vsel %vm1900, %v1299, 0.0
    %v1933 = vsel %vm1901, %v1301, 0.0
    %v1934 = vsel %vm1902, %v1303, 0.0
    %v1935 = vsel %vm1903, %v1305, 0.0
    %v1936 = vsel %vm1904, %v1307, 0.0
    %v1937 = vsel %vm1905, %v1309, 0.0
    %v1938 = vsel %vm1906, %v1311, 0.0
    %v1939 = vsel %vm1907, %v1313, 0.0
    %v1940 = vsel %vm1908, %v1315, 0.0
    %v1941 = vsel %vm1909, %v1317, 0.0
    %v1942 = vsel %vm1910, %v1319, 0.0
    %v1943 = vsel %vm1911, %v1321, 0.0
    %v1944 = vsel %vm1912, %v1323, 0.0
    %v1945 = vsel %vm1913, %v1325, 0.0
    %v1946 = vsel %vm1914, %v1327, 0.0
    %v1947 = vsel %vm1915, %v1329, 0.0
    %v1948 = vsel %vm1916, %v1331, 0.0
    %v1949 = vsel %vm1917, %v1333, 0.0
    %v1950 = vsel %vm1918, %v1335, 0.0
    %v1951 = vsel %vm1919, %v1337, 0.0
    %v1952 = vsel %vm1920, %v1339, 0.0
    %v1953 = vsel %vm1921, %v1341, 0.0
    %v1954 = vsel %vm1922, %v1343, 0.0
    %v1955 = vsel %vm1923, %v1345, 0.0
    %v1956 = vld [vmem:[%s5] sm:$0xf]
    %v1958 = vsel %vm993, %v1924, 0
    %v1961 = vsel %vm993, %v1925, 0
    %v1964 = vsel %vm993, %v1926, 0
    %v1967 = vsel %vm993, %v1927, 0
    %v1970 = vsel %vm993, %v1928, 0
    %v1973 = vsel %vm993, %v1929, 0
    %v1976 = vsel %vm993, %v1930, 0
    %v1979 = vsel %vm993, %v1931, 0
    %v1982 = vsel %vm993, %v1932, 0
    %v1985 = vsel %vm993, %v1933, 0
    %v1988 = vsel %vm993, %v1934, 0
    %v1991 = vsel %vm993, %v1935, 0
    %v1994 = vsel %vm993, %v1936, 0
    %v1997 = vsel %vm993, %v1937, 0
    %v2000 = vsel %vm993, %v1938, 0
    %v2003 = vsel %vm993, %v1939, 0
    %v2006 = vsel %vm993, %v1940, 0
    %v2009 = vsel %vm993, %v1941, 0
    %v2012 = vsel %vm993, %v1942, 0
    %v2015 = vsel %vm993, %v1943, 0
    %v2018 = vsel %vm993, %v1944, 0
    %v2021 = vsel %vm993, %v1945, 0
    %v2024 = vsel %vm993, %v1946, 0
    %v2027 = vsel %vm993, %v1947, 0
    %v2030 = vsel %vm993, %v1948, 0
    %v2033 = vsel %vm993, %v1949, 0
    %v2036 = vsel %vm993, %v1950, 0
    %v2039 = vsel %vm993, %v1951, 0
    %v2042 = vsel %vm993, %v1952, 0
    %v2045 = vsel %vm993, %v1953, 0
    %v2048 = vsel %vm993, %v1954, 0
    %v2051 = vsel %vm993, %v1955, 0
    %vm2053 = vcmask 1043456
    %v2055 = vsel %vm2053, %v1956, 0
    %2057 = vmatprep.subr.mxu0 0.0
    %2058 = vmatpush1.msra.mxu0 %v2055
    %2059 = vmatprep.subr.mxu0 0.0
    %2060 = vmatpush1.msra.mxu0 0.0
    %2061 = vmatprep.subr.mxu0 0.0
    %2062 = vmatpush1.msra.mxu0 0.0
    %2063 = vmatprep.subr.mxu0 0.0
    %2064 = vmatpush1.msra.mxu0 0.0
    %2065 = vmatprep.subr.mxu0 0.0
    %2066 = vmatpush1.msra.mxu0 0.0
    %2067 = vmatprep.subr.mxu0 0.0
    %2068 = vmatpush1.msra.mxu0 0.0
    %2069 = vmatprep.subr.mxu0 0.0
    %2070 = vmatpush1.msra.mxu0 0.0
    %2071 = vmatprep.subr.mxu0 0.0
    %2072 = vmatpush1.msra.mxu0 0.0
    %2073 = vmatprep.subr.mxu0 0.0
    %2074 = vmatpush1.msra.mxu0 0.0
    %2075 = vmatprep.subr.mxu0 0.0
    %2076 = vmatpush1.msra.mxu0 0.0
    %2077 = vmatprep.subr.mxu0 0.0
    %2078 = vmatpush1.msra.mxu0 0.0
    %2079 = vmatprep.subr.mxu0 0.0
    %2080 = vmatpush1.msra.mxu0 0.0
    %2081 = vmatprep.subr.mxu0 0.0
    %2082 = vmatpush1.msra.mxu0 0.0
    %2083 = vmatprep.subr.mxu0 0.0
    %2084 = vmatpush1.msra.mxu0 0.0
    %2085 = vmatprep.subr.mxu0 0.0
    %2086 = vmatpush1.msra.mxu0 0.0
    %2087 = vmatprep.subr.mxu0 0.0
    %2088 = vmatpush1.msra.mxu0 0.0
    %2089 = vmatprep.subr.mxu0 0.0
    %2090 = vmatpush1.msra.mxu0 0.0
    %2091 = vmatprep.subr.mxu0 0.0
    %2092 = vmatpush1.msra.mxu0 0.0
    %2093 = vmatprep.subr.mxu0 0.0
    %2094 = vmatpush1.msra.mxu0 0.0
    %2095 = vmatprep.subr.mxu0 0.0
    %2096 = vmatpush1.msra.mxu0 0.0
    %2097 = vmatprep.subr.mxu0 0.0
    %2098 = vmatpush1.msra.mxu0 0.0
    %2099 = vmatprep.subr.mxu0 0.0
    %2100 = vmatpush1.msra.mxu0 0.0
    %2101 = vmatprep.subr.mxu0 0.0
    %2102 = vmatpush1.msra.mxu0 0.0
    %2103 = vmatprep.subr.mxu0 0.0
    %2104 = vmatpush1.msra.mxu0 0.0
    %2105 = vmatprep.subr.mxu0 0.0
    %2106 = vmatpush1.msra.mxu0 0.0
    %2107 = vmatprep.subr.mxu0 0.0
    %2108 = vmatpush1.msra.mxu0 0.0
    %2109 = vmatprep.subr.mxu0 0.0
    %2110 = vmatpush1.msra.mxu0 0.0
    %2111 = vmatprep.subr.mxu0 0.0
    %2112 = vmatpush1.msra.mxu0 0.0
    %2113 = vmatprep.subr.mxu0 0.0
    %2114 = vmatpush1.msra.mxu0 0.0
    %2115 = vmatprep.subr.mxu0 0.0
    %2116 = vmatpush1.msra.mxu0 0.0
    %2117 = vmatprep.subr.mxu0 0.0
    %2118 = vmatpush1.msra.mxu0 0.0
    %2119 = vmatprep.subr.mxu0 0.0
    %2120 = vmatpush1.msra.mxu0 0.0
    %2121 = vmatprep.mubr.f32.mxu0 0.0
    %2122 = vmatmul.mubr.f32.gmra.mrb[0].mxu0 %v1958
    %v2123 = vpop.f32.mrb[0].mxu0
    %v2124 = vadd.f32 0.0, %v2123
    %v2125 = vpop.f32.mrb[0].mxu0
    %2126 = vmatprep.mubr.f32.mxu0 0.0
    %2127 = vmatmul.mubr.f32.gmra.mrb[0].mxu0 %v1961
    %v2128 = vpop.f32.mrb[0].mxu0
    %v2129 = vadd.f32 0.0, %v2128
    %v2130 = vpop.f32.mrb[0].mxu0
    %2131 = vmatprep.mubr.f32.mxu0 0.0
    %2132 = vmatmul.mubr.f32.gmra.mrb[0].mxu0 %v1964
    %v2133 = vpop.f32.mrb[0].mxu0
    %v2134 = vadd.f32 0.0, %v2133
    %v2135 = vpop.f32.mrb[0].mxu0
    %2136 = vmatprep.mubr.f32.mxu0 0.0
    %2137 = vmatmul.mubr.f32.gmra.mrb[0].mxu0 %v1967
    %v2138 = vpop.f32.mrb[0].mxu0
    %v2139 = vadd.f32 0.0, %v2138
    %v2140 = vpop.f32.mrb[0].mxu0
    %2141 = vmatprep.mubr.f32.mxu0 0.0
    %2142 = vmatmul.mubr.f32.gmra.mrb[0].mxu0 %v1970
    %v2143 = vpop.f32.mrb[0].mxu0
    %v2144 = vadd.f32 0.0, %v2143
    %v2145 = vpop.f32.mrb[0].mxu0
    %2146 = vmatprep.mubr.f32.mxu0 0.0
    %2147 = vmatmul.mubr.f32.gmra.mrb[0].mxu0 %v1973
    %v2148 = vpop.f32.mrb[0].mxu0
    %v2149 = vadd.f32 0.0, %v2148
    %v2150 = vpop.f32.mrb[0].mxu0
    %2151 = vmatprep.mubr.f32.mxu0 0.0
    %2152 = vmatmul.mubr.f32.gmra.mrb[0].mxu0 %v1976
    %v2153 = vpop.f32.mrb[0].mxu0
    %v2154 = vadd.f32 0.0, %v2153
    %v2155 = vpop.f32.mrb[0].mxu0
    %2156 = vmatprep.mubr.f32.mxu0 0.0
    %2157 = vmatmul.mubr.f32.gmra.mrb[0].mxu0 %v1979
    %v2158 = vpop.f32.mrb[0].mxu0
    %v2159 = vadd.f32 0.0, %v2158
    %v2160 = vpop.f32.mrb[0].mxu0
    %2161 = vmatprep.mubr.f32.mxu0 0.0
    %2162 = vmatmul.mubr.f32.gmra.mrb[0].mxu0 %v1982
    %v2163 = vpop.f32.mrb[0].mxu0
    %v2164 = vadd.f32 0.0, %v2163
    %v2165 = vpop.f32.mrb[0].mxu0
    %2166 = vmatprep.mubr.f32.mxu0 0.0
    %2167 = vmatmul.mubr.f32.gmra.mrb[0].mxu0 %v1985
    %v2168 = vpop.f32.mrb[0].mxu0
    %v2169 = vadd.f32 0.0, %v2168
    %v2170 = vpop.f32.mrb[0].mxu0
    %2171 = vmatprep.mubr.f32.mxu0 0.0
    %2172 = vmatmul.mubr.f32.gmra.mrb[0].mxu0 %v1988
    %v2173 = vpop.f32.mrb[0].mxu0
    %v2174 = vadd.f32 0.0, %v2173
    %v2175 = vpop.f32.mrb[0].mxu0
    %2176 = vmatprep.mubr.f32.mxu0 0.0
    %2177 = vmatmul.mubr.f32.gmra.mrb[0].mxu0 %v1991
    %v2178 = vpop.f32.mrb[0].mxu0
    %v2179 = vadd.f32 0.0, %v2178
    %v2180 = vpop.f32.mrb[0].mxu0
    %2181 = vmatprep.mubr.f32.mxu0 0.0
    %2182 = vmatmul.mubr.f32.gmra.mrb[0].mxu0 %v1994
    %v2183 = vpop.f32.mrb[0].mxu0
    %v2184 = vadd.f32 0.0, %v2183
    %v2185 = vpop.f32.mrb[0].mxu0
    %2186 = vmatprep.mubr.f32.mxu0 0.0
    %2187 = vmatmul.mubr.f32.gmra.mrb[0].mxu0 %v1997
    %v2188 = vpop.f32.mrb[0].mxu0
    %v2189 = vadd.f32 0.0, %v2188
    %v2190 = vpop.f32.mrb[0].mxu0
    %2191 = vmatprep.mubr.f32.mxu0 0.0
    %2192 = vmatmul.mubr.f32.gmra.mrb[0].mxu0 %v2000
    %v2193 = vpop.f32.mrb[0].mxu0
    %v2194 = vadd.f32 0.0, %v2193
    %v2195 = vpop.f32.mrb[0].mxu0
    %2196 = vmatprep.mubr.f32.mxu0 0.0
    %2197 = vmatmul.mubr.f32.gmra.mrb[0].mxu0 %v2003
    %v2198 = vpop.f32.mrb[0].mxu0
    %v2199 = vadd.f32 0.0, %v2198
    %v2200 = vpop.f32.mrb[0].mxu0
    %2201 = vmatprep.mubr.f32.mxu0 0.0
    %2202 = vmatmul.mubr.f32.gmra.mrb[0].mxu0 %v2006
    %v2203 = vpop.f32.mrb[0].mxu0
    %v2204 = vadd.f32 0.0, %v2203
    %v2205 = vpop.f32.mrb[0].mxu0
    %2206 = vmatprep.mubr.f32.mxu0 0.0
    %2207 = vmatmul.mubr.f32.gmra.mrb[0].mxu0 %v2009
    %v2208 = vpop.f32.mrb[0].mxu0
    %v2209 = vadd.f32 0.0, %v2208
    %v2210 = vpop.f32.mrb[0].mxu0
    %2211 = vmatprep.mubr.f32.mxu0 0.0
    %2212 = vmatmul.mubr.f32.gmra.mrb[0].mxu0 %v2012
    %v2213 = vpop.f32.mrb[0].mxu0
    %v2214 = vadd.f32 0.0, %v2213
    %v2215 = vpop.f32.mrb[0].mxu0
    %2216 = vmatprep.mubr.f32.mxu0 0.0
    %2217 = vmatmul.mubr.f32.gmra.mrb[0].mxu0 %v2015
    %v2218 = vpop.f32.mrb[0].mxu0
    %v2219 = vadd.f32 0.0, %v2218
    %v2220 = vpop.f32.mrb[0].mxu0
    %2221 = vmatprep.mubr.f32.mxu0 0.0
    %2222 = vmatmul.mubr.f32.gmra.mrb[0].mxu0 %v2018
    %v2223 = vpop.f32.mrb[0].mxu0
    %v2224 = vadd.f32 0.0, %v2223
    %v2225 = vpop.f32.mrb[0].mxu0
    %2226 = vmatprep.mubr.f32.mxu0 0.0
    %2227 = vmatmul.mubr.f32.gmra.mrb[0].mxu0 %v2021
    %v2228 = vpop.f32.mrb[0].mxu0
    %v2229 = vadd.f32 0.0, %v2228
    %v2230 = vpop.f32.mrb[0].mxu0
    %2231 = vmatprep.mubr.f32.mxu0 0.0
    %2232 = vmatmul.mubr.f32.gmra.mrb[0].mxu0 %v2024
    %v2233 = vpop.f32.mrb[0].mxu0
    %v2234 = vadd.f32 0.0, %v2233
    %v2235 = vpop.f32.mrb[0].mxu0
    %2236 = vmatprep.mubr.f32.mxu0 0.0
    %2237 = vmatmul.mubr.f32.gmra.mrb[0].mxu0 %v2027
    %v2238 = vpop.f32.mrb[0].mxu0
    %v2239 = vadd.f32 0.0, %v2238
    %v2240 = vpop.f32.mrb[0].mxu0
    %2241 = vmatprep.mubr.f32.mxu0 0.0
    %2242 = vmatmul.mubr.f32.gmra.mrb[0].mxu0 %v2030
    %v2243 = vpop.f32.mrb[0].mxu0
    %v2244 = vadd.f32 0.0, %v2243
    %v2245 = vpop.f32.mrb[0].mxu0
    %2246 = vmatprep.mubr.f32.mxu0 0.0
    %2247 = vmatmul.mubr.f32.gmra.mrb[0].mxu0 %v2033
    %v2248 = vpop.f32.mrb[0].mxu0
    %v2249 = vadd.f32 0.0, %v2248
    %v2250 = vpop.f32.mrb[0].mxu0
    %2251 = vmatprep.mubr.f32.mxu0 0.0
    %2252 = vmatmul.mubr.f32.gmra.mrb[0].mxu0 %v2036
    %v2253 = vpop.f32.mrb[0].mxu0
    %v2254 = vadd.f32 0.0, %v2253
    %v2255 = vpop.f32.mrb[0].mxu0
    %2256 = vmatprep.mubr.f32.mxu0 0.0
    %2257 = vmatmul.mubr.f32.gmra.mrb[0].mxu0 %v2039
    %v2258 = vpop.f32.mrb[0].mxu0
    %v2259 = vadd.f32 0.0, %v2258
    %v2260 = vpop.f32.mrb[0].mxu0
    %2261 = vmatprep.mubr.f32.mxu0 0.0
    %2262 = vmatmul.mubr.f32.gmra.mrb[0].mxu0 %v2042
    %v2263 = vpop.f32.mrb[0].mxu0
    %v2264 = vadd.f32 0.0, %v2263
    %v2265 = vpop.f32.mrb[0].mxu0
    %2266 = vmatprep.mubr.f32.mxu0 0.0
    %2267 = vmatmul.mubr.f32.gmra.mrb[0].mxu0 %v2045
    %v2268 = vpop.f32.mrb[0].mxu0
    %v2269 = vadd.f32 0.0, %v2268
    %v2270 = vpop.f32.mrb[0].mxu0
    %2271 = vmatprep.mubr.f32.mxu0 0.0
    %2272 = vmatmul.mubr.f32.gmra.mrb[0].mxu0 %v2048
    %v2273 = vpop.f32.mrb[0].mxu0
    %v2274 = vadd.f32 0.0, %v2273
    %v2275 = vpop.f32.mrb[0].mxu0
    %2276 = vmatprep.mubr.f32.mxu0 0.0
    %2277 = vmatmul.mubr.f32.gmra.mrb[0].mxu0 %v2051
    %v2278 = vpop.f32.mrb[0].mxu0
    %v2279 = vadd.f32 0.0, %v2278
    %v2280 = vpop.f32.mrb[0].mxu0
    %2281 = vdwg.mxu0
    %v2282 = vld [vmem:[%s6] sm:$0xf]
    %v2283 = vld [vmem:[%s6 + $0x4] sm:$0xf]
    %v2284 = vld [vmem:[%s6 + $0x8] sm:$0xf]
    %v2285 = vld [vmem:[%s6 + $0xc] sm:$0xf]
    %v2286 = vld [vmem:[%s6 + $0x10] sm:$0xf]
    %v2287 = vld [vmem:[%s6 + $0x14] sm:$0xf]
    %v2288 = vld [vmem:[%s6 + $0x18] sm:$0xf]
    %v2289 = vld [vmem:[%s6 + $0x1c] sm:$0xf]
    %v2298 = vunpack.c.l.b16 %v2282
    %v2299 = vunpack.c.l.b16 %v2283
    %v2300 = vunpack.c.l.b16 %v2284
    %v2301 = vunpack.c.l.b16 %v2285
    %v2302 = vunpack.c.l.b16 %v2286
    %v2303 = vunpack.c.l.b16 %v2287
    %v2304 = vunpack.c.l.b16 %v2288
    %v2305 = vunpack.c.l.b16 %v2289
    %v2306 = vpack.c.b16 %v2299, %v2298
    %v2307 = vpack.c.b16 %v2301, %v2300
    %v2308 = vpack.c.b16 %v2303, %v2302
    %v2309 = vpack.c.b16 %v2305, %v2304
    %2314 = vmatprep.subr.bf16.mxu0 0
    %2315 = vmatpush1.bf16.msra.mxu0 %v2306
    %2316 = vmatprep.subr.bf16.mxu0 0
    %2317 = vmatpush1.bf16.msra.mxu0 %v2307
    %2318 = vmatprep.subr.bf16.mxu0 0
    %2319 = vmatpush1.bf16.msra.mxu0 %v2308
    %2320 = vmatprep.subr.bf16.mxu0 0
    %2321 = vmatpush1.bf16.msra.mxu0 %v2309
    %2322 = vmatprep.subr.bf16.mxu0 0
    %2323 = vmatpush1.bf16.msra.mxu0 0
    %2324 = vmatprep.subr.bf16.mxu0 0
    %2325 = vmatpush1.bf16.msra.mxu0 0
    %2326 = vmatprep.subr.bf16.mxu0 0
    %2327 = vmatpush1.bf16.msra.mxu0 0
    %2328 = vmatprep.subr.bf16.mxu0 0
    %2329 = vmatpush1.bf16.msra.mxu0 0
    %2330 = vmatprep.subr.bf16.mxu0 0
    %2331 = vmatpush1.bf16.msra.mxu0 0
    %2332 = vmatprep.subr.bf16.mxu0 0
    %2333 = vmatpush1.bf16.msra.mxu0 0
    %2334 = vmatprep.subr.bf16.mxu0 0
    %2335 = vmatpush1.bf16.msra.mxu0 0
    %2336 = vmatprep.subr.bf16.mxu0 0
    %2337 = vmatpush1.bf16.msra.mxu0 0
    %2338 = vmatprep.subr.bf16.mxu0 0
    %2339 = vmatpush1.bf16.msra.mxu0 0
    %2340 = vmatprep.subr.bf16.mxu0 0
    %2341 = vmatpush1.bf16.msra.mxu0 0
    %2342 = vmatprep.subr.bf16.mxu0 0
    %2343 = vmatpush1.bf16.msra.mxu0 0
    %2344 = vmatprep.subr.bf16.mxu0 0
    %2345 = vmatpush1.bf16.msra.mxu0 0
    %2346 = vmatprep.mubr.bf16.mxu0 0
    %2347 = vmatmul.mubr.bf16.gmra.mrb[0].mxu0 %v208
    %v2348 = vpop.f32.mrb[0].mxu0
    %v2349 = vadd.f32 0.0, %v2348
    %v2350 = vpop.f32.mrb[0].mxu0
    %v2351 = vpop.f32.mrb[0].mxu0
    %v2352 = vadd.f32 0.0, %v2351
    %v2353 = vpop.f32.mrb[0].mxu0
    %2354 = vmatprep.mubr.bf16.mxu0 0
    %2355 = vmatmul.mubr.bf16.gmra.mrb[0].mxu0 %v211
    %v2356 = vpop.f32.mrb[0].mxu0
    %v2357 = vadd.f32 0.0, %v2356
    %v2358 = vpop.f32.mrb[0].mxu0
    %v2359 = vpop.f32.mrb[0].mxu0
    %v2360 = vadd.f32 0.0, %v2359
    %v2361 = vpop.f32.mrb[0].mxu0
    %2362 = vmatprep.mubr.bf16.mxu0 0
    %2363 = vmatmul.mubr.bf16.gmra.mrb[0].mxu0 %v214
    %v2364 = vpop.f32.mrb[0].mxu0
    %v2365 = vadd.f32 0.0, %v2364
    %v2366 = vpop.f32.mrb[0].mxu0
    %v2367 = vpop.f32.mrb[0].mxu0
    %v2368 = vadd.f32 0.0, %v2367
    %v2369 = vpop.f32.mrb[0].mxu0
    %2370 = vmatprep.mubr.bf16.mxu0 0
    %2371 = vmatmul.mubr.bf16.gmra.mrb[0].mxu0 %v217
    %v2372 = vpop.f32.mrb[0].mxu0
    %v2373 = vadd.f32 0.0, %v2372
    %v2374 = vpop.f32.mrb[0].mxu0
    %v2375 = vpop.f32.mrb[0].mxu0
    %v2376 = vadd.f32 0.0, %v2375
    %v2377 = vpop.f32.mrb[0].mxu0
    %2378 = vmatprep.mubr.bf16.mxu0 0
    %2379 = vmatmul.mubr.bf16.gmra.mrb[0].mxu0 %v220
    %v2380 = vpop.f32.mrb[0].mxu0
    %v2381 = vadd.f32 0.0, %v2380
    %v2382 = vpop.f32.mrb[0].mxu0
    %v2383 = vpop.f32.mrb[0].mxu0
    %v2384 = vadd.f32 0.0, %v2383
    %v2385 = vpop.f32.mrb[0].mxu0
    %2386 = vmatprep.mubr.bf16.mxu0 0
    %2387 = vmatmul.mubr.bf16.gmra.mrb[0].mxu0 %v223
    %v2388 = vpop.f32.mrb[0].mxu0
    %v2389 = vadd.f32 0.0, %v2388
    %v2390 = vpop.f32.mrb[0].mxu0
    %v2391 = vpop.f32.mrb[0].mxu0
    %v2392 = vadd.f32 0.0, %v2391
    %v2393 = vpop.f32.mrb[0].mxu0
    %2394 = vmatprep.mubr.bf16.mxu0 0
    %2395 = vmatmul.mubr.bf16.gmra.mrb[0].mxu0 %v226
    %v2396 = vpop.f32.mrb[0].mxu0
    %v2397 = vadd.f32 0.0, %v2396
    %v2398 = vpop.f32.mrb[0].mxu0
    %v2399 = vpop.f32.mrb[0].mxu0
    %v2400 = vadd.f32 0.0, %v2399
    %v2401 = vpop.f32.mrb[0].mxu0
    %2402 = vmatprep.mubr.bf16.mxu0 0
    %2403 = vmatmul.mubr.bf16.gmra.mrb[0].mxu0 %v229
    %v2404 = vpop.f32.mrb[0].mxu0
    %v2405 = vadd.f32 0.0, %v2404
    %v2406 = vpop.f32.mrb[0].mxu0
    %v2407 = vpop.f32.mrb[0].mxu0
    %v2408 = vadd.f32 0.0, %v2407
    %v2409 = vpop.f32.mrb[0].mxu0
    %2410 = vmatprep.mubr.bf16.mxu0 0
    %2411 = vmatmul.mubr.bf16.gmra.mrb[0].mxu0 %v232
    %v2412 = vpop.f32.mrb[0].mxu0
    %v2413 = vadd.f32 0.0, %v2412
    %v2414 = vpop.f32.mrb[0].mxu0
    %v2415 = vpop.f32.mrb[0].mxu0
    %v2416 = vadd.f32 0.0, %v2415
    %v2417 = vpop.f32.mrb[0].mxu0
    %2418 = vmatprep.mubr.bf16.mxu0 0
    %2419 = vmatmul.mubr.bf16.gmra.mrb[0].mxu0 %v235
    %v2420 = vpop.f32.mrb[0].mxu0
    %v2421 = vadd.f32 0.0, %v2420
    %v2422 = vpop.f32.mrb[0].mxu0
    %v2423 = vpop.f32.mrb[0].mxu0
    %v2424 = vadd.f32 0.0, %v2423
    %v2425 = vpop.f32.mrb[0].mxu0
    %2426 = vmatprep.mubr.bf16.mxu0 0
    %2427 = vmatmul.mubr.bf16.gmra.mrb[0].mxu0 %v238
    %v2428 = vpop.f32.mrb[0].mxu0
    %v2429 = vadd.f32 0.0, %v2428
    %v2430 = vpop.f32.mrb[0].mxu0
    %v2431 = vpop.f32.mrb[0].mxu0
    %v2432 = vadd.f32 0.0, %v2431
    %v2433 = vpop.f32.mrb[0].mxu0
    %2434 = vmatprep.mubr.bf16.mxu0 0
    %2435 = vmatmul.mubr.bf16.gmra.mrb[0].mxu0 %v241
    %v2436 = vpop.f32.mrb[0].mxu0
    %v2437 = vadd.f32 0.0, %v2436
    %v2438 = vpop.f32.mrb[0].mxu0
    %v2439 = vpop.f32.mrb[0].mxu0
    %v2440 = vadd.f32 0.0, %v2439
    %v2441 = vpop.f32.mrb[0].mxu0
    %2442 = vmatprep.mubr.bf16.mxu0 0
    %2443 = vmatmul.mubr.bf16.gmra.mrb[0].mxu0 %v244
    %v2444 = vpop.f32.mrb[0].mxu0
    %v2445 = vadd.f32 0.0, %v2444
    %v2446 = vpop.f32.mrb[0].mxu0
    %v2447 = vpop.f32.mrb[0].mxu0
    %v2448 = vadd.f32 0.0, %v2447
    %v2449 = vpop.f32.mrb[0].mxu0
    %2450 = vmatprep.mubr.bf16.mxu0 0
    %2451 = vmatmul.mubr.bf16.gmra.mrb[0].mxu0 %v247
    %v2452 = vpop.f32.mrb[0].mxu0
    %v2453 = vadd.f32 0.0, %v2452
    %v2454 = vpop.f32.mrb[0].mxu0
    %v2455 = vpop.f32.mrb[0].mxu0
    %v2456 = vadd.f32 0.0, %v2455
    %v2457 = vpop.f32.mrb[0].mxu0
    %2458 = vmatprep.mubr.bf16.mxu0 0
    %2459 = vmatmul.mubr.bf16.gmra.mrb[0].mxu0 %v250
    %v2460 = vpop.f32.mrb[0].mxu0
    %v2461 = vadd.f32 0.0, %v2460
    %v2462 = vpop.f32.mrb[0].mxu0
    %v2463 = vpop.f32.mrb[0].mxu0
    %v2464 = vadd.f32 0.0, %v2463
    %v2465 = vpop.f32.mrb[0].mxu0
    %2466 = vmatprep.mubr.bf16.mxu0 0
    %2467 = vmatmul.mubr.bf16.gmra.mrb[0].mxu0 %v253
    %v2468 = vpop.f32.mrb[0].mxu0
    %v2469 = vadd.f32 0.0, %v2468
    %v2470 = vpop.f32.mrb[0].mxu0
    %v2471 = vpop.f32.mrb[0].mxu0
    %v2472 = vadd.f32 0.0, %v2471
    %v2473 = vpop.f32.mrb[0].mxu0
    %2474 = vdwg.mxu0
    %v2475 = vmul.f32 %v2349, %v2124
    %v2476 = vmul.f32 %v2352, %v2129
    %v2477 = vmul.f32 %v2357, %v2134
    %v2478 = vmul.f32 %v2360, %v2139
    %v2479 = vmul.f32 %v2365, %v2144
    %v2480 = vmul.f32 %v2368, %v2149
    %v2481 = vmul.f32 %v2373, %v2154
    %v2482 = vmul.f32 %v2376, %v2159
    %v2483 = vmul.f32 %v2381, %v2164
    %v2484 = vmul.f32 %v2384, %v2169
    %v2485 = vmul.f32 %v2389, %v2174
    %v2486 = vmul.f32 %v2392, %v2179
    %v2487 = vmul.f32 %v2397, %v2184
    %v2488 = vmul.f32 %v2400, %v2189
    %v2489 = vmul.f32 %v2405, %v2194
    %v2490 = vmul.f32 %v2408, %v2199
    %v2491 = vmul.f32 %v2413, %v2204
    %v2492 = vmul.f32 %v2416, %v2209
    %v2493 = vmul.f32 %v2421, %v2214
    %v2494 = vmul.f32 %v2424, %v2219
    %v2495 = vmul.f32 %v2429, %v2224
    %v2496 = vmul.f32 %v2432, %v2229
    %v2497 = vmul.f32 %v2437, %v2234
    %v2498 = vmul.f32 %v2440, %v2239
    %v2499 = vmul.f32 %v2445, %v2244
    %v2500 = vmul.f32 %v2448, %v2249
    %v2501 = vmul.f32 %v2453, %v2254
    %v2502 = vmul.f32 %v2456, %v2259
    %v2503 = vmul.f32 %v2461, %v2264
    %v2504 = vmul.f32 %v2464, %v2269
    %v2505 = vmul.f32 %v2469, %v2274
    %v2506 = vmul.f32 %v2472, %v2279
    %v2507 = vpack.c.bf16 %v2476, %v2475
    %v2508 = vpack.c.bf16 %v2478, %v2477
    %v2509 = vpack.c.bf16 %v2480, %v2479
    %v2510 = vpack.c.bf16 %v2482, %v2481
    %v2511 = vpack.c.bf16 %v2484, %v2483
    %v2512 = vpack.c.bf16 %v2486, %v2485
    %v2513 = vpack.c.bf16 %v2488, %v2487
    %v2514 = vpack.c.bf16 %v2490, %v2489
    %v2515 = vpack.c.bf16 %v2492, %v2491
    %v2516 = vpack.c.bf16 %v2494, %v2493
    %v2517 = vpack.c.bf16 %v2496, %v2495
    %v2518 = vpack.c.bf16 %v2498, %v2497
    %v2519 = vpack.c.bf16 %v2500, %v2499
    %v2520 = vpack.c.bf16 %v2502, %v2501
    %v2521 = vpack.c.bf16 %v2504, %v2503
    %v2522 = vpack.c.bf16 %v2506, %v2505
    %2523 = vst [vmem:[#allocation2] sm:$0xff] %v2507
    %2524 = vst [vmem:[#allocation2 + $0x8] sm:$0xff] %v2508
    %2525 = vst [vmem:[#allocation2 + $0x10] sm:$0xff] %v2509
    %2526 = vst [vmem:[#allocation2 + $0x18] sm:$0xff] %v2510
    %2527 = vst [vmem:[#allocation2 + $0x20] sm:$0xff] %v2511
    %2528 = vst [vmem:[#allocation2 + $0x28] sm:$0xff] %v2512
    %2529 = vst [vmem:[#allocation2 + $0x30] sm:$0xff] %v2513
    %2530 = vst [vmem:[#allocation2 + $0x38] sm:$0xff] %v2514
    %2531 = vst [vmem:[#allocation2 + $0x40] sm:$0xff] %v2515
    %2532 = vst [vmem:[#allocation2 + $0x48] sm:$0xff] %v2516
    %2533 = vst [vmem:[#allocation2 + $0x50] sm:$0xff] %v2517
    %2534 = vst [vmem:[#allocation2 + $0x58] sm:$0xff] %v2518
    %2535 = vst [vmem:[#allocation2 + $0x60] sm:$0xff] %v2519
    %2536 = vst [vmem:[#allocation2 + $0x68] sm:$0xff] %v2520
    %2537 = vst [vmem:[#allocation2 + $0x70] sm:$0xff] %v2521
    %2538 = vst [vmem:[#allocation2 + $0x78] sm:$0xff] %v2522
  $region37: #{_lambda_.1} parent=0 // pred_fallthru
    _
  %v2539 = vld [vmem:[%s0] sm:$0xf]
  %v2540 = vld [vmem:[%s0 + $0x4] sm:$0xf]
  %v2541 = vld [vmem:[%s0 + $0x8] sm:$0xf]
  %v2542 = vld [vmem:[%s0 + $0xc] sm:$0xf]
  %v2543 = vld [vmem:[%s0 + $0x10] sm:$0xf]
  %v2544 = vld [vmem:[%s0 + $0x14] sm:$0xf]
  %v2545 = vld [vmem:[%s0 + $0x18] sm:$0xf]
  %v2546 = vld [vmem:[%s0 + $0x1c] sm:$0xf]
  %v2547 = vld [vmem:[%s0 + $0x20] sm:$0xf]
  %v2548 = vld [vmem:[%s0 + $0x24] sm:$0xf]
  %v2549 = vld [vmem:[%s0 + $0x28] sm:$0xf]
  %v2550 = vld [vmem:[%s0 + $0x2c] sm:$0xf]
  %v2551 = vld [vmem:[%s0 + $0x30] sm:$0xf]
  %v2552 = vld [vmem:[%s0 + $0x34] sm:$0xf]
  %v2553 = vld [vmem:[%s0 + $0x38] sm:$0xf]
  %v2554 = vld [vmem:[%s0 + $0x3c] sm:$0xf]
  %v2555 = vld [vmem:[%s0 + $0x40] sm:$0xf]
  %v2556 = vld [vmem:[%s0 + $0x44] sm:$0xf]
  %v2557 = vld [vmem:[%s0 + $0x48] sm:$0xf]
  %v2558 = vld [vmem:[%s0 + $0x4c] sm:$0xf]
  %v2559 = vld [vmem:[%s0 + $0x50] sm:$0xf]
  %v2560 = vld [vmem:[%s0 + $0x54] sm:$0xf]
  %v2561 = vld [vmem:[%s0 + $0x58] sm:$0xf]
  %v2562 = vld [vmem:[%s0 + $0x5c] sm:$0xf]
  %v2563 = vld [vmem:[%s0 + $0x60] sm:$0xf]
  %v2564 = vld [vmem:[%s0 + $0x64] sm:$0xf]
  %v2565 = vld [vmem:[%s0 + $0x68] sm:$0xf]
  %v2566 = vld [vmem:[%s0 + $0x6c] sm:$0xf]
  %v2567 = vld [vmem:[%s0 + $0x70] sm:$0xf]
  %v2568 = vld [vmem:[%s0 + $0x74] sm:$0xf]
  %v2569 = vld [vmem:[%s0 + $0x78] sm:$0xf]
  %v2570 = vld [vmem:[%s0 + $0x7c] sm:$0xf]
  %v2571 = vld [vmem:[%s1] sm:$0xff]
  %v2572 = vld [vmem:[%s1 + $0x8] sm:$0xf]
  %v2573 = vld [vmem:[%s1 + $0xc] sm:$0xff]
  %v2574 = vld [vmem:[%s1 + $0x14] sm:$0xf]
  %v2575 = vld [vmem:[%s1 + $0x18] sm:$0xff]
  %v2576 = vld [vmem:[%s1 + $0x20] sm:$0xf]
  %v2577 = vld [vmem:[%s1 + $0x24] sm:$0xff]
  %v2578 = vld [vmem:[%s1 + $0x2c] sm:$0xf]
  %v2579 = vld [vmem:[%s1 + $0x30] sm:$0xff]
  %v2580 = vld [vmem:[%s1 + $0x38] sm:$0xf]
  %v2581 = vld [vmem:[%s1 + $0x3c] sm:$0xff]
  %v2582 = vld [vmem:[%s1 + $0x44] sm:$0xf]
  %v2583 = vld [vmem:[%s1 + $0x48] sm:$0xff]
  %v2584 = vld [vmem:[%s1 + $0x50] sm:$0xf]
  %v2585 = vld [vmem:[%s1 + $0x54] sm:$0xff]
  %v2586 = vld [vmem:[%s1 + $0x5c] sm:$0xf]
  %v2587 = vld [vmem:[#allocation2] sm:$0xff]
  %v2588 = vld [vmem:[#allocation2 + $0x8] sm:$0xff]
  %v2589 = vld [vmem:[#allocation2 + $0x10] sm:$0xff]
  %v2590 = vld [vmem:[#allocation2 + $0x18] sm:$0xff]
  %v2591 = vld [vmem:[#allocation2 + $0x20] sm:$0xff]
  %v2592 = vld [vmem:[#allocation2 + $0x28] sm:$0xff]
  %v2593 = vld [vmem:[#allocation2 + $0x30] sm:$0xff]
  %v2594 = vld [vmem:[#allocation2 + $0x38] sm:$0xff]
  %v2595 = vld [vmem:[#allocation2 + $0x40] sm:$0xff]
  %v2596 = vld [vmem:[#allocation2 + $0x48] sm:$0xff]
  %v2597 = vld [vmem:[#allocation2 + $0x50] sm:$0xff]
  %v2598 = vld [vmem:[#allocation2 + $0x58] sm:$0xff]
  %v2599 = vld [vmem:[#allocation2 + $0x60] sm:$0xff]
  %v2600 = vld [vmem:[#allocation2 + $0x68] sm:$0xff]
  %v2601 = vld [vmem:[#allocation2 + $0x70] sm:$0xff]
  %v2602 = vld [vmem:[#allocation2 + $0x78] sm:$0xff]
  %v2603 = vld [vmem:[%s7] sm:$0xff]
  %v2604 = vld [vmem:[%s7 + $0x8] sm:$0xf]
  %v2605 = vld [vmem:[%s7 + $0xc] sm:$0xff]
  %v2606 = vld [vmem:[%s7 + $0x14] sm:$0xf]
  %v2607 = vld [vmem:[%s7 + $0x18] sm:$0xff]
  %v2608 = vld [vmem:[%s7 + $0x20] sm:$0xf]
  %v2609 = vld [vmem:[%s7 + $0x24] sm:$0xff]
  %v2610 = vld [vmem:[%s7 + $0x2c] sm:$0xf]
  %v2611 = vld [vmem:[%s7 + $0x30] sm:$0xff]
  %v2612 = vld [vmem:[%s7 + $0x38] sm:$0xf]
  %v2613 = vld [vmem:[%s7 + $0x3c] sm:$0xff]
  %v2614 = vld [vmem:[%s7 + $0x44] sm:$0xf]
  %v2615 = vld [vmem:[%s7 + $0x48] sm:$0xff]
  %v2616 = vld [vmem:[%s7 + $0x50] sm:$0xf]
  %v2617 = vld [vmem:[%s7 + $0x54] sm:$0xff]
  %v2618 = vld [vmem:[%s7 + $0x5c] sm:$0xf]
  %v2619 = vld [vmem:[%s7 + $0x60] sm:$0xff]
  %v2620 = vld [vmem:[%s7 + $0x68] sm:$0xf]
  %v2621 = vld [vmem:[%s7 + $0x6c] sm:$0xff]
  %v2622 = vld [vmem:[%s7 + $0x74] sm:$0xf]
  %v2623 = vld [vmem:[%s7 + $0x78] sm:$0xff]
  %v2624 = vld [vmem:[%s7 + $0x80] sm:$0xf]
  %v2625 = vld [vmem:[%s7 + $0x84] sm:$0xff]
  %v2626 = vld [vmem:[%s7 + $0x8c] sm:$0xf]
  %v2627 = vld [vmem:[%s7 + $0x90] sm:$0xff]
  %v2628 = vld [vmem:[%s7 + $0x98] sm:$0xf]
  %v2629 = vld [vmem:[%s7 + $0x9c] sm:$0xff]
  %v2630 = vld [vmem:[%s7 + $0xa4] sm:$0xf]
  %v2631 = vld [vmem:[%s7 + $0xa8] sm:$0xff]
  %v2632 = vld [vmem:[%s7 + $0xb0] sm:$0xf]
  %v2633 = vld [vmem:[%s7 + $0xb4] sm:$0xff]
  %v2634 = vld [vmem:[%s7 + $0xbc] sm:$0xf]
  %v2667 = vunpack.c.l.b16 %v2603
  %v2668 = vunpack.c.h.b16 %v2603
  %v2669 = vunpack.c.l.b16 %v2604
  %v2670 = vunpack.c.l.b16 %v2605
  %v2671 = vunpack.c.h.b16 %v2605
  %v2672 = vunpack.c.l.b16 %v2606
  %v2673 = vunpack.c.l.b16 %v2607
  %v2674 = vunpack.c.h.b16 %v2607
  %v2675 = vunpack.c.l.b16 %v2608
  %v2676 = vunpack.c.l.b16 %v2609
  %v2677 = vunpack.c.h.b16 %v2609
  %v2678 = vunpack.c.l.b16 %v2610
  %v2679 = vunpack.c.l.b16 %v2611
  %v2680 = vunpack.c.h.b16 %v2611
  %v2681 = vunpack.c.l.b16 %v2612
  %v2682 = vunpack.c.l.b16 %v2613
  %v2683 = vunpack.c.h.b16 %v2613
  %v2684 = vunpack.c.l.b16 %v2614
  %v2685 = vunpack.c.l.b16 %v2615
  %v2686 = vunpack.c.h.b16 %v2615
  %v2687 = vunpack.c.l.b16 %v2616
  %v2688 = vunpack.c.l.b16 %v2617
  %v2689 = vunpack.c.h.b16 %v2617
  %v2690 = vunpack.c.l.b16 %v2618
  %v2691 = vunpack.c.l.b16 %v2619
  %v2692 = vunpack.c.h.b16 %v2619
  %v2693 = vunpack.c.l.b16 %v2620
  %v2694 = vunpack.c.l.b16 %v2621
  %v2695 = vunpack.c.h.b16 %v2621
  %v2696 = vunpack.c.l.b16 %v2622
  %v2697 = vunpack.c.l.b16 %v2623
  %v2698 = vunpack.c.h.b16 %v2623
  %v2699 = vunpack.c.l.b16 %v2624
  %v2700 = vunpack.c.l.b16 %v2625
  %v2701 = vunpack.c.h.b16 %v2625
  %v2702 = vunpack.c.l.b16 %v2626
  %v2703 = vunpack.c.l.b16 %v2627
  %v2704 = vunpack.c.h.b16 %v2627
  %v2705 = vunpack.c.l.b16 %v2628
  %v2706 = vunpack.c.l.b16 %v2629
  %v2707 = vunpack.c.h.b16 %v2629
  %v2708 = vunpack.c.l.b16 %v2630
  %v2709 = vunpack.c.l.b16 %v2631
  %v2710 = vunpack.c.h.b16 %v2631
  %v2711 = vunpack.c.l.b16 %v2632
  %v2712 = vunpack.c.l.b16 %v2633
  %v2713 = vunpack.c.h.b16 %v2633
  %v2714 = vunpack.c.l.b16 %v2634
  %v2715 = vpack.c.b16 %v2670, %v2667
  %v2716 = vpack.c.b16 %v2671, %v2668
  %v2717 = vpack.c.b16 %v2672, %v2669
  %v2718 = vpack.c.b16 %v2676, %v2673
  %v2719 = vpack.c.b16 %v2677, %v2674
  %v2720 = vpack.c.b16 %v2678, %v2675
  %v2721 = vpack.c.b16 %v2682, %v2679
  %v2722 = vpack.c.b16 %v2683, %v2680
  %v2723 = vpack.c.b16 %v2684, %v2681
  %v2724 = vpack.c.b16 %v2688, %v2685
  %v2725 = vpack.c.b16 %v2689, %v2686
  %v2726 = vpack.c.b16 %v2690, %v2687
  %v2727 = vpack.c.b16 %v2694, %v2691
  %v2728 = vpack.c.b16 %v2695, %v2692
  %v2729 = vpack.c.b16 %v2696, %v2693
  %v2730 = vpack.c.b16 %v2700, %v2697
  %v2731 = vpack.c.b16 %v2701, %v2698
  %v2732 = vpack.c.b16 %v2702, %v2699
  %v2733 = vpack.c.b16 %v2706, %v2703
  %v2734 = vpack.c.b16 %v2707, %v2704
  %v2735 = vpack.c.b16 %v2708, %v2705
  %v2736 = vpack.c.b16 %v2712, %v2709
  %v2737 = vpack.c.b16 %v2713, %v2710
  %v2738 = vpack.c.b16 %v2714, %v2711
  %2763 = vmatprep.subr.bf16.mxu0 %v2716
  %2764 = vmatpush1.bf16.msra.mxu0 %v2715
  %2765 = vmatprep.subr.bf16.mxu0 %v2719
  %2766 = vmatpush1.bf16.msra.mxu0 %v2718
  %2767 = vmatprep.subr.bf16.mxu0 %v2722
  %2768 = vmatpush1.bf16.msra.mxu0 %v2721
  %2769 = vmatprep.subr.bf16.mxu0 %v2725
  %2770 = vmatpush1.bf16.msra.mxu0 %v2724
  %2771 = vmatprep.subr.bf16.mxu0 %v2728
  %2772 = vmatpush1.bf16.msra.mxu0 %v2727
  %2773 = vmatprep.subr.bf16.mxu0 %v2731
  %2774 = vmatpush1.bf16.msra.mxu0 %v2730
  %2775 = vmatprep.subr.bf16.mxu0 %v2734
  %2776 = vmatpush1.bf16.msra.mxu0 %v2733
  %2777 = vmatprep.subr.bf16.mxu0 %v2737
  %2778 = vmatpush1.bf16.msra.mxu0 %v2736
  %2779 = vmatprep.subr.bf16.mxu0 0
  %2780 = vmatpush1.bf16.msra.mxu0 0
  %2781 = vmatprep.subr.bf16.mxu0 0
  %2782 = vmatpush1.bf16.msra.mxu0 0
  %2783 = vmatprep.subr.bf16.mxu0 0
  %2784 = vmatpush1.bf16.msra.mxu0 0
  %2785 = vmatprep.subr.bf16.mxu0 0
  %2786 = vmatpush1.bf16.msra.mxu0 0
  %2787 = vmatprep.subr.bf16.mxu0 0
  %2788 = vmatpush1.bf16.msra.mxu0 0
  %2789 = vmatprep.subr.bf16.mxu0 0
  %2790 = vmatpush1.bf16.msra.mxu0 0
  %2791 = vmatprep.subr.bf16.mxu0 0
  %2792 = vmatpush1.bf16.msra.mxu0 0
  %2793 = vmatprep.subr.bf16.mxu0 0
  %2794 = vmatpush1.bf16.msra.mxu0 0
  %2795 = vmatprep.mubr.bf16.mxu0 0
  %2796 = vmatmul.mubr.bf16.gmra.mrb[0].mxu0 %v2587
  %v2797 = vpop.f32.mrb[0].mxu0
  %v2798 = vadd.f32 0.0, %v2797
  %v2799 = vpop.f32.mrb[0].mxu0
  %v2800 = vadd.f32 0.0, %v2799
  %v2801 = vpop.f32.mrb[0].mxu0
  %v2802 = vadd.f32 0.0, %v2801
  %v2803 = vpop.f32.mrb[0].mxu0
  %v2804 = vadd.f32 0.0, %v2803
  %2805 = vmatprep.mubr.bf16.mxu0 0
  %2806 = vmatmul.mubr.bf16.gmra.mrb[0].mxu0 %v2588
  %v2807 = vpop.f32.mrb[0].mxu0
  %v2808 = vadd.f32 0.0, %v2807
  %v2809 = vpop.f32.mrb[0].mxu0
  %v2810 = vadd.f32 0.0, %v2809
  %v2811 = vpop.f32.mrb[0].mxu0
  %v2812 = vadd.f32 0.0, %v2811
  %v2813 = vpop.f32.mrb[0].mxu0
  %v2814 = vadd.f32 0.0, %v2813
  %2815 = vmatprep.mubr.bf16.mxu0 0
  %2816 = vmatmul.mubr.bf16.gmra.mrb[0].mxu0 %v2589
  %v2817 = vpop.f32.mrb[0].mxu0
  %v2818 = vadd.f32 0.0, %v2817
  %v2819 = vpop.f32.mrb[0].mxu0
  %v2820 = vadd.f32 0.0, %v2819
  %v2821 = vpop.f32.mrb[0].mxu0
  %v2822 = vadd.f32 0.0, %v2821
  %v2823 = vpop.f32.mrb[0].mxu0
  %v2824 = vadd.f32 0.0, %v2823
  %2825 = vmatprep.mubr.bf16.mxu0 0
  %2826 = vmatmul.mubr.bf16.gmra.mrb[0].mxu0 %v2590
  %v2827 = vpop.f32.mrb[0].mxu0
  %v2828 = vadd.f32 0.0, %v2827
  %v2829 = vpop.f32.mrb[0].mxu0
  %v2830 = vadd.f32 0.0, %v2829
  %v2831 = vpop.f32.mrb[0].mxu0
  %v2832 = vadd.f32 0.0, %v2831
  %v2833 = vpop.f32.mrb[0].mxu0
  %v2834 = vadd.f32 0.0, %v2833
  %2835 = vmatprep.mubr.bf16.mxu0 0
  %2836 = vmatmul.mubr.bf16.gmra.mrb[0].mxu0 %v2591
  %v2837 = vpop.f32.mrb[0].mxu0
  %v2838 = vadd.f32 0.0, %v2837
  %v2839 = vpop.f32.mrb[0].mxu0
  %v2840 = vadd.f32 0.0, %v2839
  %v2841 = vpop.f32.mrb[0].mxu0
  %v2842 = vadd.f32 0.0, %v2841
  %v2843 = vpop.f32.mrb[0].mxu0
  %v2844 = vadd.f32 0.0, %v2843
  %2845 = vmatprep.mubr.bf16.mxu0 0
  %2846 = vmatmul.mubr.bf16.gmra.mrb[0].mxu0 %v2592
  %v2847 = vpop.f32.mrb[0].mxu0
  %v2848 = vadd.f32 0.0, %v2847
  %v2849 = vpop.f32.mrb[0].mxu0
  %v2850 = vadd.f32 0.0, %v2849
  %v2851 = vpop.f32.mrb[0].mxu0
  %v2852 = vadd.f32 0.0, %v2851
  %v2853 = vpop.f32.mrb[0].mxu0
  %v2854 = vadd.f32 0.0, %v2853
  %2855 = vmatprep.mubr.bf16.mxu0 0
  %2856 = vmatmul.mubr.bf16.gmra.mrb[0].mxu0 %v2593
  %v2857 = vpop.f32.mrb[0].mxu0
  %v2858 = vadd.f32 0.0, %v2857
  %v2859 = vpop.f32.mrb[0].mxu0
  %v2860 = vadd.f32 0.0, %v2859
  %v2861 = vpop.f32.mrb[0].mxu0
  %v2862 = vadd.f32 0.0, %v2861
  %v2863 = vpop.f32.mrb[0].mxu0
  %v2864 = vadd.f32 0.0, %v2863
  %2865 = vmatprep.mubr.bf16.mxu0 0
  %2866 = vmatmul.mubr.bf16.gmra.mrb[0].mxu0 %v2594
  %v2867 = vpop.f32.mrb[0].mxu0
  %v2868 = vadd.f32 0.0, %v2867
  %v2869 = vpop.f32.mrb[0].mxu0
  %v2870 = vadd.f32 0.0, %v2869
  %v2871 = vpop.f32.mrb[0].mxu0
  %v2872 = vadd.f32 0.0, %v2871
  %v2873 = vpop.f32.mrb[0].mxu0
  %v2874 = vadd.f32 0.0, %v2873
  %2875 = vmatprep.mubr.bf16.mxu0 0
  %2876 = vmatmul.mubr.bf16.gmra.mrb[0].mxu0 %v2595
  %v2877 = vpop.f32.mrb[0].mxu0
  %v2878 = vadd.f32 0.0, %v2877
  %v2879 = vpop.f32.mrb[0].mxu0
  %v2880 = vadd.f32 0.0, %v2879
  %v2881 = vpop.f32.mrb[0].mxu0
  %v2882 = vadd.f32 0.0, %v2881
  %v2883 = vpop.f32.mrb[0].mxu0
  %v2884 = vadd.f32 0.0, %v2883
  %2885 = vmatprep.mubr.bf16.mxu0 0
  %2886 = vmatmul.mubr.bf16.gmra.mrb[0].mxu0 %v2596
  %v2887 = vpop.f32.mrb[0].mxu0
  %v2888 = vadd.f32 0.0, %v2887
  %v2889 = vpop.f32.mrb[0].mxu0
  %v2890 = vadd.f32 0.0, %v2889
  %v2891 = vpop.f32.mrb[0].mxu0
  %v2892 = vadd.f32 0.0, %v2891
  %v2893 = vpop.f32.mrb[0].mxu0
  %v2894 = vadd.f32 0.0, %v2893
  %2895 = vmatprep.mubr.bf16.mxu0 0
  %2896 = vmatmul.mubr.bf16.gmra.mrb[0].mxu0 %v2597
  %v2897 = vpop.f32.mrb[0].mxu0
  %v2898 = vadd.f32 0.0, %v2897
  %v2899 = vpop.f32.mrb[0].mxu0
  %v2900 = vadd.f32 0.0, %v2899
  %v2901 = vpop.f32.mrb[0].mxu0
  %v2902 = vadd.f32 0.0, %v2901
  %v2903 = vpop.f32.mrb[0].mxu0
  %v2904 = vadd.f32 0.0, %v2903
  %2905 = vmatprep.mubr.bf16.mxu0 0
  %2906 = vmatmul.mubr.bf16.gmra.mrb[0].mxu0 %v2598
  %v2907 = vpop.f32.mrb[0].mxu0
  %v2908 = vadd.f32 0.0, %v2907
  %v2909 = vpop.f32.mrb[0].mxu0
  %v2910 = vadd.f32 0.0, %v2909
  %v2911 = vpop.f32.mrb[0].mxu0
  %v2912 = vadd.f32 0.0, %v2911
  %v2913 = vpop.f32.mrb[0].mxu0
  %v2914 = vadd.f32 0.0, %v2913
  %2915 = vmatprep.mubr.bf16.mxu0 0
  %2916 = vmatmul.mubr.bf16.gmra.mrb[0].mxu0 %v2599
  %v2917 = vpop.f32.mrb[0].mxu0
  %v2918 = vadd.f32 0.0, %v2917
  %v2919 = vpop.f32.mrb[0].mxu0
  %v2920 = vadd.f32 0.0, %v2919
  %v2921 = vpop.f32.mrb[0].mxu0
  %v2922 = vadd.f32 0.0, %v2921
  %v2923 = vpop.f32.mrb[0].mxu0
  %v2924 = vadd.f32 0.0, %v2923
  %2925 = vmatprep.mubr.bf16.mxu0 0
  %2926 = vmatmul.mubr.bf16.gmra.mrb[0].mxu0 %v2600
  %v2927 = vpop.f32.mrb[0].mxu0
  %v2928 = vadd.f32 0.0, %v2927
  %v2929 = vpop.f32.mrb[0].mxu0
  %v2930 = vadd.f32 0.0, %v2929
  %v2931 = vpop.f32.mrb[0].mxu0
  %v2932 = vadd.f32 0.0, %v2931
  %v2933 = vpop.f32.mrb[0].mxu0
  %v2934 = vadd.f32 0.0, %v2933
  %2935 = vmatprep.mubr.bf16.mxu0 0
  %2936 = vmatmul.mubr.bf16.gmra.mrb[0].mxu0 %v2601
  %v2937 = vpop.f32.mrb[0].mxu0
  %v2938 = vadd.f32 0.0, %v2937
  %v2939 = vpop.f32.mrb[0].mxu0
  %v2940 = vadd.f32 0.0, %v2939
  %v2941 = vpop.f32.mrb[0].mxu0
  %v2942 = vadd.f32 0.0, %v2941
  %v2943 = vpop.f32.mrb[0].mxu0
  %v2944 = vadd.f32 0.0, %v2943
  %2945 = vmatprep.mubr.bf16.mxu0 0
  %2946 = vmatmul.mubr.bf16.gmra.mrb[0].mxu0 %v2602
  %v2947 = vpop.f32.mrb[0].mxu0
  %v2948 = vadd.f32 0.0, %v2947
  %v2949 = vpop.f32.mrb[0].mxu0
  %v2950 = vadd.f32 0.0, %v2949
  %v2951 = vpop.f32.mrb[0].mxu0
  %v2952 = vadd.f32 0.0, %v2951
  %v2953 = vpop.f32.mrb[0].mxu0
  %v2954 = vadd.f32 0.0, %v2953
  %2955 = vdwg.mxu0
  %2956 = vmatprep.subr.bf16.mxu0 0
  %2957 = vmatpush1.bf16.msra.mxu0 %v2717
  %2958 = vmatprep.subr.bf16.mxu0 0
  %2959 = vmatpush1.bf16.msra.mxu0 %v2720
  %2960 = vmatprep.subr.bf16.mxu0 0
  %2961 = vmatpush1.bf16.msra.mxu0 %v2723
  %2962 = vmatprep.subr.bf16.mxu0 0
  %2963 = vmatpush1.bf16.msra.mxu0 %v2726
  %2964 = vmatprep.subr.bf16.mxu0 0
  %2965 = vmatpush1.bf16.msra.mxu0 %v2729
  %2966 = vmatprep.subr.bf16.mxu0 0
  %2967 = vmatpush1.bf16.msra.mxu0 %v2732
  %2968 = vmatprep.subr.bf16.mxu0 0
  %2969 = vmatpush1.bf16.msra.mxu0 %v2735
  %2970 = vmatprep.subr.bf16.mxu0 0
  %2971 = vmatpush1.bf16.msra.mxu0 %v2738
  %2972 = vmatprep.subr.bf16.mxu0 0
  %2973 = vmatpush1.bf16.msra.mxu0 0
  %2974 = vmatprep.subr.bf16.mxu0 0
  %2975 = vmatpush1.bf16.msra.mxu0 0
  %2976 = vmatprep.subr.bf16.mxu0 0
  %2977 = vmatpush1.bf16.msra.mxu0 0
  %2978 = vmatprep.subr.bf16.mxu0 0
  %2979 = vmatpush1.bf16.msra.mxu0 0
  %2980 = vmatprep.subr.bf16.mxu0 0
  %2981 = vmatpush1.bf16.msra.mxu0 0
  %2982 = vmatprep.subr.bf16.mxu0 0
  %2983 = vmatpush1.bf16.msra.mxu0 0
  %2984 = vmatprep.subr.bf16.mxu0 0
  %2985 = vmatpush1.bf16.msra.mxu0 0
  %2986 = vmatprep.subr.bf16.mxu0 0
  %2987 = vmatpush1.bf16.msra.mxu0 0
  %2988 = vmatprep.mubr.bf16.mxu0 0
  %2989 = vmatmul.mubr.bf16.gmra.mrb[0].mxu0 %v2587
  %v2990 = vpop.f32.mrb[0].mxu0
  %v2991 = vadd.f32 0.0, %v2990
  %v2992 = vpop.f32.mrb[0].mxu0
  %v2993 = vpop.f32.mrb[0].mxu0
  %v2994 = vadd.f32 0.0, %v2993
  %v2995 = vpop.f32.mrb[0].mxu0
  %2996 = vmatprep.mubr.bf16.mxu0 0
  %2997 = vmatmul.mubr.bf16.gmra.mrb[0].mxu0 %v2588
  %v2998 = vpop.f32.mrb[0].mxu0
  %v2999 = vadd.f32 0.0, %v2998
  %v3000 = vpop.f32.mrb[0].mxu0
  %v3001 = vpop.f32.mrb[0].mxu0
  %v3002 = vadd.f32 0.0, %v3001
  %v3003 = vpop.f32.mrb[0].mxu0
  %3004 = vmatprep.mubr.bf16.mxu0 0
  %3005 = vmatmul.mubr.bf16.gmra.mrb[0].mxu0 %v2589
  %v3006 = vpop.f32.mrb[0].mxu0
  %v3007 = vadd.f32 0.0, %v3006
  %v3008 = vpop.f32.mrb[0].mxu0
  %v3009 = vpop.f32.mrb[0].mxu0
  %v3010 = vadd.f32 0.0, %v3009
  %v3011 = vpop.f32.mrb[0].mxu0
  %3012 = vmatprep.mubr.bf16.mxu0 0
  %3013 = vmatmul.mubr.bf16.gmra.mrb[0].mxu0 %v2590
  %v3014 = vpop.f32.mrb[0].mxu0
  %v3015 = vadd.f32 0.0, %v3014
  %v3016 = vpop.f32.mrb[0].mxu0
  %v3017 = vpop.f32.mrb[0].mxu0
  %v3018 = vadd.f32 0.0, %v3017
  %v3019 = vpop.f32.mrb[0].mxu0
  %3020 = vmatprep.mubr.bf16.mxu0 0
  %3021 = vmatmul.mubr.bf16.gmra.mrb[0].mxu0 %v2591
  %v3022 = vpop.f32.mrb[0].mxu0
  %v3023 = vadd.f32 0.0, %v3022
  %v3024 = vpop.f32.mrb[0].mxu0
  %v3025 = vpop.f32.mrb[0].mxu0
  %v3026 = vadd.f32 0.0, %v3025
  %v3027 = vpop.f32.mrb[0].mxu0
  %3028 = vmatprep.mubr.bf16.mxu0 0
  %3029 = vmatmul.mubr.bf16.gmra.mrb[0].mxu0 %v2592
  %v3030 = vpop.f32.mrb[0].mxu0
  %v3031 = vadd.f32 0.0, %v3030
  %v3032 = vpop.f32.mrb[0].mxu0
  %v3033 = vpop.f32.mrb[0].mxu0
  %v3034 = vadd.f32 0.0, %v3033
  %v3035 = vpop.f32.mrb[0].mxu0
  %3036 = vmatprep.mubr.bf16.mxu0 0
  %3037 = vmatmul.mubr.bf16.gmra.mrb[0].mxu0 %v2593
  %v3038 = vpop.f32.mrb[0].mxu0
  %v3039 = vadd.f32 0.0, %v3038
  %v3040 = vpop.f32.mrb[0].mxu0
  %v3041 = vpop.f32.mrb[0].mxu0
  %v3042 = vadd.f32 0.0, %v3041
  %v3043 = vpop.f32.mrb[0].mxu0
  %3044 = vmatprep.mubr.bf16.mxu0 0
  %3045 = vmatmul.mubr.bf16.gmra.mrb[0].mxu0 %v2594
  %v3046 = vpop.f32.mrb[0].mxu0
  %v3047 = vadd.f32 0.0, %v3046
  %v3048 = vpop.f32.mrb[0].mxu0
  %v3049 = vpop.f32.mrb[0].mxu0
  %v3050 = vadd.f32 0.0, %v3049
  %v3051 = vpop.f32.mrb[0].mxu0
  %3052 = vmatprep.mubr.bf16.mxu0 0
  %3053 = vmatmul.mubr.bf16.gmra.mrb[0].mxu0 %v2595
  %v3054 = vpop.f32.mrb[0].mxu0
  %v3055 = vadd.f32 0.0, %v3054
  %v3056 = vpop.f32.mrb[0].mxu0
  %v3057 = vpop.f32.mrb[0].mxu0
  %v3058 = vadd.f32 0.0, %v3057
  %v3059 = vpop.f32.mrb[0].mxu0
  %3060 = vmatprep.mubr.bf16.mxu0 0
  %3061 = vmatmul.mubr.bf16.gmra.mrb[0].mxu0 %v2596
  %v3062 = vpop.f32.mrb[0].mxu0
  %v3063 = vadd.f32 0.0, %v3062
  %v3064 = vpop.f32.mrb[0].mxu0
  %v3065 = vpop.f32.mrb[0].mxu0
  %v3066 = vadd.f32 0.0, %v3065
  %v3067 = vpop.f32.mrb[0].mxu0
  %3068 = vmatprep.mubr.bf16.mxu0 0
  %3069 = vmatmul.mubr.bf16.gmra.mrb[0].mxu0 %v2597
  %v3070 = vpop.f32.mrb[0].mxu0
  %v3071 = vadd.f32 0.0, %v3070
  %v3072 = vpop.f32.mrb[0].mxu0
  %v3073 = vpop.f32.mrb[0].mxu0
  %v3074 = vadd.f32 0.0, %v3073
  %v3075 = vpop.f32.mrb[0].mxu0
  %3076 = vmatprep.mubr.bf16.mxu0 0
  %3077 = vmatmul.mubr.bf16.gmra.mrb[0].mxu0 %v2598
  %v3078 = vpop.f32.mrb[0].mxu0
  %v3079 = vadd.f32 0.0, %v3078
  %v3080 = vpop.f32.mrb[0].mxu0
  %v3081 = vpop.f32.mrb[0].mxu0
  %v3082 = vadd.f32 0.0, %v3081
  %v3083 = vpop.f32.mrb[0].mxu0
  %3084 = vmatprep.mubr.bf16.mxu0 0
  %3085 = vmatmul.mubr.bf16.gmra.mrb[0].mxu0 %v2599
  %v3086 = vpop.f32.mrb[0].mxu0
  %v3087 = vadd.f32 0.0, %v3086
  %v3088 = vpop.f32.mrb[0].mxu0
  %v3089 = vpop.f32.mrb[0].mxu0
  %v3090 = vadd.f32 0.0, %v3089
  %v3091 = vpop.f32.mrb[0].mxu0
  %3092 = vmatprep.mubr.bf16.mxu0 0
  %3093 = vmatmul.mubr.bf16.gmra.mrb[0].mxu0 %v2600
  %v3094 = vpop.f32.mrb[0].mxu0
  %v3095 = vadd.f32 0.0, %v3094
  %v3096 = vpop.f32.mrb[0].mxu0
  %v3097 = vpop.f32.mrb[0].mxu0
  %v3098 = vadd.f32 0.0, %v3097
  %v3099 = vpop.f32.mrb[0].mxu0
  %3100 = vmatprep.mubr.bf16.mxu0 0
  %3101 = vmatmul.mubr.bf16.gmra.mrb[0].mxu0 %v2601
  %v3102 = vpop.f32.mrb[0].mxu0
  %v3103 = vadd.f32 0.0, %v3102
  %v3104 = vpop.f32.mrb[0].mxu0
  %v3105 = vpop.f32.mrb[0].mxu0
  %v3106 = vadd.f32 0.0, %v3105
  %v3107 = vpop.f32.mrb[0].mxu0
  %3108 = vmatprep.mubr.bf16.mxu0 0
  %3109 = vmatmul.mubr.bf16.gmra.mrb[0].mxu0 %v2602
  %v3110 = vpop.f32.mrb[0].mxu0
  %v3111 = vadd.f32 0.0, %v3110
  %v3112 = vpop.f32.mrb[0].mxu0
  %v3113 = vpop.f32.mrb[0].mxu0
  %v3114 = vadd.f32 0.0, %v3113
  %v3115 = vpop.f32.mrb[0].mxu0
  %3116 = vdwg.mxu0
  %v3149 = vunpack.c.l.b16 %v2539
  %v3150 = vunpack.c.l.b16 %v2540
  %v3151 = vunpack.c.l.b16 %v2541
  %v3152 = vunpack.c.l.b16 %v2542
  %v3153 = vunpack.c.l.b16 %v2543
  %v3154 = vunpack.c.l.b16 %v2544
  %v3155 = vunpack.c.l.b16 %v2545
  %v3156 = vunpack.c.l.b16 %v2546
  %v3157 = vunpack.c.l.b16 %v2547
  %v3158 = vunpack.c.l.b16 %v2548
  %v3159 = vunpack.c.l.b16 %v2549
  %v3160 = vunpack.c.l.b16 %v2550
  %v3161 = vunpack.c.l.b16 %v2551
  %v3162 = vunpack.c.l.b16 %v2552
  %v3163 = vunpack.c.l.b16 %v2553
  %v3164 = vunpack.c.l.b16 %v2554
  %v3165 = vunpack.c.l.b16 %v2555
  %v3166 = vunpack.c.l.b16 %v2556
  %v3167 = vunpack.c.l.b16 %v2557
  %v3168 = vunpack.c.l.b16 %v2558
  %v3169 = vunpack.c.l.b16 %v2559
  %v3170 = vunpack.c.l.b16 %v2560
  %v3171 = vunpack.c.l.b16 %v2561
  %v3172 = vunpack.c.l.b16 %v2562
  %v3173 = vunpack.c.l.b16 %v2563
  %v3174 = vunpack.c.l.b16 %v2564
  %v3175 = vunpack.c.l.b16 %v2565
  %v3176 = vunpack.c.l.b16 %v2566
  %v3177 = vunpack.c.l.b16 %v2567
  %v3178 = vunpack.c.l.b16 %v2568
  %v3179 = vunpack.c.l.b16 %v2569
  %v3180 = vunpack.c.l.b16 %v2570
  %v3181 = vpack.c.b16 %v3150, %v3149
  %v3182 = vpack.c.b16 %v3152, %v3151
  %v3183 = vpack.c.b16 %v3154, %v3153
  %v3184 = vpack.c.b16 %v3156, %v3155
  %v3185 = vpack.c.b16 %v3158, %v3157
  %v3186 = vpack.c.b16 %v3160, %v3159
  %v3187 = vpack.c.b16 %v3162, %v3161
  %v3188 = vpack.c.b16 %v3164, %v3163
  %v3189 = vpack.c.b16 %v3166, %v3165
  %v3190 = vpack.c.b16 %v3168, %v3167
  %v3191 = vpack.c.b16 %v3170, %v3169
  %v3192 = vpack.c.b16 %v3172, %v3171
  %v3193 = vpack.c.b16 %v3174, %v3173
  %v3194 = vpack.c.b16 %v3176, %v3175
  %v3195 = vpack.c.b16 %v3178, %v3177
  %v3196 = vpack.c.b16 %v3180, %v3179
  %v3213 = vunpack.c.l.b16 %v2571
  %v3214 = vunpack.c.h.b16 %v2571
  %v3215 = vunpack.c.l.b16 %v2572
  %v3216 = vunpack.c.l.b16 %v2573
  %v3217 = vunpack.c.h.b16 %v2573
  %v3218 = vunpack.c.l.b16 %v2574
  %v3219 = vunpack.c.l.b16 %v2575
  %v3220 = vunpack.c.h.b16 %v2575
  %v3221 = vunpack.c.l.b16 %v2576
  %v3222 = vunpack.c.l.b16 %v2577
  %v3223 = vunpack.c.h.b16 %v2577
  %v3224 = vunpack.c.l.b16 %v2578
  %v3225 = vunpack.c.l.b16 %v2579
  %v3226 = vunpack.c.h.b16 %v2579
  %v3227 = vunpack.c.l.b16 %v2580
  %v3228 = vunpack.c.l.b16 %v2581
  %v3229 = vunpack.c.h.b16 %v2581
  %v3230 = vunpack.c.l.b16 %v2582
  %v3231 = vunpack.c.l.b16 %v2583
  %v3232 = vunpack.c.h.b16 %v2583
  %v3233 = vunpack.c.l.b16 %v2584
  %v3234 = vunpack.c.l.b16 %v2585
  %v3235 = vunpack.c.h.b16 %v2585
  %v3236 = vunpack.c.l.b16 %v2586
  %v3237 = vpack.c.b16 %v3216, %v3213
  %v3238 = vpack.c.b16 %v3217, %v3214
  %v3239 = vpack.c.b16 %v3218, %v3215
  %v3240 = vpack.c.b16 %v3222, %v3219
  %v3241 = vpack.c.b16 %v3223, %v3220
  %v3242 = vpack.c.b16 %v3224, %v3221
  %v3243 = vpack.c.b16 %v3228, %v3225
  %v3244 = vpack.c.b16 %v3229, %v3226
  %v3245 = vpack.c.b16 %v3230, %v3227
  %v3246 = vpack.c.b16 %v3234, %v3231
  %v3247 = vpack.c.b16 %v3235, %v3232
  %v3248 = vpack.c.b16 %v3236, %v3233
  %vm3261 = vcmask 523264
  %v3263 = vsel %vm3261, %v3181, 0
  %v3266 = vsel %vm3261, %v3182, 0
  %v3269 = vsel %vm3261, %v3183, 0
  %v3272 = vsel %vm3261, %v3184, 0
  %v3275 = vsel %vm3261, %v3185, 0
  %v3278 = vsel %vm3261, %v3186, 0
  %v3281 = vsel %vm3261, %v3187, 0
  %v3284 = vsel %vm3261, %v3188, 0
  %v3287 = vsel %vm3261, %v3189, 0
  %v3290 = vsel %vm3261, %v3190, 0
  %v3293 = vsel %vm3261, %v3191, 0
  %v3296 = vsel %vm3261, %v3192, 0
  %v3299 = vsel %vm3261, %v3193, 0
  %v3302 = vsel %vm3261, %v3194, 0
  %v3305 = vsel %vm3261, %v3195, 0
  %v3308 = vsel %vm3261, %v3196, 0
  %3310 = vmatprep.subr.bf16.mxu0 %v3238
  %3311 = vmatpush1.bf16.msra.mxu0 %v3237
  %3312 = vmatprep.subr.bf16.mxu0 %v3241
  %3313 = vmatpush1.bf16.msra.mxu0 %v3240
  %3314 = vmatprep.subr.bf16.mxu0 %v3244
  %3315 = vmatpush1.bf16.msra.mxu0 %v3243
  %3316 = vmatprep.subr.bf16.mxu0 %v3247
  %3317 = vmatpush1.bf16.msra.mxu0 %v3246
  %3318 = vmatprep.subr.bf16.mxu0 0
  %3319 = vmatpush1.bf16.msra.mxu0 0
  %3320 = vmatprep.subr.bf16.mxu0 0
  %3321 = vmatpush1.bf16.msra.mxu0 0
  %3322 = vmatprep.subr.bf16.mxu0 0
  %3323 = vmatpush1.bf16.msra.mxu0 0
  %3324 = vmatprep.subr.bf16.mxu0 0
  %3325 = vmatpush1.bf16.msra.mxu0 0
  %3326 = vmatprep.subr.bf16.mxu0 0
  %3327 = vmatpush1.bf16.msra.mxu0 0
  %3328 = vmatprep.subr.bf16.mxu0 0
  %3329 = vmatpush1.bf16.msra.mxu0 0
  %3330 = vmatprep.subr.bf16.mxu0 0
  %3331 = vmatpush1.bf16.msra.mxu0 0
  %3332 = vmatprep.subr.bf16.mxu0 0
  %3333 = vmatpush1.bf16.msra.mxu0 0
  %3334 = vmatprep.subr.bf16.mxu0 0
  %3335 = vmatpush1.bf16.msra.mxu0 0
  %3336 = vmatprep.subr.bf16.mxu0 0
  %3337 = vmatpush1.bf16.msra.mxu0 0
  %3338 = vmatprep.subr.bf16.mxu0 0
  %3339 = vmatpush1.bf16.msra.mxu0 0
  %3340 = vmatprep.subr.bf16.mxu0 0
  %3341 = vmatpush1.bf16.msra.mxu0 0
  %3342 = vmatprep.mubr.bf16.mxu0 0
  %3343 = vmatmul.mubr.bf16.gmra.mrb[0].mxu0 %v3263
  %v3344 = vpop.f32.mrb[0].mxu0
  %v3345 = vadd.f32 %v2798, %v3344
  %v3346 = vpop.f32.mrb[0].mxu0
  %v3347 = vadd.f32 %v2800, %v3346
  %v3348 = vpop.f32.mrb[0].mxu0
  %v3349 = vadd.f32 %v2802, %v3348
  %v3350 = vpop.f32.mrb[0].mxu0
  %v3351 = vadd.f32 %v2804, %v3350
  %3352 = vmatprep.mubr.bf16.mxu0 0
  %3353 = vmatmul.mubr.bf16.gmra.mrb[0].mxu0 %v3266
  %v3354 = vpop.f32.mrb[0].mxu0
  %v3355 = vadd.f32 %v2808, %v3354
  %v3356 = vpop.f32.mrb[0].mxu0
  %v3357 = vadd.f32 %v2810, %v3356
  %v3358 = vpop.f32.mrb[0].mxu0
  %v3359 = vadd.f32 %v2812, %v3358
  %v3360 = vpop.f32.mrb[0].mxu0
  %v3361 = vadd.f32 %v2814, %v3360
  %3362 = vmatprep.mubr.bf16.mxu0 0
  %3363 = vmatmul.mubr.bf16.gmra.mrb[0].mxu0 %v3269
  %v3364 = vpop.f32.mrb[0].mxu0
  %v3365 = vadd.f32 %v2818, %v3364
  %v3366 = vpop.f32.mrb[0].mxu0
  %v3367 = vadd.f32 %v2820, %v3366
  %v3368 = vpop.f32.mrb[0].mxu0
  %v3369 = vadd.f32 %v2822, %v3368
  %v3370 = vpop.f32.mrb[0].mxu0
  %v3371 = vadd.f32 %v2824, %v3370
  %3372 = vmatprep.mubr.bf16.mxu0 0
  %3373 = vmatmul.mubr.bf16.gmra.mrb[0].mxu0 %v3272
  %v3374 = vpop.f32.mrb[0].mxu0
  %v3375 = vadd.f32 %v2828, %v3374
  %v3376 = vpop.f32.mrb[0].mxu0
  %v3377 = vadd.f32 %v2830, %v3376
  %v3378 = vpop.f32.mrb[0].mxu0
  %v3379 = vadd.f32 %v2832, %v3378
  %v3380 = vpop.f32.mrb[0].mxu0
  %v3381 = vadd.f32 %v2834, %v3380
  %3382 = vmatprep.mubr.bf16.mxu0 0
  %3383 = vmatmul.mubr.bf16.gmra.mrb[0].mxu0 %v3275
  %v3384 = vpop.f32.mrb[0].mxu0
  %v3385 = vadd.f32 %v2838, %v3384
  %v3386 = vpop.f32.mrb[0].mxu0
  %v3387 = vadd.f32 %v2840, %v3386
  %v3388 = vpop.f32.mrb[0].mxu0
  %v3389 = vadd.f32 %v2842, %v3388
  %v3390 = vpop.f32.mrb[0].mxu0
  %v3391 = vadd.f32 %v2844, %v3390
  %3392 = vmatprep.mubr.bf16.mxu0 0
  %3393 = vmatmul.mubr.bf16.gmra.mrb[0].mxu0 %v3278
  %v3394 = vpop.f32.mrb[0].mxu0
  %v3395 = vadd.f32 %v2848, %v3394
  %v3396 = vpop.f32.mrb[0].mxu0
  %v3397 = vadd.f32 %v2850, %v3396
  %v3398 = vpop.f32.mrb[0].mxu0
  %v3399 = vadd.f32 %v2852, %v3398
  %v3400 = vpop.f32.mrb[0].mxu0
  %v3401 = vadd.f32 %v2854, %v3400
  %3402 = vmatprep.mubr.bf16.mxu0 0
  %3403 = vmatmul.mubr.bf16.gmra.mrb[0].mxu0 %v3281
  %v3404 = vpop.f32.mrb[0].mxu0
  %v3405 = vadd.f32 %v2858, %v3404
  %v3406 = vpop.f32.mrb[0].mxu0
  %v3407 = vadd.f32 %v2860, %v3406
  %v3408 = vpop.f32.mrb[0].mxu0
  %v3409 = vadd.f32 %v2862, %v3408
  %v3410 = vpop.f32.mrb[0].mxu0
  %v3411 = vadd.f32 %v2864, %v3410
  %3412 = vmatprep.mubr.bf16.mxu0 0
  %3413 = vmatmul.mubr.bf16.gmra.mrb[0].mxu0 %v3284
  %v3414 = vpop.f32.mrb[0].mxu0
  %v3415 = vadd.f32 %v2868, %v3414
  %v3416 = vpop.f32.mrb[0].mxu0
  %v3417 = vadd.f32 %v2870, %v3416
  %v3418 = vpop.f32.mrb[0].mxu0
  %v3419 = vadd.f32 %v2872, %v3418
  %v3420 = vpop.f32.mrb[0].mxu0
  %v3421 = vadd.f32 %v2874, %v3420
  %3422 = vmatprep.mubr.bf16.mxu0 0
  %3423 = vmatmul.mubr.bf16.gmra.mrb[0].mxu0 %v3287
  %v3424 = vpop.f32.mrb[0].mxu0
  %v3425 = vadd.f32 %v2878, %v3424
  %v3426 = vpop.f32.mrb[0].mxu0
  %v3427 = vadd.f32 %v2880, %v3426
  %v3428 = vpop.f32.mrb[0].mxu0
  %v3429 = vadd.f32 %v2882, %v3428
  %v3430 = vpop.f32.mrb[0].mxu0
  %v3431 = vadd.f32 %v2884, %v3430
  %3432 = vmatprep.mubr.bf16.mxu0 0
  %3433 = vmatmul.mubr.bf16.gmra.mrb[0].mxu0 %v3290
  %v3434 = vpop.f32.mrb[0].mxu0
  %v3435 = vadd.f32 %v2888, %v3434
  %v3436 = vpop.f32.mrb[0].mxu0
  %v3437 = vadd.f32 %v2890, %v3436
  %v3438 = vpop.f32.mrb[0].mxu0
  %v3439 = vadd.f32 %v2892, %v3438
  %v3440 = vpop.f32.mrb[0].mxu0
  %v3441 = vadd.f32 %v2894, %v3440
  %3442 = vmatprep.mubr.bf16.mxu0 0
  %3443 = vmatmul.mubr.bf16.gmra.mrb[0].mxu0 %v3293
  %v3444 = vpop.f32.mrb[0].mxu0
  %v3445 = vadd.f32 %v2898, %v3444
  %v3446 = vpop.f32.mrb[0].mxu0
  %v3447 = vadd.f32 %v2900, %v3446
  %v3448 = vpop.f32.mrb[0].mxu0
  %v3449 = vadd.f32 %v2902, %v3448
  %v3450 = vpop.f32.mrb[0].mxu0
  %v3451 = vadd.f32 %v2904, %v3450
  %3452 = vmatprep.mubr.bf16.mxu0 0
  %3453 = vmatmul.mubr.bf16.gmra.mrb[0].mxu0 %v3296
  %v3454 = vpop.f32.mrb[0].mxu0
  %v3455 = vadd.f32 %v2908, %v3454
  %v3456 = vpop.f32.mrb[0].mxu0
  %v3457 = vadd.f32 %v2910, %v3456
  %v3458 = vpop.f32.mrb[0].mxu0
  %v3459 = vadd.f32 %v2912, %v3458
  %v3460 = vpop.f32.mrb[0].mxu0
  %v3461 = vadd.f32 %v2914, %v3460
  %3462 = vmatprep.mubr.bf16.mxu0 0
  %3463 = vmatmul.mubr.bf16.gmra.mrb[0].mxu0 %v3299
  %v3464 = vpop.f32.mrb[0].mxu0
  %v3465 = vadd.f32 %v2918, %v3464
  %v3466 = vpop.f32.mrb[0].mxu0
  %v3467 = vadd.f32 %v2920, %v3466
  %v3468 = vpop.f32.mrb[0].mxu0
  %v3469 = vadd.f32 %v2922, %v3468
  %v3470 = vpop.f32.mrb[0].mxu0
  %v3471 = vadd.f32 %v2924, %v3470
  %3472 = vmatprep.mubr.bf16.mxu0 0
  %3473 = vmatmul.mubr.bf16.gmra.mrb[0].mxu0 %v3302
  %v3474 = vpop.f32.mrb[0].mxu0
  %v3475 = vadd.f32 %v2928, %v3474
  %v3476 = vpop.f32.mrb[0].mxu0
  %v3477 = vadd.f32 %v2930, %v3476
  %v3478 = vpop.f32.mrb[0].mxu0
  %v3479 = vadd.f32 %v2932, %v3478
  %v3480 = vpop.f32.mrb[0].mxu0
  %v3481 = vadd.f32 %v2934, %v3480
  %3482 = vmatprep.mubr.bf16.mxu0 0
  %3483 = vmatmul.mubr.bf16.gmra.mrb[0].mxu0 %v3305
  %v3484 = vpop.f32.mrb[0].mxu0
  %v3485 = vadd.f32 %v2938, %v3484
  %v3486 = vpop.f32.mrb[0].mxu0
  %v3487 = vadd.f32 %v2940, %v3486
  %v3488 = vpop.f32.mrb[0].mxu0
  %v3489 = vadd.f32 %v2942, %v3488
  %v3490 = vpop.f32.mrb[0].mxu0
  %v3491 = vadd.f32 %v2944, %v3490
  %3492 = vmatprep.mubr.bf16.mxu0 0
  %3493 = vmatmul.mubr.bf16.gmra.mrb[0].mxu0 %v3308
  %v3494 = vpop.f32.mrb[0].mxu0
  %v3495 = vadd.f32 %v2948, %v3494
  %v3496 = vpop.f32.mrb[0].mxu0
  %v3497 = vadd.f32 %v2950, %v3496
  %v3498 = vpop.f32.mrb[0].mxu0
  %v3499 = vadd.f32 %v2952, %v3498
  %v3500 = vpop.f32.mrb[0].mxu0
  %v3501 = vadd.f32 %v2954, %v3500
  %3502 = vdwg.mxu0
  %3503 = vmatprep.subr.bf16.mxu0 0
  %3504 = vmatpush1.bf16.msra.mxu0 %v3239
  %3505 = vmatprep.subr.bf16.mxu0 0
  %3506 = vmatpush1.bf16.msra.mxu0 %v3242
  %3507 = vmatprep.subr.bf16.mxu0 0
  %3508 = vmatpush1.bf16.msra.mxu0 %v3245
  %3509 = vmatprep.subr.bf16.mxu0 0
  %3510 = vmatpush1.bf16.msra.mxu0 %v3248
  %3511 = vmatprep.subr.bf16.mxu0 0
  %3512 = vmatpush1.bf16.msra.mxu0 0
  %3513 = vmatprep.subr.bf16.mxu0 0
  %3514 = vmatpush1.bf16.msra.mxu0 0
  %3515 = vmatprep.subr.bf16.mxu0 0
  %3516 = vmatpush1.bf16.msra.mxu0 0
  %3517 = vmatprep.subr.bf16.mxu0 0
  %3518 = vmatpush1.bf16.msra.mxu0 0
  %3519 = vmatprep.subr.bf16.mxu0 0
  %3520 = vmatpush1.bf16.msra.mxu0 0
  %3521 = vmatprep.subr.bf16.mxu0 0
  %3522 = vmatpush1.bf16.msra.mxu0 0
  %3523 = vmatprep.subr.bf16.mxu0 0
  %3524 = vmatpush1.bf16.msra.mxu0 0
  %3525 = vmatprep.subr.bf16.mxu0 0
  %3526 = vmatpush1.bf16.msra.mxu0 0
  %3527 = vmatprep.subr.bf16.mxu0 0
  %3528 = vmatpush1.bf16.msra.mxu0 0
  %3529 = vmatprep.subr.bf16.mxu0 0
  %3530 = vmatpush1.bf16.msra.mxu0 0
  %3531 = vmatprep.subr.bf16.mxu0 0
  %3532 = vmatpush1.bf16.msra.mxu0 0
  %3533 = vmatprep.subr.bf16.mxu0 0
  %3534 = vmatpush1.bf16.msra.mxu0 0
  %3535 = vmatprep.mubr.bf16.mxu0 0
  %3536 = vmatmul.mubr.bf16.gmra.mrb[0].mxu0 %v3263
  %v3537 = vpop.f32.mrb[0].mxu0
  %v3538 = vadd.f32 %v2991, %v3537
  %v3539 = vpop.f32.mrb[0].mxu0
  %v3540 = vpop.f32.mrb[0].mxu0
  %v3541 = vadd.f32 %v2994, %v3540
  %v3542 = vpop.f32.mrb[0].mxu0
  %3543 = vmatprep.mubr.bf16.mxu0 0
  %3544 = vmatmul.mubr.bf16.gmra.mrb[0].mxu0 %v3266
  %v3545 = vpop.f32.mrb[0].mxu0
  %v3546 = vadd.f32 %v2999, %v3545
  %v3547 = vpop.f32.mrb[0].mxu0
  %v3548 = vpop.f32.mrb[0].mxu0
  %v3549 = vadd.f32 %v3002, %v3548
  %v3550 = vpop.f32.mrb[0].mxu0
  %3551 = vmatprep.mubr.bf16.mxu0 0
  %3552 = vmatmul.mubr.bf16.gmra.mrb[0].mxu0 %v3269
  %v3553 = vpop.f32.mrb[0].mxu0
  %v3554 = vadd.f32 %v3007, %v3553
  %v3555 = vpop.f32.mrb[0].mxu0
  %v3556 = vpop.f32.mrb[0].mxu0
  %v3557 = vadd.f32 %v3010, %v3556
  %v3558 = vpop.f32.mrb[0].mxu0
  %3559 = vmatprep.mubr.bf16.mxu0 0
  %3560 = vmatmul.mubr.bf16.gmra.mrb[0].mxu0 %v3272
  %v3561 = vpop.f32.mrb[0].mxu0
  %v3562 = vadd.f32 %v3015, %v3561
  %v3563 = vpop.f32.mrb[0].mxu0
  %v3564 = vpop.f32.mrb[0].mxu0
  %v3565 = vadd.f32 %v3018, %v3564
  %v3566 = vpop.f32.mrb[0].mxu0
  %3567 = vmatprep.mubr.bf16.mxu0 0
  %3568 = vmatmul.mubr.bf16.gmra.mrb[0].mxu0 %v3275
  %v3569 = vpop.f32.mrb[0].mxu0
  %v3570 = vadd.f32 %v3023, %v3569
  %v3571 = vpop.f32.mrb[0].mxu0
  %v3572 = vpop.f32.mrb[0].mxu0
  %v3573 = vadd.f32 %v3026, %v3572
  %v3574 = vpop.f32.mrb[0].mxu0
  %3575 = vmatprep.mubr.bf16.mxu0 0
  %3576 = vmatmul.mubr.bf16.gmra.mrb[0].mxu0 %v3278
  %v3577 = vpop.f32.mrb[0].mxu0
  %v3578 = vadd.f32 %v3031, %v3577
  %v3579 = vpop.f32.mrb[0].mxu0
  %v3580 = vpop.f32.mrb[0].mxu0
  %v3581 = vadd.f32 %v3034, %v3580
  %v3582 = vpop.f32.mrb[0].mxu0
  %3583 = vmatprep.mubr.bf16.mxu0 0
  %3584 = vmatmul.mubr.bf16.gmra.mrb[0].mxu0 %v3281
  %v3585 = vpop.f32.mrb[0].mxu0
  %v3586 = vadd.f32 %v3039, %v3585
  %v3587 = vpop.f32.mrb[0].mxu0
  %v3588 = vpop.f32.mrb[0].mxu0
  %v3589 = vadd.f32 %v3042, %v3588
  %v3590 = vpop.f32.mrb[0].mxu0
  %3591 = vmatprep.mubr.bf16.mxu0 0
  %3592 = vmatmul.mubr.bf16.gmra.mrb[0].mxu0 %v3284
  %v3593 = vpop.f32.mrb[0].mxu0
  %v3594 = vadd.f32 %v3047, %v3593
  %v3595 = vpop.f32.mrb[0].mxu0
  %v3596 = vpop.f32.mrb[0].mxu0
  %v3597 = vadd.f32 %v3050, %v3596
  %v3598 = vpop.f32.mrb[0].mxu0
  %3599 = vmatprep.mubr.bf16.mxu0 0
  %3600 = vmatmul.mubr.bf16.gmra.mrb[0].mxu0 %v3287
  %v3601 = vpop.f32.mrb[0].mxu0
  %v3602 = vadd.f32 %v3055, %v3601
  %v3603 = vpop.f32.mrb[0].mxu0
  %v3604 = vpop.f32.mrb[0].mxu0
  %v3605 = vadd.f32 %v3058, %v3604
  %v3606 = vpop.f32.mrb[0].mxu0
  %3607 = vmatprep.mubr.bf16.mxu0 0
  %3608 = vmatmul.mubr.bf16.gmra.mrb[0].mxu0 %v3290
  %v3609 = vpop.f32.mrb[0].mxu0
  %v3610 = vadd.f32 %v3063, %v3609
  %v3611 = vpop.f32.mrb[0].mxu0
  %v3612 = vpop.f32.mrb[0].mxu0
  %v3613 = vadd.f32 %v3066, %v3612
  %v3614 = vpop.f32.mrb[0].mxu0
  %3615 = vmatprep.mubr.bf16.mxu0 0
  %3616 = vmatmul.mubr.bf16.gmra.mrb[0].mxu0 %v3293
  %v3617 = vpop.f32.mrb[0].mxu0
  %v3618 = vadd.f32 %v3071, %v3617
  %v3619 = vpop.f32.mrb[0].mxu0
  %v3620 = vpop.f32.mrb[0].mxu0
  %v3621 = vadd.f32 %v3074, %v3620
  %v3622 = vpop.f32.mrb[0].mxu0
  %3623 = vmatprep.mubr.bf16.mxu0 0
  %3624 = vmatmul.mubr.bf16.gmra.mrb[0].mxu0 %v3296
  %v3625 = vpop.f32.mrb[0].mxu0
  %v3626 = vadd.f32 %v3079, %v3625
  %v3627 = vpop.f32.mrb[0].mxu0
  %v3628 = vpop.f32.mrb[0].mxu0
  %v3629 = vadd.f32 %v3082, %v3628
  %v3630 = vpop.f32.mrb[0].mxu0
  %3631 = vmatprep.mubr.bf16.mxu0 0
  %3632 = vmatmul.mubr.bf16.gmra.mrb[0].mxu0 %v3299
  %v3633 = vpop.f32.mrb[0].mxu0
  %v3634 = vadd.f32 %v3087, %v3633
  %v3635 = vpop.f32.mrb[0].mxu0
  %v3636 = vpop.f32.mrb[0].mxu0
  %v3637 = vadd.f32 %v3090, %v3636
  %v3638 = vpop.f32.mrb[0].mxu0
  %3639 = vmatprep.mubr.bf16.mxu0 0
  %3640 = vmatmul.mubr.bf16.gmra.mrb[0].mxu0 %v3302
  %v3641 = vpop.f32.mrb[0].mxu0
  %v3642 = vadd.f32 %v3095, %v3641
  %v3643 = vpop.f32.mrb[0].mxu0
  %v3644 = vpop.f32.mrb[0].mxu0
  %v3645 = vadd.f32 %v3098, %v3644
  %v3646 = vpop.f32.mrb[0].mxu0
  %3647 = vmatprep.mubr.bf16.mxu0 0
  %3648 = vmatmul.mubr.bf16.gmra.mrb[0].mxu0 %v3305
  %v3649 = vpop.f32.mrb[0].mxu0
  %v3650 = vadd.f32 %v3103, %v3649
  %v3651 = vpop.f32.mrb[0].mxu0
  %v3652 = vpop.f32.mrb[0].mxu0
  %v3653 = vadd.f32 %v3106, %v3652
  %v3654 = vpop.f32.mrb[0].mxu0
  %3655 = vmatprep.mubr.bf16.mxu0 0
  %3656 = vmatmul.mubr.bf16.gmra.mrb[0].mxu0 %v3308
  %v3657 = vpop.f32.mrb[0].mxu0
  %v3658 = vadd.f32 %v3111, %v3657
  %v3659 = vpop.f32.mrb[0].mxu0
  %v3660 = vpop.f32.mrb[0].mxu0
  %v3661 = vadd.f32 %v3114, %v3660
  %v3662 = vpop.f32.mrb[0].mxu0
  %3663 = vdwg.mxu0
  %3664 = vst [vmem:[%s8] sm:$0xff] %v3345
  %3665 = vst [vmem:[%s8 + $0x8] sm:$0xff] %v3347
  %3666 = vst [vmem:[%s8 + $0x10] sm:$0xff] %v3538
  %3667 = vst [vmem:[%s8 + $0x18] sm:$0xff] %v3349
  %3668 = vst [vmem:[%s8 + $0x20] sm:$0xff] %v3351
  %3669 = vst [vmem:[%s8 + $0x28] sm:$0xff] %v3541
  %3670 = vst [vmem:[%s8 + $0x30] sm:$0xff] %v3355
  %3671 = vst [vmem:[%s8 + $0x38] sm:$0xff] %v3357
  %3672 = vst [vmem:[%s8 + $0x40] sm:$0xff] %v3546
  %3673 = vst [vmem:[%s8 + $0x48] sm:$0xff] %v3359
  %3674 = vst [vmem:[%s8 + $0x50] sm:$0xff] %v3361
  %3675 = vst [vmem:[%s8 + $0x58] sm:$0xff] %v3549
  %3676 = vst [vmem:[%s8 + $0x60] sm:$0xff] %v3365
  %3677 = vst [vmem:[%s8 + $0x68] sm:$0xff] %v3367
  %3678 = vst [vmem:[%s8 + $0x70] sm:$0xff] %v3554
  %3679 = vst [vmem:[%s8 + $0x78] sm:$0xff] %v3369
  %3680 = vst [vmem:[%s8 + $0x80] sm:$0xff] %v3371
  %3681 = vst [vmem:[%s8 + $0x88] sm:$0xff] %v3557
  %3682 = vst [vmem:[%s8 + $0x90] sm:$0xff] %v3375
  %3683 = vst [vmem:[%s8 + $0x98] sm:$0xff] %v3377
  %3684 = vst [vmem:[%s8 + $0xa0] sm:$0xff] %v3562
  %3685 = vst [vmem:[%s8 + $0xa8] sm:$0xff] %v3379
  %3686 = vst [vmem:[%s8 + $0xb0] sm:$0xff] %v3381
  %3687 = vst [vmem:[%s8 + $0xb8] sm:$0xff] %v3565
  %3688 = vst [vmem:[%s8 + $0xc0] sm:$0xff] %v3385
  %3689 = vst [vmem:[%s8 + $0xc8] sm:$0xff] %v3387
  %3690 = vst [vmem:[%s8 + $0xd0] sm:$0xff] %v3570
  %3691 = vst [vmem:[%s8 + $0xd8] sm:$0xff] %v3389
  %3692 = vst [vmem:[%s8 + $0xe0] sm:$0xff] %v3391
  %3693 = vst [vmem:[%s8 + $0xe8] sm:$0xff] %v3573
  %3694 = vst [vmem:[%s8 + $0xf0] sm:$0xff] %v3395
  %3695 = vst [vmem:[%s8 + $0xf8] sm:$0xff] %v3397
  %3696 = vst [vmem:[%s8 + $0x100] sm:$0xff] %v3578
  %3697 = vst [vmem:[%s8 + $0x108] sm:$0xff] %v3399
  %3698 = vst [vmem:[%s8 + $0x110] sm:$0xff] %v3401
  %3699 = vst [vmem:[%s8 + $0x118] sm:$0xff] %v3581
  %3700 = vst [vmem:[%s8 + $0x120] sm:$0xff] %v3405
  %3701 = vst [vmem:[%s8 + $0x128] sm:$0xff] %v3407
  %3702 = vst [vmem:[%s8 + $0x130] sm:$0xff] %v3586
  %3703 = vst [vmem:[%s8 + $0x138] sm:$0xff] %v3409
  %3704 = vst [vmem:[%s8 + $0x140] sm:$0xff] %v3411
  %3705 = vst [vmem:[%s8 + $0x148] sm:$0xff] %v3589
  %3706 = vst [vmem:[%s8 + $0x150] sm:$0xff] %v3415
  %3707 = vst [vmem:[%s8 + $0x158] sm:$0xff] %v3417
  %3708 = vst [vmem:[%s8 + $0x160] sm:$0xff] %v3594
  %3709 = vst [vmem:[%s8 + $0x168] sm:$0xff] %v3419
  %3710 = vst [vmem:[%s8 + $0x170] sm:$0xff] %v3421
  %3711 = vst [vmem:[%s8 + $0x178] sm:$0xff] %v3597
  %3712 = vst [vmem:[%s8 + $0x180] sm:$0xff] %v3425
  %3713 = vst [vmem:[%s8 + $0x188] sm:$0xff] %v3427
  %3714 = vst [vmem:[%s8 + $0x190] sm:$0xff] %v3602
  %3715 = vst [vmem:[%s8 + $0x198] sm:$0xff] %v3429
  %3716 = vst [vmem:[%s8 + $0x1a0] sm:$0xff] %v3431
  %3717 = vst [vmem:[%s8 + $0x1a8] sm:$0xff] %v3605
  %3718 = vst [vmem:[%s8 + $0x1b0] sm:$0xff] %v3435
  %3719 = vst [vmem:[%s8 + $0x1b8] sm:$0xff] %v3437
  %3720 = vst [vmem:[%s8 + $0x1c0] sm:$0xff] %v3610
  %3721 = vst [vmem:[%s8 + $0x1c8] sm:$0xff] %v3439
  %3722 = vst [vmem:[%s8 + $0x1d0] sm:$0xff] %v3441
  %3723 = vst [vmem:[%s8 + $0x1d8] sm:$0xff] %v3613
  %3724 = vst [vmem:[%s8 + $0x1e0] sm:$0xff] %v3445
  %3725 = vst [vmem:[%s8 + $0x1e8] sm:$0xff] %v3447
  %3726 = vst [vmem:[%s8 + $0x1f0] sm:$0xff] %v3618
  %3727 = vst [vmem:[%s8 + $0x1f8] sm:$0xff] %v3449
  %3728 = vst [vmem:[%s8 + $0x200] sm:$0xff] %v3451
  %3729 = vst [vmem:[%s8 + $0x208] sm:$0xff] %v3621
  %3730 = vst [vmem:[%s8 + $0x210] sm:$0xff] %v3455
  %3731 = vst [vmem:[%s8 + $0x218] sm:$0xff] %v3457
  %3732 = vst [vmem:[%s8 + $0x220] sm:$0xff] %v3626
  %3733 = vst [vmem:[%s8 + $0x228] sm:$0xff] %v3459
  %3734 = vst [vmem:[%s8 + $0x230] sm:$0xff] %v3461
  %3735 = vst [vmem:[%s8 + $0x238] sm:$0xff] %v3629
  %3736 = vst [vmem:[%s8 + $0x240] sm:$0xff] %v3465
  %3737 = vst [vmem:[%s8 + $0x248] sm:$0xff] %v3467
  %3738 = vst [vmem:[%s8 + $0x250] sm:$0xff] %v3634
  %3739 = vst [vmem:[%s8 + $0x258] sm:$0xff] %v3469
  %3740 = vst [vmem:[%s8 + $0x260] sm:$0xff] %v3471
  %3741 = vst [vmem:[%s8 + $0x268] sm:$0xff] %v3637
  %3742 = vst [vmem:[%s8 + $0x270] sm:$0xff] %v3475
  %3743 = vst [vmem:[%s8 + $0x278] sm:$0xff] %v3477
  %3744 = vst [vmem:[%s8 + $0x280] sm:$0xff] %v3642
  %3745 = vst [vmem:[%s8 + $0x288] sm:$0xff] %v3479
  %3746 = vst [vmem:[%s8 + $0x290] sm:$0xff] %v3481
  %3747 = vst [vmem:[%s8 + $0x298] sm:$0xff] %v3645
  %3748 = vst [vmem:[%s8 + $0x2a0] sm:$0xff] %v3485
  %3749 = vst [vmem:[%s8 + $0x2a8] sm:$0xff] %v3487
  %3750 = vst [vmem:[%s8 + $0x2b0] sm:$0xff] %v3650
  %3751 = vst [vmem:[%s8 + $0x2b8] sm:$0xff] %v3489
  %3752 = vst [vmem:[%s8 + $0x2c0] sm:$0xff] %v3491
  %3753 = vst [vmem:[%s8 + $0x2c8] sm:$0xff] %v3653
  %3754 = vst [vmem:[%s8 + $0x2d0] sm:$0xff] %v3495
  %3755 = vst [vmem:[%s8 + $0x2d8] sm:$0xff] %v3497
  %3756 = vst [vmem:[%s8 + $0x2e0] sm:$0xff] %v3658
  %3757 = vst [vmem:[%s8 + $0x2e8] sm:$0xff] %v3499
  %3758 = vst [vmem:[%s8 + $0x2f0] sm:$0xff] %v3501
  %3759 = vst [vmem:[%s8 + $0x2f8] sm:$0xff] %v3661
  // Predicated region
  $region38: #{_lambda_.1} parent=0 // pred_check
    _
  $region39: #{_lambda_.1} parent=0 // pred_check_branch
    %3761 = sbr.rel (0) target = $region41
  $region40: #{_lambda_.1} parent=0 // pred_region
    _
  $region41: #{_lambda_.1} parent=0 // pred_fallthru
    _
  // Predicated region
  $region42: #{_lambda_.1} parent=0 // pred_check
    _
  $region43: #{_lambda_.1} parent=0 // pred_check_branch
    %3763 = sbr.rel (0) target = $region45
  $region44: #{_lambda_.1} parent=0 // pred_region
    _
  $region45: #{_lambda_.1} parent=0 // pred_fallthru
    _

</llo_original>
